<compile_context>
chip_gen: v7x
topology: tpu7x:2x2x1
jax: 0.10.0
libtpu: 0.0.40
codegen_flags: <defaults>
</compile_context>

<pallas_src>
import math
import jax
import jax.numpy as jnp
from jax.experimental import pallas as pl
from jax.experimental.pallas import tpu as pltpu

# ----- small synthetic configuration -----
N_ITEM     = 50
MAX_LEN    = 8
D_MODEL    = 32
NHEAD      = 4
DIM_FF     = 64
NUM_LAYERS = 2
HEAD_DIM   = D_MODEL // NHEAD
EPS        = 1e-5
# Stand-in for -inf key padding: exp(x - max) underflows to exactly 0 in f32,
# so softmax matches the -inf behaviour (and is NaN-safe in-kernel).
NEG_INF    = -1e30
V_PAD      = 128            # vocab (n_item + 1 = 51) padded to a lane-dense 128


def _layer_norm(x, g, b):
    mean = jnp.mean(x, axis=-1, keepdims=True)
    var = jnp.mean(jnp.square(x - mean), axis=-1, keepdims=True)
    return (x - mean) * jax.lax.rsqrt(var + EPS) * g + b


def sasrec_kernel(x_ref, mask_ref,
                  wqkv_ref, bqkv_ref, wo_ref, bo_ref,
                  w1_ref, b1_ref, w2_ref, b2_ref,
                  g1_ref, be1_ref, g2_ref, be2_ref,
                  gf_ref, bef_ref, emb_ref, out_ref):
    x = x_ref[...]                    # (TB, L, D) f32 — embedded + pos-encoded
    mask = mask_ref[...]              # (TB, L) f32: 0 valid, NEG_INF padding
    TB, L, _ = x.shape
    scale = 1.0 / math.sqrt(HEAD_DIM)
    mask_h = jnp.concatenate([mask] * NHEAD, axis=0)        # (H*TB, L)

    # TODO(synk): switch to lax.fori_loop + dynamic ref indexing if NUM_LAYERS grows.
    for layer in range(NUM_LAYERS):
        xb = x.astype(jnp.bfloat16)

        # ---- fused QKV projection: one MXU push, 96 output lanes ----
        qkv = jnp.einsum('bld,de->ble', xb, wqkv_ref[layer],
                         preferred_element_type=jnp.float32) + bqkv_ref[layer]
        q = qkv[:, :, 0:D_MODEL]
        k = qkv[:, :, D_MODEL:2 * D_MODEL]
        v = qkv[:, :, 2 * D_MODEL:3 * D_MODEL]

        # ---- batch heads into the leading dim: (H*TB, L, HEAD_DIM) ----
        qh = jnp.concatenate(
            [q[:, :, h * HEAD_DIM:(h + 1) * HEAD_DIM] for h in range(NHEAD)], axis=0)
        kh = jnp.concatenate(
            [k[:, :, h * HEAD_DIM:(h + 1) * HEAD_DIM] for h in range(NHEAD)], axis=0)
        vh = jnp.concatenate(
            [v[:, :, h * HEAD_DIM:(h + 1) * HEAD_DIM] for h in range(NHEAD)], axis=0)

        # one batched score matmul + one softmax over all heads
        s = jnp.einsum('bqd,bkd->bqk', qh.astype(jnp.bfloat16),
                       kh.astype(jnp.bfloat16),
                       preferred_element_type=jnp.float32) * scale
        s = s + mask_h[:, None, :]                          # key-padding mask
        s = s - jnp.max(s, axis=-1, keepdims=True)
        p = jnp.exp(s)
        p = p * pl.reciprocal(jnp.sum(p, axis=-1, keepdims=True), approx=True)
        ctx = jnp.einsum('bqk,bkd->bqd', p.astype(jnp.bfloat16),
                         vh.astype(jnp.bfloat16),
                         preferred_element_type=jnp.float32)  # (H*TB, L, HEAD_DIM)

        # re-assemble heads on lanes, then ONE out-projection (contraction = D)
        ctx_full = jnp.concatenate(
            [ctx[h * TB:(h + 1) * TB] for h in range(NHEAD)], axis=-1)  # (TB, L, D)
        attn = jnp.einsum('bld,de->ble', ctx_full.astype(jnp.bfloat16),
                          wo_ref[layer],
                          preferred_element_type=jnp.float32) + bo_ref[layer]

        # post-norm transformer encoder layer (norm_first=False), dropout = identity
        x = _layer_norm(x + attn, g1_ref[layer], be1_ref[layer])

        h1 = jnp.einsum('bld,df->blf', x.astype(jnp.bfloat16), w1_ref[layer],
                        preferred_element_type=jnp.float32) + b1_ref[layer]
        h1 = jnp.maximum(h1, 0.0)                           # ReLU
        ff = jnp.einsum('blf,fd->bld', h1.astype(jnp.bfloat16), w2_ref[layer],
                        preferred_element_type=jnp.float32) + b2_ref[layer]
        x = _layer_norm(x + ff, g2_ref[layer], be2_ref[layer])

    # final LayerNorm from nn.TransformerEncoder(norm=self.norm)
    x = _layer_norm(x, gf_ref[...], bef_ref[...])
    x_last = x[:, L - 1, :]                                 # (TB, D) last position
    # output = x_last @ item_embedding.weight.T  (vocab padded to 128 lanes)
    out_ref[...] = jnp.einsum('bd,dv->bv', x_last.astype(jnp.bfloat16),
                              emb_ref[...],
                              preferred_element_type=jnp.float32)


def sinusoidal_pe(max_len, d_model):
    position = jnp.arange(max_len, dtype=jnp.float32)[:, None]
    div_term = jnp.exp(jnp.arange(0, d_model, 2, dtype=jnp.float32) *
                       (-math.log(10000.0) / d_model))
    pe = jnp.zeros((max_len, d_model), jnp.float32)
    pe = pe.at[:, 0::2].set(jnp.sin(position * div_term))
    pe = pe.at[:, 1::2].set(jnp.cos(position * div_term))
    return pe


def init_params(key):
    ks = jax.random.split(key, 8)

    def nrm(k, shape, s=0.02):
        return jax.random.normal(k, shape, jnp.float32) * s

    emb = nrm(ks[0], (N_ITEM + 1, D_MODEL))
    emb = emb.at[N_ITEM].set(0.0)   # padding_idx=-1 -> last row zeroed
    return dict(
        emb=emb,
        pe=sinusoidal_pe(MAX_LEN, D_MODEL),
        wqkv=nrm(ks[1], (NUM_LAYERS, 3 * D_MODEL, D_MODEL)),   # PyTorch [out, in]
        bqkv=nrm(ks[2], (NUM_LAYERS, 1, 3 * D_MODEL), 0.01),
        wo=nrm(ks[3], (NUM_LAYERS, D_MODEL, D_MODEL)),
        bo=jnp.zeros((NUM_LAYERS, 1, D_MODEL), jnp.float32),
        w1=nrm(ks[4], (NUM_LAYERS, DIM_FF, D_MODEL)),
        b1=nrm(ks[5], (NUM_LAYERS, 1, DIM_FF), 0.01),
        w2=nrm(ks[6], (NUM_LAYERS, D_MODEL, DIM_FF)),
        b2=nrm(ks[7], (NUM_LAYERS, 1, D_MODEL), 0.01),
        g1=jnp.ones((NUM_LAYERS, 1, D_MODEL), jnp.float32),
        be1=jnp.zeros((NUM_LAYERS, 1, D_MODEL), jnp.float32),
        g2=jnp.ones((NUM_LAYERS, 1, D_MODEL), jnp.float32),
        be2=jnp.zeros((NUM_LAYERS, 1, D_MODEL), jnp.float32),
        gf=jnp.ones((1, D_MODEL), jnp.float32),
        bef=jnp.zeros((1, D_MODEL), jnp.float32),
    )


@jax.jit
def sasrec_forward(historical_items, params):
    B, L = historical_items.shape
    # generate_padding_mask: 0 for valid, -inf (here NEG_INF) for item == -1
    mask = jnp.where(historical_items == -1, NEG_INF, 0.0).astype(jnp.float32)
    # historical_items[historical_items == -1] = n_item
    ids = jnp.where(historical_items == -1, N_ITEM, historical_items)
    # glue: embedding gather + sinusoidal positional encoding (dropout = identity)
    src = jnp.take(params['emb'], ids, axis=0) + params['pe'][None, :L, :]
    src = src.astype(jnp.float32)

    # --- layout plumbing in the wrapper (free, outside the hot kernel) ---
    # transpose all weights to [in, out] and cast matmul operands to bf16
    wqkv_t = jnp.transpose(params['wqkv'], (0, 2, 1)).astype(jnp.bfloat16)
    wo_t = jnp.transpose(params['wo'], (0, 2, 1)).astype(jnp.bfloat16)
    w1_t = jnp.transpose(params['w1'], (0, 2, 1)).astype(jnp.bfloat16)
    w2_t = jnp.transpose(params['w2'], (0, 2, 1)).astype(jnp.bfloat16)
    # pad vocab 51 -> 128 so the output tile is lane-dense; transpose to (D, V_PAD)
    emb_pad = jnp.zeros((V_PAD, D_MODEL), jnp.float32).at[:N_ITEM + 1].set(params['emb'])
    emb_t = emb_pad.T.astype(jnp.bfloat16)

    kernel_args = (src, mask,
                   wqkv_t, params['bqkv'], wo_t, params['bo'],
                   w1_t, params['b1'], w2_t, params['b2'],
                   params['g1'], params['be1'], params['g2'], params['be2'],
                   params['gf'], params['bef'], emb_t)

    # Batch grid: TB = B at toy sizes (one program); with larger B, tile TB in
    # multiples of 8 so v7x can shard programs across both TensorCores and
    # activations stay within the 64 MiB VMEM budget.
    TB = B
    grid = (pl.cdiv(B, TB),)

    def batch_spec(shape):
        nd = len(shape)
        return pl.BlockSpec(shape, lambda b, _n=nd: (b,) + (0,) * (_n - 1))

    def const_spec(shape):
        nd = len(shape)
        return pl.BlockSpec(shape, lambda b, _n=nd: (0,) * _n)

    in_specs = [batch_spec((TB, L, D_MODEL)), batch_spec((TB, L))]
    in_specs += [const_spec(a.shape) for a in kernel_args[2:]]
    out_specs = pl.BlockSpec((TB, V_PAD), lambda b: (b, 0))

    logits = pl.pallas_call(
        sasrec_kernel,
        out_shape=jax.ShapeDtypeStruct((B, V_PAD), jnp.float32),
        grid=grid,
        in_specs=in_specs,
        out_specs=out_specs,
        compiler_params=pltpu.CompilerParams(
            dimension_semantics=("parallel",)),
    )(*kernel_args)

    # return output[:, :-1]  (padded columns >= n_item+1 are zero and dropped too)
    return logits[:, :N_ITEM]


if __name__ == "__main__":
    key = jax.random.PRNGKey(0)
    pkey, ikey = jax.random.split(key)
    params = init_params(pkey)

    historical_items = jax.random.randint(ikey, (2, MAX_LEN), 0, N_ITEM, dtype=jnp.int32)
    # put some -1 padding to exercise the key-padding mask (keep >=1 valid key per row)
    historical_items = historical_items.at[1, :3].set(-1)

    out = sasrec_forward(historical_items, params)
    out = jax.block_until_ready(out)
    assert out.shape == (2, N_ITEM), out.shape
    assert not bool(jnp.isnan(out).any())
    print("KERNEL_OK")
</pallas_src>

<mosaic_0001>
module attributes {stable_mosaic.version = 11 : i64} {
  func.func @sasrec_kernel(%arg0: i32, %arg1: memref<2x8x32xf32, #tpu.memory_space<vmem>>, %arg2: memref<2x8xf32, #tpu.memory_space<vmem>>, %arg3: memref<2x32x96xbf16, #tpu.memory_space<vmem>>, %arg4: memref<2x1x96xf32, #tpu.memory_space<vmem>>, %arg5: memref<2x32x32xbf16, #tpu.memory_space<vmem>>, %arg6: memref<2x1x32xf32, #tpu.memory_space<vmem>>, %arg7: memref<2x32x64xbf16, #tpu.memory_space<vmem>>, %arg8: memref<2x1x64xf32, #tpu.memory_space<vmem>>, %arg9: memref<2x64x32xbf16, #tpu.memory_space<vmem>>, %arg10: memref<2x1x32xf32, #tpu.memory_space<vmem>>, %arg11: memref<2x1x32xf32, #tpu.memory_space<vmem>>, %arg12: memref<2x1x32xf32, #tpu.memory_space<vmem>>, %arg13: memref<2x1x32xf32, #tpu.memory_space<vmem>>, %arg14: memref<2x1x32xf32, #tpu.memory_space<vmem>>, %arg15: memref<1x32xf32, #tpu.memory_space<vmem>>, %arg16: memref<1x32xf32, #tpu.memory_space<vmem>>, %arg17: memref<32x128xbf16, #tpu.memory_space<vmem>>, %arg18: memref<2x128xf32, #tpu.memory_space<vmem>>) attributes {dimension_semantics = [#tpu.dimension_semantics<parallel>], iteration_bounds = array<i64: 1>, scalar_prefetch = 0 : i64, scratch_operands = 0 : i64, tpu.core_type = #tpu.core_type<tc>, window_params = [{transform_indices = @transform_0, window_bounds = array<i64: 2, 8, 32>}, {transform_indices = @transform_1, window_bounds = array<i64: 2, 8>}, {pipeline_mode = #tpu.pipeline_mode<synchronous>, transform_indices = @transform_2, window_bounds = array<i64: 2, 32, 96>}, {pipeline_mode = #tpu.pipeline_mode<synchronous>, transform_indices = @transform_3, window_bounds = array<i64: 2, 1, 96>}, {pipeline_mode = #tpu.pipeline_mode<synchronous>, transform_indices = @transform_4, window_bounds = array<i64: 2, 32, 32>}, {pipeline_mode = #tpu.pipeline_mode<synchronous>, transform_indices = @transform_5, window_bounds = array<i64: 2, 1, 32>}, {pipeline_mode = #tpu.pipeline_mode<synchronous>, transform_indices = @transform_6, window_bounds = array<i64: 2, 32, 64>}, {pipeline_mode = #tpu.pipeline_mode<synchronous>, transform_indices = @transform_7, window_bounds = array<i64: 2, 1, 64>}, {pipeline_mode = #tpu.pipeline_mode<synchronous>, transform_indices = @transform_8, window_bounds = array<i64: 2, 64, 32>}, {pipeline_mode = #tpu.pipeline_mode<synchronous>, transform_indices = @transform_9, window_bounds = array<i64: 2, 1, 32>}, {pipeline_mode = #tpu.pipeline_mode<synchronous>, transform_indices = @transform_10, window_bounds = array<i64: 2, 1, 32>}, {pipeline_mode = #tpu.pipeline_mode<synchronous>, transform_indices = @transform_11, window_bounds = array<i64: 2, 1, 32>}, {pipeline_mode = #tpu.pipeline_mode<synchronous>, transform_indices = @transform_12, window_bounds = array<i64: 2, 1, 32>}, {pipeline_mode = #tpu.pipeline_mode<synchronous>, transform_indices = @transform_13, window_bounds = array<i64: 2, 1, 32>}, {pipeline_mode = #tpu.pipeline_mode<synchronous>, transform_indices = @transform_14, window_bounds = array<i64: 1, 32>}, {pipeline_mode = #tpu.pipeline_mode<synchronous>, transform_indices = @transform_15, window_bounds = array<i64: 1, 32>}, {pipeline_mode = #tpu.pipeline_mode<synchronous>, transform_indices = @transform_16, window_bounds = array<i64: 32, 128>}, {transform_indices = @transform_17, window_bounds = array<i64: 2, 128>}]} {
    %c0 = arith.constant 0 : index
    %c0_0 = arith.constant 0 : index
    %c0_1 = arith.constant 0 : index
    %0 = vector.load %arg1[%c0, %c0_0, %c0_1] : memref<2x8x32xf32, #tpu.memory_space<vmem>>, vector<2x8x32xf32>
    %c0_2 = arith.constant 0 : index
    %c0_3 = arith.constant 0 : index
    %1 = vector.load %arg2[%c0_2, %c0_3] : memref<2x8xf32, #tpu.memory_space<vmem>>, vector<2x8xf32>
    %2 = tpu.concatenate %1, %1, %1, %1 in 0 : vector<2x8xf32>, vector<2x8xf32>, vector<2x8xf32>, vector<2x8xf32> -> vector<8x8xf32>
    %3 = arith.truncf %0 : vector<2x8x32xf32> to vector<2x8x32xbf16>
    %c0_4 = arith.constant 0 : index
    %c0_5 = arith.constant 0 : index
    %c0_6 = arith.constant 0 : index
    %4 = vector.load %arg3[%c0_4, %c0_5, %c0_6] : memref<2x32x96xbf16, #tpu.memory_space<vmem>>, vector<1x32x96xbf16>
    %5 = vector.shape_cast %4 : vector<1x32x96xbf16> to vector<32x96xbf16>
    "tpu.trace_start"() <{level = 10 : i32, message = "bld,de->ble"}> : () -> ()
    %cst = arith.constant dense<0.000000e+00> : vector<2x8x96xf32>
    %6 = tpu.matmul %3, %5, %cst {dimension_numbers = #tpu.dot_dimension_numbers<[2], [0], [0, 1], [1], [0, 0, 0, 1, 1, 1], [], []>} : vector<2x8x32xbf16>, vector<32x96xbf16>, vector<2x8x96xf32> -> vector<2x8x96xf32>
    "tpu.trace_stop"() : () -> ()
    %c0_7 = arith.constant 0 : index
    %c0_8 = arith.constant 0 : index
    %c0_9 = arith.constant 0 : index
    %7 = vector.load %arg4[%c0_7, %c0_8, %c0_9] : memref<2x1x96xf32, #tpu.memory_space<vmem>>, vector<1x1x96xf32>
    %8 = vector.shape_cast %7 : vector<1x1x96xf32> to vector<1x96xf32>
    %9 = vector.shape_cast %8 : vector<1x96xf32> to vector<1x1x96xf32>
    %10 = vector.broadcast %9 : vector<1x1x96xf32> to vector<2x8x96xf32>
    %11 = arith.addf %6, %10 : vector<2x8x96xf32>
    %12 = vector.extract_strided_slice %11 {offsets = [0, 0, 0], sizes = [2, 8, 32], strides = [1, 1, 1]} : vector<2x8x96xf32> to vector<2x8x32xf32>
    %13 = vector.extract_strided_slice %11 {offsets = [0, 0, 32], sizes = [2, 8, 32], strides = [1, 1, 1]} : vector<2x8x96xf32> to vector<2x8x32xf32>
    %14 = vector.extract_strided_slice %11 {offsets = [0, 0, 64], sizes = [2, 8, 32], strides = [1, 1, 1]} : vector<2x8x96xf32> to vector<2x8x32xf32>
    %15 = vector.extract_strided_slice %12 {offsets = [0, 0, 0], sizes = [2, 8, 8], strides = [1, 1, 1]} : vector<2x8x32xf32> to vector<2x8x8xf32>
    %16 = vector.extract_strided_slice %12 {offsets = [0, 0, 8], sizes = [2, 8, 8], strides = [1, 1, 1]} : vector<2x8x32xf32> to vector<2x8x8xf32>
    %17 = vector.extract_strided_slice %12 {offsets = [0, 0, 16], sizes = [2, 8, 8], strides = [1, 1, 1]} : vector<2x8x32xf32> to vector<2x8x8xf32>
    %18 = vector.extract_strided_slice %12 {offsets = [0, 0, 24], sizes = [2, 8, 8], strides = [1, 1, 1]} : vector<2x8x32xf32> to vector<2x8x8xf32>
    %19 = tpu.concatenate %15, %16, %17, %18 in 0 : vector<2x8x8xf32>, vector<2x8x8xf32>, vector<2x8x8xf32>, vector<2x8x8xf32> -> vector<8x8x8xf32>
    %20 = vector.extract_strided_slice %13 {offsets = [0, 0, 0], sizes = [2, 8, 8], strides = [1, 1, 1]} : vector<2x8x32xf32> to vector<2x8x8xf32>
    %21 = vector.extract_strided_slice %13 {offsets = [0, 0, 8], sizes = [2, 8, 8], strides = [1, 1, 1]} : vector<2x8x32xf32> to vector<2x8x8xf32>
    %22 = vector.extract_strided_slice %13 {offsets = [0, 0, 16], sizes = [2, 8, 8], strides = [1, 1, 1]} : vector<2x8x32xf32> to vector<2x8x8xf32>
    %23 = vector.extract_strided_slice %13 {offsets = [0, 0, 24], sizes = [2, 8, 8], strides = [1, 1, 1]} : vector<2x8x32xf32> to vector<2x8x8xf32>
    %24 = tpu.concatenate %20, %21, %22, %23 in 0 : vector<2x8x8xf32>, vector<2x8x8xf32>, vector<2x8x8xf32>, vector<2x8x8xf32> -> vector<8x8x8xf32>
    %25 = vector.extract_strided_slice %14 {offsets = [0, 0, 0], sizes = [2, 8, 8], strides = [1, 1, 1]} : vector<2x8x32xf32> to vector<2x8x8xf32>
    %26 = vector.extract_strided_slice %14 {offsets = [0, 0, 8], sizes = [2, 8, 8], strides = [1, 1, 1]} : vector<2x8x32xf32> to vector<2x8x8xf32>
    %27 = vector.extract_strided_slice %14 {offsets = [0, 0, 16], sizes = [2, 8, 8], strides = [1, 1, 1]} : vector<2x8x32xf32> to vector<2x8x8xf32>
    %28 = vector.extract_strided_slice %14 {offsets = [0, 0, 24], sizes = [2, 8, 8], strides = [1, 1, 1]} : vector<2x8x32xf32> to vector<2x8x8xf32>
    %29 = tpu.concatenate %25, %26, %27, %28 in 0 : vector<2x8x8xf32>, vector<2x8x8xf32>, vector<2x8x8xf32>, vector<2x8x8xf32> -> vector<8x8x8xf32>
    %30 = arith.truncf %19 : vector<8x8x8xf32> to vector<8x8x8xbf16>
    %31 = arith.truncf %24 : vector<8x8x8xf32> to vector<8x8x8xbf16>
    "tpu.trace_start"() <{level = 10 : i32, message = "bqd,bkd->bqk"}> : () -> ()
    %cst_10 = arith.constant dense<0.000000e+00> : vector<8x8x8xf32>
    %32 = tpu.matmul %30, %31, %cst_10 {dimension_numbers = #tpu.dot_dimension_numbers<[2], [2], [1], [1], [0, 0, 0, 1, 1, 1], [0], [0]>} : vector<8x8x8xbf16>, vector<8x8x8xbf16>, vector<8x8x8xf32> -> vector<8x8x8xf32>
    "tpu.trace_stop"() : () -> ()
    %cst_11 = arith.constant 0.353553385 : f32
    %33 = vector.broadcast %cst_11 : f32 to vector<8x8x8xf32>
    %34 = arith.mulf %32, %33 : vector<8x8x8xf32>
    %35 = vector.shape_cast %2 : vector<8x8xf32> to vector<8x1x8xf32>
    %36 = vector.broadcast %35 : vector<8x1x8xf32> to vector<8x8x8xf32>
    %37 = arith.addf %34, %36 : vector<8x8x8xf32>
    %cst_12 = arith.constant dense<0xFF800000> : vector<8x8xf32>
    %38 = vector.multi_reduction <maximumf>, %37, %cst_12 [2] : vector<8x8x8xf32> to vector<8x8xf32>
    %39 = vector.shape_cast %38 : vector<8x8xf32> to vector<8x8x1xf32>
    %40 = vector.broadcast %39 : vector<8x8x1xf32> to vector<8x8x8xf32>
    %41 = arith.subf %37, %40 : vector<8x8x8xf32>
    %42 = math.exp %41 : vector<8x8x8xf32>
    %cst_13 = arith.constant dense<0.000000e+00> : vector<8x8xf32>
    %43 = vector.multi_reduction <add>, %42, %cst_13 [2] : vector<8x8x8xf32> to vector<8x8xf32>
    %44 = vector.shape_cast %43 : vector<8x8xf32> to vector<8x8x1xf32>
    %45 = tpu.reciprocal %44 {approx = true} : vector<8x8x1xf32> -> vector<8x8x1xf32>
    %46 = vector.broadcast %45 : vector<8x8x1xf32> to vector<8x8x8xf32>
    %47 = arith.mulf %42, %46 : vector<8x8x8xf32>
    %48 = arith.truncf %47 : vector<8x8x8xf32> to vector<8x8x8xbf16>
    %49 = arith.truncf %29 : vector<8x8x8xf32> to vector<8x8x8xbf16>
    "tpu.trace_start"() <{level = 10 : i32, message = "bqk,bkd->bqd"}> : () -> ()
    %cst_14 = arith.constant dense<0.000000e+00> : vector<8x8x8xf32>
    %50 = tpu.matmul %48, %49, %cst_14 {dimension_numbers = #tpu.dot_dimension_numbers<[2], [1], [1], [2], [0, 0, 0, 1, 1, 2], [0], [0]>} : vector<8x8x8xbf16>, vector<8x8x8xbf16>, vector<8x8x8xf32> -> vector<8x8x8xf32>
    "tpu.trace_stop"() : () -> ()
    %51 = vector.extract_strided_slice %50 {offsets = [0, 0, 0], sizes = [2, 8, 8], strides = [1, 1, 1]} : vector<8x8x8xf32> to vector<2x8x8xf32>
    %52 = vector.extract_strided_slice %50 {offsets = [2, 0, 0], sizes = [2, 8, 8], strides = [1, 1, 1]} : vector<8x8x8xf32> to vector<2x8x8xf32>
    %53 = vector.extract_strided_slice %50 {offsets = [4, 0, 0], sizes = [2, 8, 8], strides = [1, 1, 1]} : vector<8x8x8xf32> to vector<2x8x8xf32>
    %54 = vector.extract_strided_slice %50 {offsets = [6, 0, 0], sizes = [2, 8, 8], strides = [1, 1, 1]} : vector<8x8x8xf32> to vector<2x8x8xf32>
    %55 = tpu.concatenate %51, %52, %53, %54 in 2 : vector<2x8x8xf32>, vector<2x8x8xf32>, vector<2x8x8xf32>, vector<2x8x8xf32> -> vector<2x8x32xf32>
    %56 = arith.truncf %55 : vector<2x8x32xf32> to vector<2x8x32xbf16>
    %c0_15 = arith.constant 0 : index
    %c0_16 = arith.constant 0 : index
    %c0_17 = arith.constant 0 : index
    %57 = vector.load %arg5[%c0_15, %c0_16, %c0_17] : memref<2x32x32xbf16, #tpu.memory_space<vmem>>, vector<1x32x32xbf16>
    %58 = vector.shape_cast %57 : vector<1x32x32xbf16> to vector<32x32xbf16>
    "tpu.trace_start"() <{level = 10 : i32, message = "bld,de->ble"}> : () -> ()
    %cst_18 = arith.constant dense<0.000000e+00> : vector<2x8x32xf32>
    %59 = tpu.matmul %56, %58, %cst_18 {dimension_numbers = #tpu.dot_dimension_numbers<[2], [0], [0, 1], [1], [0, 0, 0, 1, 1, 1], [], []>} : vector<2x8x32xbf16>, vector<32x32xbf16>, vector<2x8x32xf32> -> vector<2x8x32xf32>
    "tpu.trace_stop"() : () -> ()
    %c0_19 = arith.constant 0 : index
    %c0_20 = arith.constant 0 : index
    %c0_21 = arith.constant 0 : index
    %60 = vector.load %arg6[%c0_19, %c0_20, %c0_21] : memref<2x1x32xf32, #tpu.memory_space<vmem>>, vector<1x1x32xf32>
    %61 = vector.shape_cast %60 : vector<1x1x32xf32> to vector<1x32xf32>
    %62 = vector.shape_cast %61 : vector<1x32xf32> to vector<1x1x32xf32>
    %63 = vector.broadcast %62 : vector<1x1x32xf32> to vector<2x8x32xf32>
    %64 = arith.addf %59, %63 : vector<2x8x32xf32>
    %65 = arith.addf %0, %64 : vector<2x8x32xf32>
    %c0_22 = arith.constant 0 : index
    %c0_23 = arith.constant 0 : index
    %c0_24 = arith.constant 0 : index
    %66 = vector.load %arg11[%c0_22, %c0_23, %c0_24] : memref<2x1x32xf32, #tpu.memory_space<vmem>>, vector<1x1x32xf32>
    %67 = vector.shape_cast %66 : vector<1x1x32xf32> to vector<1x32xf32>
    %c0_25 = arith.constant 0 : index
    %c0_26 = arith.constant 0 : index
    %c0_27 = arith.constant 0 : index
    %68 = vector.load %arg12[%c0_25, %c0_26, %c0_27] : memref<2x1x32xf32, #tpu.memory_space<vmem>>, vector<1x1x32xf32>
    %69 = vector.shape_cast %68 : vector<1x1x32xf32> to vector<1x32xf32>
    %cst_28 = arith.constant dense<0.000000e+00> : vector<2x8xf32>
    %70 = vector.multi_reduction <add>, %65, %cst_28 [2] : vector<2x8x32xf32> to vector<2x8xf32>
    %71 = vector.shape_cast %70 : vector<2x8xf32> to vector<2x8x1xf32>
    %cst_29 = arith.constant 3.200000e+01 : f32
    %72 = vector.broadcast %cst_29 : f32 to vector<2x8x1xf32>
    %73 = arith.divf %71, %72 : vector<2x8x1xf32>
    %74 = vector.broadcast %73 : vector<2x8x1xf32> to vector<2x8x32xf32>
    %75 = arith.subf %65, %74 : vector<2x8x32xf32>
    %76 = arith.mulf %75, %75 : vector<2x8x32xf32>
    %cst_30 = arith.constant dense<0.000000e+00> : vector<2x8xf32>
    %77 = vector.multi_reduction <add>, %76, %cst_30 [2] : vector<2x8x32xf32> to vector<2x8xf32>
    %78 = vector.shape_cast %77 : vector<2x8xf32> to vector<2x8x1xf32>
    %cst_31 = arith.constant 3.200000e+01 : f32
    %79 = vector.broadcast %cst_31 : f32 to vector<2x8x1xf32>
    %80 = arith.divf %78, %79 : vector<2x8x1xf32>
    %81 = vector.broadcast %73 : vector<2x8x1xf32> to vector<2x8x32xf32>
    %82 = arith.subf %65, %81 : vector<2x8x32xf32>
    %cst_32 = arith.constant 9.99999974E-6 : f32
    %83 = vector.broadcast %cst_32 : f32 to vector<2x8x1xf32>
    %84 = arith.addf %80, %83 : vector<2x8x1xf32>
    %85 = math.rsqrt %84 : vector<2x8x1xf32>
    %86 = vector.broadcast %85 : vector<2x8x1xf32> to vector<2x8x32xf32>
    %87 = arith.mulf %82, %86 : vector<2x8x32xf32>
    %88 = vector.shape_cast %67 : vector<1x32xf32> to vector<1x1x32xf32>
    %89 = vector.broadcast %88 : vector<1x1x32xf32> to vector<2x8x32xf32>
    %90 = arith.mulf %87, %89 : vector<2x8x32xf32>
    %91 = vector.shape_cast %69 : vector<1x32xf32> to vector<1x1x32xf32>
    %92 = vector.broadcast %91 : vector<1x1x32xf32> to vector<2x8x32xf32>
    %93 = arith.addf %90, %92 : vector<2x8x32xf32>
    %94 = arith.truncf %93 : vector<2x8x32xf32> to vector<2x8x32xbf16>
    %c0_33 = arith.constant 0 : index
    %c0_34 = arith.constant 0 : index
    %c0_35 = arith.constant 0 : index
    %95 = vector.load %arg7[%c0_33, %c0_34, %c0_35] : memref<2x32x64xbf16, #tpu.memory_space<vmem>>, vector<1x32x64xbf16>
    %96 = vector.shape_cast %95 : vector<1x32x64xbf16> to vector<32x64xbf16>
    "tpu.trace_start"() <{level = 10 : i32, message = "bld,df->blf"}> : () -> ()
    %cst_36 = arith.constant dense<0.000000e+00> : vector<2x8x64xf32>
    %97 = tpu.matmul %94, %96, %cst_36 {dimension_numbers = #tpu.dot_dimension_numbers<[2], [0], [0, 1], [1], [0, 0, 0, 1, 1, 1], [], []>} : vector<2x8x32xbf16>, vector<32x64xbf16>, vector<2x8x64xf32> -> vector<2x8x64xf32>
    "tpu.trace_stop"() : () -> ()
    %c0_37 = arith.constant 0 : index
    %c0_38 = arith.constant 0 : index
    %c0_39 = arith.constant 0 : index
    %98 = vector.load %arg8[%c0_37, %c0_38, %c0_39] : memref<2x1x64xf32, #tpu.memory_space<vmem>>, vector<1x1x64xf32>
    %99 = vector.shape_cast %98 : vector<1x1x64xf32> to vector<1x64xf32>
    %100 = vector.shape_cast %99 : vector<1x64xf32> to vector<1x1x64xf32>
    %101 = vector.broadcast %100 : vector<1x1x64xf32> to vector<2x8x64xf32>
    %102 = arith.addf %97, %101 : vector<2x8x64xf32>
    %cst_40 = arith.constant 0.000000e+00 : f32
    %103 = vector.broadcast %cst_40 : f32 to vector<2x8x64xf32>
    %104 = arith.maximumf %102, %103 : vector<2x8x64xf32>
    %105 = arith.truncf %104 : vector<2x8x64xf32> to vector<2x8x64xbf16>
    %c0_41 = arith.constant 0 : index
    %c0_42 = arith.constant 0 : index
    %c0_43 = arith.constant 0 : index
    %106 = vector.load %arg9[%c0_41, %c0_42, %c0_43] : memref<2x64x32xbf16, #tpu.memory_space<vmem>>, vector<1x64x32xbf16>
    %107 = vector.shape_cast %106 : vector<1x64x32xbf16> to vector<64x32xbf16>
    "tpu.trace_start"() <{level = 10 : i32, message = "blf,fd->bld"}> : () -> ()
    %cst_44 = arith.constant dense<0.000000e+00> : vector<2x8x32xf32>
    %108 = tpu.matmul %105, %107, %cst_44 {dimension_numbers = #tpu.dot_dimension_numbers<[2], [0], [0, 1], [1], [0, 0, 0, 1, 1, 1], [], []>} : vector<2x8x64xbf16>, vector<64x32xbf16>, vector<2x8x32xf32> -> vector<2x8x32xf32>
    "tpu.trace_stop"() : () -> ()
    %c0_45 = arith.constant 0 : index
    %c0_46 = arith.constant 0 : index
    %c0_47 = arith.constant 0 : index
    %109 = vector.load %arg10[%c0_45, %c0_46, %c0_47] : memref<2x1x32xf32, #tpu.memory_space<vmem>>, vector<1x1x32xf32>
    %110 = vector.shape_cast %109 : vector<1x1x32xf32> to vector<1x32xf32>
    %111 = vector.shape_cast %110 : vector<1x32xf32> to vector<1x1x32xf32>
    %112 = vector.broadcast %111 : vector<1x1x32xf32> to vector<2x8x32xf32>
    %113 = arith.addf %108, %112 : vector<2x8x32xf32>
    %114 = arith.addf %93, %113 : vector<2x8x32xf32>
    %c0_48 = arith.constant 0 : index
    %c0_49 = arith.constant 0 : index
    %c0_50 = arith.constant 0 : index
    %115 = vector.load %arg13[%c0_48, %c0_49, %c0_50] : memref<2x1x32xf32, #tpu.memory_space<vmem>>, vector<1x1x32xf32>
    %116 = vector.shape_cast %115 : vector<1x1x32xf32> to vector<1x32xf32>
    %c0_51 = arith.constant 0 : index
    %c0_52 = arith.constant 0 : index
    %c0_53 = arith.constant 0 : index
    %117 = vector.load %arg14[%c0_51, %c0_52, %c0_53] : memref<2x1x32xf32, #tpu.memory_space<vmem>>, vector<1x1x32xf32>
    %118 = vector.shape_cast %117 : vector<1x1x32xf32> to vector<1x32xf32>
    %cst_54 = arith.constant dense<0.000000e+00> : vector<2x8xf32>
    %119 = vector.multi_reduction <add>, %114, %cst_54 [2] : vector<2x8x32xf32> to vector<2x8xf32>
    %120 = vector.shape_cast %119 : vector<2x8xf32> to vector<2x8x1xf32>
    %cst_55 = arith.constant 3.200000e+01 : f32
    %121 = vector.broadcast %cst_55 : f32 to vector<2x8x1xf32>
    %122 = arith.divf %120, %121 : vector<2x8x1xf32>
    %123 = vector.broadcast %122 : vector<2x8x1xf32> to vector<2x8x32xf32>
    %124 = arith.subf %114, %123 : vector<2x8x32xf32>
    %125 = arith.mulf %124, %124 : vector<2x8x32xf32>
    %cst_56 = arith.constant dense<0.000000e+00> : vector<2x8xf32>
    %126 = vector.multi_reduction <add>, %125, %cst_56 [2] : vector<2x8x32xf32> to vector<2x8xf32>
    %127 = vector.shape_cast %126 : vector<2x8xf32> to vector<2x8x1xf32>
    %cst_57 = arith.constant 3.200000e+01 : f32
    %128 = vector.broadcast %cst_57 : f32 to vector<2x8x1xf32>
    %129 = arith.divf %127, %128 : vector<2x8x1xf32>
    %130 = vector.broadcast %122 : vector<2x8x1xf32> to vector<2x8x32xf32>
    %131 = arith.subf %114, %130 : vector<2x8x32xf32>
    %cst_58 = arith.constant 9.99999974E-6 : f32
    %132 = vector.broadcast %cst_58 : f32 to vector<2x8x1xf32>
    %133 = arith.addf %129, %132 : vector<2x8x1xf32>
    %134 = math.rsqrt %133 : vector<2x8x1xf32>
    %135 = vector.broadcast %134 : vector<2x8x1xf32> to vector<2x8x32xf32>
    %136 = arith.mulf %131, %135 : vector<2x8x32xf32>
    %137 = vector.shape_cast %116 : vector<1x32xf32> to vector<1x1x32xf32>
    %138 = vector.broadcast %137 : vector<1x1x32xf32> to vector<2x8x32xf32>
    %139 = arith.mulf %136, %138 : vector<2x8x32xf32>
    %140 = vector.shape_cast %118 : vector<1x32xf32> to vector<1x1x32xf32>
    %141 = vector.broadcast %140 : vector<1x1x32xf32> to vector<2x8x32xf32>
    %142 = arith.addf %139, %141 : vector<2x8x32xf32>
    %143 = arith.truncf %142 : vector<2x8x32xf32> to vector<2x8x32xbf16>
    %c1 = arith.constant 1 : index
    %c0_59 = arith.constant 0 : index
    %c0_60 = arith.constant 0 : index
    %144 = vector.load %arg3[%c1, %c0_59, %c0_60] : memref<2x32x96xbf16, #tpu.memory_space<vmem>>, vector<1x32x96xbf16>
    %145 = vector.shape_cast %144 : vector<1x32x96xbf16> to vector<32x96xbf16>
    "tpu.trace_start"() <{level = 10 : i32, message = "bld,de->ble"}> : () -> ()
    %cst_61 = arith.constant dense<0.000000e+00> : vector<2x8x96xf32>
    %146 = tpu.matmul %143, %145, %cst_61 {dimension_numbers = #tpu.dot_dimension_numbers<[2], [0], [0, 1], [1], [0, 0, 0, 1, 1, 1], [], []>} : vector<2x8x32xbf16>, vector<32x96xbf16>, vector<2x8x96xf32> -> vector<2x8x96xf32>
    "tpu.trace_stop"() : () -> ()
    %c1_62 = arith.constant 1 : index
    %c0_63 = arith.constant 0 : index
    %c0_64 = arith.constant 0 : index
    %147 = vector.load %arg4[%c1_62, %c0_63, %c0_64] : memref<2x1x96xf32, #tpu.memory_space<vmem>>, vector<1x1x96xf32>
    %148 = vector.shape_cast %147 : vector<1x1x96xf32> to vector<1x96xf32>
    %149 = vector.shape_cast %148 : vector<1x96xf32> to vector<1x1x96xf32>
    %150 = vector.broadcast %149 : vector<1x1x96xf32> to vector<2x8x96xf32>
    %151 = arith.addf %146, %150 : vector<2x8x96xf32>
    %152 = vector.extract_strided_slice %151 {offsets = [0, 0, 0], sizes = [2, 8, 32], strides = [1, 1, 1]} : vector<2x8x96xf32> to vector<2x8x32xf32>
    %153 = vector.extract_strided_slice %151 {offsets = [0, 0, 32], sizes = [2, 8, 32], strides = [1, 1, 1]} : vector<2x8x96xf32> to vector<2x8x32xf32>
    %154 = vector.extract_strided_slice %151 {offsets = [0, 0, 64], sizes = [2, 8, 32], strides = [1, 1, 1]} : vector<2x8x96xf32> to vector<2x8x32xf32>
    %155 = vector.extract_strided_slice %152 {offsets = [0, 0, 0], sizes = [2, 8, 8], strides = [1, 1, 1]} : vector<2x8x32xf32> to vector<2x8x8xf32>
    %156 = vector.extract_strided_slice %152 {offsets = [0, 0, 8], sizes = [2, 8, 8], strides = [1, 1, 1]} : vector<2x8x32xf32> to vector<2x8x8xf32>
    %157 = vector.extract_strided_slice %152 {offsets = [0, 0, 16], sizes = [2, 8, 8], strides = [1, 1, 1]} : vector<2x8x32xf32> to vector<2x8x8xf32>
    %158 = vector.extract_strided_slice %152 {offsets = [0, 0, 24], sizes = [2, 8, 8], strides = [1, 1, 1]} : vector<2x8x32xf32> to vector<2x8x8xf32>
    %159 = tpu.concatenate %155, %156, %157, %158 in 0 : vector<2x8x8xf32>, vector<2x8x8xf32>, vector<2x8x8xf32>, vector<2x8x8xf32> -> vector<8x8x8xf32>
    %160 = vector.extract_strided_slice %153 {offsets = [0, 0, 0], sizes = [2, 8, 8], strides = [1, 1, 1]} : vector<2x8x32xf32> to vector<2x8x8xf32>
    %161 = vector.extract_strided_slice %153 {offsets = [0, 0, 8], sizes = [2, 8, 8], strides = [1, 1, 1]} : vector<2x8x32xf32> to vector<2x8x8xf32>
    %162 = vector.extract_strided_slice %153 {offsets = [0, 0, 16], sizes = [2, 8, 8], strides = [1, 1, 1]} : vector<2x8x32xf32> to vector<2x8x8xf32>
    %163 = vector.extract_strided_slice %153 {offsets = [0, 0, 24], sizes = [2, 8, 8], strides = [1, 1, 1]} : vector<2x8x32xf32> to vector<2x8x8xf32>
    %164 = tpu.concatenate %160, %161, %162, %163 in 0 : vector<2x8x8xf32>, vector<2x8x8xf32>, vector<2x8x8xf32>, vector<2x8x8xf32> -> vector<8x8x8xf32>
    %165 = vector.extract_strided_slice %154 {offsets = [0, 0, 0], sizes = [2, 8, 8], strides = [1, 1, 1]} : vector<2x8x32xf32> to vector<2x8x8xf32>
    %166 = vector.extract_strided_slice %154 {offsets = [0, 0, 8], sizes = [2, 8, 8], strides = [1, 1, 1]} : vector<2x8x32xf32> to vector<2x8x8xf32>
    %167 = vector.extract_strided_slice %154 {offsets = [0, 0, 16], sizes = [2, 8, 8], strides = [1, 1, 1]} : vector<2x8x32xf32> to vector<2x8x8xf32>
    %168 = vector.extract_strided_slice %154 {offsets = [0, 0, 24], sizes = [2, 8, 8], strides = [1, 1, 1]} : vector<2x8x32xf32> to vector<2x8x8xf32>
    %169 = tpu.concatenate %165, %166, %167, %168 in 0 : vector<2x8x8xf32>, vector<2x8x8xf32>, vector<2x8x8xf32>, vector<2x8x8xf32> -> vector<8x8x8xf32>
    %170 = arith.truncf %159 : vector<8x8x8xf32> to vector<8x8x8xbf16>
    %171 = arith.truncf %164 : vector<8x8x8xf32> to vector<8x8x8xbf16>
    "tpu.trace_start"() <{level = 10 : i32, message = "bqd,bkd->bqk"}> : () -> ()
    %cst_65 = arith.constant dense<0.000000e+00> : vector<8x8x8xf32>
    %172 = tpu.matmul %170, %171, %cst_65 {dimension_numbers = #tpu.dot_dimension_numbers<[2], [2], [1], [1], [0, 0, 0, 1, 1, 1], [0], [0]>} : vector<8x8x8xbf16>, vector<8x8x8xbf16>, vector<8x8x8xf32> -> vector<8x8x8xf32>
    "tpu.trace_stop"() : () -> ()
    %cst_66 = arith.constant 0.353553385 : f32
    %173 = vector.broadcast %cst_66 : f32 to vector<8x8x8xf32>
    %174 = arith.mulf %172, %173 : vector<8x8x8xf32>
    %175 = vector.shape_cast %2 : vector<8x8xf32> to vector<8x1x8xf32>
    %176 = vector.broadcast %175 : vector<8x1x8xf32> to vector<8x8x8xf32>
    %177 = arith.addf %174, %176 : vector<8x8x8xf32>
    %cst_67 = arith.constant dense<0xFF800000> : vector<8x8xf32>
    %178 = vector.multi_reduction <maximumf>, %177, %cst_67 [2] : vector<8x8x8xf32> to vector<8x8xf32>
    %179 = vector.shape_cast %178 : vector<8x8xf32> to vector<8x8x1xf32>
    %180 = vector.broadcast %179 : vector<8x8x1xf32> to vector<8x8x8xf32>
    %181 = arith.subf %177, %180 : vector<8x8x8xf32>
    %182 = math.exp %181 : vector<8x8x8xf32>
    %cst_68 = arith.constant dense<0.000000e+00> : vector<8x8xf32>
    %183 = vector.multi_reduction <add>, %182, %cst_68 [2] : vector<8x8x8xf32> to vector<8x8xf32>
    %184 = vector.shape_cast %183 : vector<8x8xf32> to vector<8x8x1xf32>
    %185 = tpu.reciprocal %184 {approx = true} : vector<8x8x1xf32> -> vector<8x8x1xf32>
    %186 = vector.broadcast %185 : vector<8x8x1xf32> to vector<8x8x8xf32>
    %187 = arith.mulf %182, %186 : vector<8x8x8xf32>
    %188 = arith.truncf %187 : vector<8x8x8xf32> to vector<8x8x8xbf16>
    %189 = arith.truncf %169 : vector<8x8x8xf32> to vector<8x8x8xbf16>
    "tpu.trace_start"() <{level = 10 : i32, message = "bqk,bkd->bqd"}> : () -> ()
    %cst_69 = arith.constant dense<0.000000e+00> : vector<8x8x8xf32>
    %190 = tpu.matmul %188, %189, %cst_69 {dimension_numbers = #tpu.dot_dimension_numbers<[2], [1], [1], [2], [0, 0, 0, 1, 1, 2], [0], [0]>} : vector<8x8x8xbf16>, vector<8x8x8xbf16>, vector<8x8x8xf32> -> vector<8x8x8xf32>
    "tpu.trace_stop"() : () -> ()
    %191 = vector.extract_strided_slice %190 {offsets = [0, 0, 0], sizes = [2, 8, 8], strides = [1, 1, 1]} : vector<8x8x8xf32> to vector<2x8x8xf32>
    %192 = vector.extract_strided_slice %190 {offsets = [2, 0, 0], sizes = [2, 8, 8], strides = [1, 1, 1]} : vector<8x8x8xf32> to vector<2x8x8xf32>
    %193 = vector.extract_strided_slice %190 {offsets = [4, 0, 0], sizes = [2, 8, 8], strides = [1, 1, 1]} : vector<8x8x8xf32> to vector<2x8x8xf32>
    %194 = vector.extract_strided_slice %190 {offsets = [6, 0, 0], sizes = [2, 8, 8], strides = [1, 1, 1]} : vector<8x8x8xf32> to vector<2x8x8xf32>
    %195 = tpu.concatenate %191, %192, %193, %194 in 2 : vector<2x8x8xf32>, vector<2x8x8xf32>, vector<2x8x8xf32>, vector<2x8x8xf32> -> vector<2x8x32xf32>
    %196 = arith.truncf %195 : vector<2x8x32xf32> to vector<2x8x32xbf16>
    %c1_70 = arith.constant 1 : index
    %c0_71 = arith.constant 0 : index
    %c0_72 = arith.constant 0 : index
    %197 = vector.load %arg5[%c1_70, %c0_71, %c0_72] : memref<2x32x32xbf16, #tpu.memory_space<vmem>>, vector<1x32x32xbf16>
    %198 = vector.shape_cast %197 : vector<1x32x32xbf16> to vector<32x32xbf16>
    "tpu.trace_start"() <{level = 10 : i32, message = "bld,de->ble"}> : () -> ()
    %cst_73 = arith.constant dense<0.000000e+00> : vector<2x8x32xf32>
    %199 = tpu.matmul %196, %198, %cst_73 {dimension_numbers = #tpu.dot_dimension_numbers<[2], [0], [0, 1], [1], [0, 0, 0, 1, 1, 1], [], []>} : vector<2x8x32xbf16>, vector<32x32xbf16>, vector<2x8x32xf32> -> vector<2x8x32xf32>
    "tpu.trace_stop"() : () -> ()
    %c1_74 = arith.constant 1 : index
    %c0_75 = arith.constant 0 : index
    %c0_76 = arith.constant 0 : index
    %200 = vector.load %arg6[%c1_74, %c0_75, %c0_76] : memref<2x1x32xf32, #tpu.memory_space<vmem>>, vector<1x1x32xf32>
    %201 = vector.shape_cast %200 : vector<1x1x32xf32> to vector<1x32xf32>
    %202 = vector.shape_cast %201 : vector<1x32xf32> to vector<1x1x32xf32>
    %203 = vector.broadcast %202 : vector<1x1x32xf32> to vector<2x8x32xf32>
    %204 = arith.addf %199, %203 : vector<2x8x32xf32>
    %205 = arith.addf %142, %204 : vector<2x8x32xf32>
    %c1_77 = arith.constant 1 : index
    %c0_78 = arith.constant 0 : index
    %c0_79 = arith.constant 0 : index
    %206 = vector.load %arg11[%c1_77, %c0_78, %c0_79] : memref<2x1x32xf32, #tpu.memory_space<vmem>>, vector<1x1x32xf32>
    %207 = vector.shape_cast %206 : vector<1x1x32xf32> to vector<1x32xf32>
    %c1_80 = arith.constant 1 : index
    %c0_81 = arith.constant 0 : index
    %c0_82 = arith.constant 0 : index
    %208 = vector.load %arg12[%c1_80, %c0_81, %c0_82] : memref<2x1x32xf32, #tpu.memory_space<vmem>>, vector<1x1x32xf32>
    %209 = vector.shape_cast %208 : vector<1x1x32xf32> to vector<1x32xf32>
    %cst_83 = arith.constant dense<0.000000e+00> : vector<2x8xf32>
    %210 = vector.multi_reduction <add>, %205, %cst_83 [2] : vector<2x8x32xf32> to vector<2x8xf32>
    %211 = vector.shape_cast %210 : vector<2x8xf32> to vector<2x8x1xf32>
    %cst_84 = arith.constant 3.200000e+01 : f32
    %212 = vector.broadcast %cst_84 : f32 to vector<2x8x1xf32>
    %213 = arith.divf %211, %212 : vector<2x8x1xf32>
    %214 = vector.broadcast %213 : vector<2x8x1xf32> to vector<2x8x32xf32>
    %215 = arith.subf %205, %214 : vector<2x8x32xf32>
    %216 = arith.mulf %215, %215 : vector<2x8x32xf32>
    %cst_85 = arith.constant dense<0.000000e+00> : vector<2x8xf32>
    %217 = vector.multi_reduction <add>, %216, %cst_85 [2] : vector<2x8x32xf32> to vector<2x8xf32>
    %218 = vector.shape_cast %217 : vector<2x8xf32> to vector<2x8x1xf32>
    %cst_86 = arith.constant 3.200000e+01 : f32
    %219 = vector.broadcast %cst_86 : f32 to vector<2x8x1xf32>
    %220 = arith.divf %218, %219 : vector<2x8x1xf32>
    %221 = vector.broadcast %213 : vector<2x8x1xf32> to vector<2x8x32xf32>
    %222 = arith.subf %205, %221 : vector<2x8x32xf32>
    %cst_87 = arith.constant 9.99999974E-6 : f32
    %223 = vector.broadcast %cst_87 : f32 to vector<2x8x1xf32>
    %224 = arith.addf %220, %223 : vector<2x8x1xf32>
    %225 = math.rsqrt %224 : vector<2x8x1xf32>
    %226 = vector.broadcast %225 : vector<2x8x1xf32> to vector<2x8x32xf32>
    %227 = arith.mulf %222, %226 : vector<2x8x32xf32>
    %228 = vector.shape_cast %207 : vector<1x32xf32> to vector<1x1x32xf32>
    %229 = vector.broadcast %228 : vector<1x1x32xf32> to vector<2x8x32xf32>
    %230 = arith.mulf %227, %229 : vector<2x8x32xf32>
    %231 = vector.shape_cast %209 : vector<1x32xf32> to vector<1x1x32xf32>
    %232 = vector.broadcast %231 : vector<1x1x32xf32> to vector<2x8x32xf32>
    %233 = arith.addf %230, %232 : vector<2x8x32xf32>
    %234 = arith.truncf %233 : vector<2x8x32xf32> to vector<2x8x32xbf16>
    %c1_88 = arith.constant 1 : index
    %c0_89 = arith.constant 0 : index
    %c0_90 = arith.constant 0 : index
    %235 = vector.load %arg7[%c1_88, %c0_89, %c0_90] : memref<2x32x64xbf16, #tpu.memory_space<vmem>>, vector<1x32x64xbf16>
    %236 = vector.shape_cast %235 : vector<1x32x64xbf16> to vector<32x64xbf16>
    "tpu.trace_start"() <{level = 10 : i32, message = "bld,df->blf"}> : () -> ()
    %cst_91 = arith.constant dense<0.000000e+00> : vector<2x8x64xf32>
    %237 = tpu.matmul %234, %236, %cst_91 {dimension_numbers = #tpu.dot_dimension_numbers<[2], [0], [0, 1], [1], [0, 0, 0, 1, 1, 1], [], []>} : vector<2x8x32xbf16>, vector<32x64xbf16>, vector<2x8x64xf32> -> vector<2x8x64xf32>
    "tpu.trace_stop"() : () -> ()
    %c1_92 = arith.constant 1 : index
    %c0_93 = arith.constant 0 : index
    %c0_94 = arith.constant 0 : index
    %238 = vector.load %arg8[%c1_92, %c0_93, %c0_94] : memref<2x1x64xf32, #tpu.memory_space<vmem>>, vector<1x1x64xf32>
    %239 = vector.shape_cast %238 : vector<1x1x64xf32> to vector<1x64xf32>
    %240 = vector.shape_cast %239 : vector<1x64xf32> to vector<1x1x64xf32>
    %241 = vector.broadcast %240 : vector<1x1x64xf32> to vector<2x8x64xf32>
    %242 = arith.addf %237, %241 : vector<2x8x64xf32>
    %cst_95 = arith.constant 0.000000e+00 : f32
    %243 = vector.broadcast %cst_95 : f32 to vector<2x8x64xf32>
    %244 = arith.maximumf %242, %243 : vector<2x8x64xf32>
    %245 = arith.truncf %244 : vector<2x8x64xf32> to vector<2x8x64xbf16>
    %c1_96 = arith.constant 1 : index
    %c0_97 = arith.constant 0 : index
    %c0_98 = arith.constant 0 : index
    %246 = vector.load %arg9[%c1_96, %c0_97, %c0_98] : memref<2x64x32xbf16, #tpu.memory_space<vmem>>, vector<1x64x32xbf16>
    %247 = vector.shape_cast %246 : vector<1x64x32xbf16> to vector<64x32xbf16>
    "tpu.trace_start"() <{level = 10 : i32, message = "blf,fd->bld"}> : () -> ()
    %cst_99 = arith.constant dense<0.000000e+00> : vector<2x8x32xf32>
    %248 = tpu.matmul %245, %247, %cst_99 {dimension_numbers = #tpu.dot_dimension_numbers<[2], [0], [0, 1], [1], [0, 0, 0, 1, 1, 1], [], []>} : vector<2x8x64xbf16>, vector<64x32xbf16>, vector<2x8x32xf32> -> vector<2x8x32xf32>
    "tpu.trace_stop"() : () -> ()
    %c1_100 = arith.constant 1 : index
    %c0_101 = arith.constant 0 : index
    %c0_102 = arith.constant 0 : index
    %249 = vector.load %arg10[%c1_100, %c0_101, %c0_102] : memref<2x1x32xf32, #tpu.memory_space<vmem>>, vector<1x1x32xf32>
    %250 = vector.shape_cast %249 : vector<1x1x32xf32> to vector<1x32xf32>
    %251 = vector.shape_cast %250 : vector<1x32xf32> to vector<1x1x32xf32>
    %252 = vector.broadcast %251 : vector<1x1x32xf32> to vector<2x8x32xf32>
    %253 = arith.addf %248, %252 : vector<2x8x32xf32>
    %254 = arith.addf %233, %253 : vector<2x8x32xf32>
    %c1_103 = arith.constant 1 : index
    %c0_104 = arith.constant 0 : index
    %c0_105 = arith.constant 0 : index
    %255 = vector.load %arg13[%c1_103, %c0_104, %c0_105] : memref<2x1x32xf32, #tpu.memory_space<vmem>>, vector<1x1x32xf32>
    %256 = vector.shape_cast %255 : vector<1x1x32xf32> to vector<1x32xf32>
    %c1_106 = arith.constant 1 : index
    %c0_107 = arith.constant 0 : index
    %c0_108 = arith.constant 0 : index
    %257 = vector.load %arg14[%c1_106, %c0_107, %c0_108] : memref<2x1x32xf32, #tpu.memory_space<vmem>>, vector<1x1x32xf32>
    %258 = vector.shape_cast %257 : vector<1x1x32xf32> to vector<1x32xf32>
    %cst_109 = arith.constant dense<0.000000e+00> : vector<2x8xf32>
    %259 = vector.multi_reduction <add>, %254, %cst_109 [2] : vector<2x8x32xf32> to vector<2x8xf32>
    %260 = vector.shape_cast %259 : vector<2x8xf32> to vector<2x8x1xf32>
    %cst_110 = arith.constant 3.200000e+01 : f32
    %261 = vector.broadcast %cst_110 : f32 to vector<2x8x1xf32>
    %262 = arith.divf %260, %261 : vector<2x8x1xf32>
    %263 = vector.broadcast %262 : vector<2x8x1xf32> to vector<2x8x32xf32>
    %264 = arith.subf %254, %263 : vector<2x8x32xf32>
    %265 = arith.mulf %264, %264 : vector<2x8x32xf32>
    %cst_111 = arith.constant dense<0.000000e+00> : vector<2x8xf32>
    %266 = vector.multi_reduction <add>, %265, %cst_111 [2] : vector<2x8x32xf32> to vector<2x8xf32>
    %267 = vector.shape_cast %266 : vector<2x8xf32> to vector<2x8x1xf32>
    %cst_112 = arith.constant 3.200000e+01 : f32
    %268 = vector.broadcast %cst_112 : f32 to vector<2x8x1xf32>
    %269 = arith.divf %267, %268 : vector<2x8x1xf32>
    %270 = vector.broadcast %262 : vector<2x8x1xf32> to vector<2x8x32xf32>
    %271 = arith.subf %254, %270 : vector<2x8x32xf32>
    %cst_113 = arith.constant 9.99999974E-6 : f32
    %272 = vector.broadcast %cst_113 : f32 to vector<2x8x1xf32>
    %273 = arith.addf %269, %272 : vector<2x8x1xf32>
    %274 = math.rsqrt %273 : vector<2x8x1xf32>
    %275 = vector.broadcast %274 : vector<2x8x1xf32> to vector<2x8x32xf32>
    %276 = arith.mulf %271, %275 : vector<2x8x32xf32>
    %277 = vector.shape_cast %256 : vector<1x32xf32> to vector<1x1x32xf32>
    %278 = vector.broadcast %277 : vector<1x1x32xf32> to vector<2x8x32xf32>
    %279 = arith.mulf %276, %278 : vector<2x8x32xf32>
    %280 = vector.shape_cast %258 : vector<1x32xf32> to vector<1x1x32xf32>
    %281 = vector.broadcast %280 : vector<1x1x32xf32> to vector<2x8x32xf32>
    %282 = arith.addf %279, %281 : vector<2x8x32xf32>
    %c0_114 = arith.constant 0 : index
    %c0_115 = arith.constant 0 : index
    %283 = vector.load %arg15[%c0_114, %c0_115] : memref<1x32xf32, #tpu.memory_space<vmem>>, vector<1x32xf32>
    %c0_116 = arith.constant 0 : index
    %c0_117 = arith.constant 0 : index
    %284 = vector.load %arg16[%c0_116, %c0_117] : memref<1x32xf32, #tpu.memory_space<vmem>>, vector<1x32xf32>
    %cst_118 = arith.constant dense<0.000000e+00> : vector<2x8xf32>
    %285 = vector.multi_reduction <add>, %282, %cst_118 [2] : vector<2x8x32xf32> to vector<2x8xf32>
    %286 = vector.shape_cast %285 : vector<2x8xf32> to vector<2x8x1xf32>
    %cst_119 = arith.constant 3.200000e+01 : f32
    %287 = vector.broadcast %cst_119 : f32 to vector<2x8x1xf32>
    %288 = arith.divf %286, %287 : vector<2x8x1xf32>
    %289 = vector.broadcast %288 : vector<2x8x1xf32> to vector<2x8x32xf32>
    %290 = arith.subf %282, %289 : vector<2x8x32xf32>
    %291 = arith.mulf %290, %290 : vector<2x8x32xf32>
    %cst_120 = arith.constant dense<0.000000e+00> : vector<2x8xf32>
    %292 = vector.multi_reduction <add>, %291, %cst_120 [2] : vector<2x8x32xf32> to vector<2x8xf32>
    %293 = vector.shape_cast %292 : vector<2x8xf32> to vector<2x8x1xf32>
    %cst_121 = arith.constant 3.200000e+01 : f32
    %294 = vector.broadcast %cst_121 : f32 to vector<2x8x1xf32>
    %295 = arith.divf %293, %294 : vector<2x8x1xf32>
    %296 = vector.broadcast %288 : vector<2x8x1xf32> to vector<2x8x32xf32>
    %297 = arith.subf %282, %296 : vector<2x8x32xf32>
    %cst_122 = arith.constant 9.99999974E-6 : f32
    %298 = vector.broadcast %cst_122 : f32 to vector<2x8x1xf32>
    %299 = arith.addf %295, %298 : vector<2x8x1xf32>
    %300 = math.rsqrt %299 : vector<2x8x1xf32>
    %301 = vector.broadcast %300 : vector<2x8x1xf32> to vector<2x8x32xf32>
    %302 = arith.mulf %297, %301 : vector<2x8x32xf32>
    %303 = vector.shape_cast %283 : vector<1x32xf32> to vector<1x1x32xf32>
    %304 = vector.broadcast %303 : vector<1x1x32xf32> to vector<2x8x32xf32>
    %305 = arith.mulf %302, %304 : vector<2x8x32xf32>
    %306 = vector.shape_cast %284 : vector<1x32xf32> to vector<1x1x32xf32>
    %307 = vector.broadcast %306 : vector<1x1x32xf32> to vector<2x8x32xf32>
    %308 = arith.addf %305, %307 : vector<2x8x32xf32>
    %309 = vector.extract_strided_slice %308 {offsets = [0, 7, 0], sizes = [2, 1, 32], strides = [1, 1, 1]} : vector<2x8x32xf32> to vector<2x1x32xf32>
    %310 = vector.shape_cast %309 : vector<2x1x32xf32> to vector<2x32xf32>
    %311 = arith.truncf %310 : vector<2x32xf32> to vector<2x32xbf16>
    %c0_123 = arith.constant 0 : index
    %c0_124 = arith.constant 0 : index
    %312 = vector.load %arg17[%c0_123, %c0_124] : memref<32x128xbf16, #tpu.memory_space<vmem>>, vector<32x128xbf16>
    "tpu.trace_start"() <{level = 10 : i32, message = "bd,dv->bv"}> : () -> ()
    %cst_125 = arith.constant dense<0.000000e+00> : vector<2x128xf32>
    %313 = tpu.matmul %311, %312, %cst_125 {dimension_numbers = #tpu.dot_dimension_numbers<[1], [0], [0], [1], [0, 0, 1, 1], [], []>} : vector<2x32xbf16>, vector<32x128xbf16>, vector<2x128xf32> -> vector<2x128xf32>
    "tpu.trace_stop"() : () -> ()
    %c0_126 = arith.constant 0 : index
    %c0_127 = arith.constant 0 : index
    %314 = vector.load %arg18[%c0_126, %c0_127] : memref<2x128xf32, #tpu.memory_space<vmem>>, vector<2x128xf32>
    tpu.vector_store %arg18[%c0_126, %c0_127], %313 {strides = array<i32>} : memref<2x128xf32, #tpu.memory_space<vmem>>, vector<2x128xf32>,
    return
  }
  func.func @transform_0(%arg0: i32) -> (i32, i32, i32) {
    %c0_i32 = arith.constant 0 : i32
    %c0_i32_0 = arith.constant 0 : i32
    %c0_i32_1 = arith.constant 0 : i32
    return %arg0, %c0_i32, %c0_i32_0 : i32, i32, i32
  }
  func.func @transform_1(%arg0: i32) -> (i32, i32) {
    %c0_i32 = arith.constant 0 : i32
    %c0_i32_0 = arith.constant 0 : i32
    return %arg0, %c0_i32 : i32, i32
  }
  func.func @transform_2(%arg0: i32) -> (i32, i32, i32) {
    %c0_i32 = arith.constant 0 : i32
    %c0_i32_0 = arith.constant 0 : i32
    %c0_i32_1 = arith.constant 0 : i32
    %c0_i32_2 = arith.constant 0 : i32
    return %c0_i32, %c0_i32_0, %c0_i32_1 : i32, i32, i32
  }
  func.func @transform_3(%arg0: i32) -> (i32, i32, i32) {
    %c0_i32 = arith.constant 0 : i32
    %c0_i32_0 = arith.constant 0 : i32
    %c0_i32_1 = arith.constant 0 : i32
    %c0_i32_2 = arith.constant 0 : i32
    return %c0_i32, %c0_i32_0, %c0_i32_1 : i32, i32, i32
  }
  func.func @transform_4(%arg0: i32) -> (i32, i32, i32) {
    %c0_i32 = arith.constant 0 : i32
    %c0_i32_0 = arith.constant 0 : i32
    %c0_i32_1 = arith.constant 0 : i32
    %c0_i32_2 = arith.constant 0 : i32
    return %c0_i32, %c0_i32_0, %c0_i32_1 : i32, i32, i32
  }
  func.func @transform_5(%arg0: i32) -> (i32, i32, i32) {
    %c0_i32 = arith.constant 0 : i32
    %c0_i32_0 = arith.constant 0 : i32
    %c0_i32_1 = arith.constant 0 : i32
    %c0_i32_2 = arith.constant 0 : i32
    return %c0_i32, %c0_i32_0, %c0_i32_1 : i32, i32, i32
  }
  func.func @transform_6(%arg0: i32) -> (i32, i32, i32) {
    %c0_i32 = arith.constant 0 : i32
    %c0_i32_0 = arith.constant 0 : i32
    %c0_i32_1 = arith.constant 0 : i32
    %c0_i32_2 = arith.constant 0 : i32
    return %c0_i32, %c0_i32_0, %c0_i32_1 : i32, i32, i32
  }
  func.func @transform_7(%arg0: i32) -> (i32, i32, i32) {
    %c0_i32 = arith.constant 0 : i32
    %c0_i32_0 = arith.constant 0 : i32
    %c0_i32_1 = arith.constant 0 : i32
    %c0_i32_2 = arith.constant 0 : i32
    return %c0_i32, %c0_i32_0, %c0_i32_1 : i32, i32, i32
  }
  func.func @transform_8(%arg0: i32) -> (i32, i32, i32) {
    %c0_i32 = arith.constant 0 : i32
    %c0_i32_0 = arith.constant 0 : i32
    %c0_i32_1 = arith.constant 0 : i32
    %c0_i32_2 = arith.constant 0 : i32
    return %c0_i32, %c0_i32_0, %c0_i32_1 : i32, i32, i32
  }
  func.func @transform_9(%arg0: i32) -> (i32, i32, i32) {
    %c0_i32 = arith.constant 0 : i32
    %c0_i32_0 = arith.constant 0 : i32
    %c0_i32_1 = arith.constant 0 : i32
    %c0_i32_2 = arith.constant 0 : i32
    return %c0_i32, %c0_i32_0, %c0_i32_1 : i32, i32, i32
  }
  func.func @transform_10(%arg0: i32) -> (i32, i32, i32) {
    %c0_i32 = arith.constant 0 : i32
    %c0_i32_0 = arith.constant 0 : i32
    %c0_i32_1 = arith.constant 0 : i32
    %c0_i32_2 = arith.constant 0 : i32
    return %c0_i32, %c0_i32_0, %c0_i32_1 : i32, i32, i32
  }
  func.func @transform_11(%arg0: i32) -> (i32, i32, i32) {
    %c0_i32 = arith.constant 0 : i32
    %c0_i32_0 = arith.constant 0 : i32
    %c0_i32_1 = arith.constant 0 : i32
    %c0_i32_2 = arith.constant 0 : i32
    return %c0_i32, %c0_i32_0, %c0_i32_1 : i32, i32, i32
  }
  func.func @transform_12(%arg0: i32) -> (i32, i32, i32) {
    %c0_i32 = arith.constant 0 : i32
    %c0_i32_0 = arith.constant 0 : i32
    %c0_i32_1 = arith.constant 0 : i32
    %c0_i32_2 = arith.constant 0 : i32
    return %c0_i32, %c0_i32_0, %c0_i32_1 : i32, i32, i32
  }
  func.func @transform_13(%arg0: i32) -> (i32, i32, i32) {
    %c0_i32 = arith.constant 0 : i32
    %c0_i32_0 = arith.constant 0 : i32
    %c0_i32_1 = arith.constant 0 : i32
    %c0_i32_2 = arith.constant 0 : i32
    return %c0_i32, %c0_i32_0, %c0_i32_1 : i32, i32, i32
  }
  func.func @transform_14(%arg0: i32) -> (i32, i32) {
    %c0_i32 = arith.constant 0 : i32
    %c0_i32_0 = arith.constant 0 : i32
    %c0_i32_1 = arith.constant 0 : i32
    return %c0_i32, %c0_i32_0 : i32, i32
  }
  func.func @transform_15(%arg0: i32) -> (i32, i32) {
    %c0_i32 = arith.constant 0 : i32
    %c0_i32_0 = arith.constant 0 : i32
    %c0_i32_1 = arith.constant 0 : i32
    return %c0_i32, %c0_i32_0 : i32, i32
  }
  func.func @transform_16(%arg0: i32) -> (i32, i32) {
    %c0_i32 = arith.constant 0 : i32
    %c0_i32_0 = arith.constant 0 : i32
    %c0_i32_1 = arith.constant 0 : i32
    return %c0_i32, %c0_i32_0 : i32, i32
  }
  func.func @transform_17(%arg0: i32) -> (i32, i32) {
    %c0_i32 = arith.constant 0 : i32
    %c0_i32_0 = arith.constant 0 : i32
    return %arg0, %c0_i32 : i32, i32
  }
}

</mosaic_0001>

<llo_original>
// kernel: sasrec_forward.1
$region0: #{sasrec_forward.1}
  #allocation0 [shape = 'u32[]', space=smem, size = 0x4, offset = 0x4, fixed_abs, tag = 'smem constant byte address 0x4 - core index']
  #allocation1 [shape = 'u32[144,128]{1,0:T(1,128)}', space=vmem, size = 0x12000, scoped, tag = 'internal scratch']
  %s0 = inlined_call_operand.vmem [shape: f32[2,8,32], index: 0, kind: input, shape index: {}]
  %s1 = inlined_call_operand.vmem [shape: f32[2,8], index: 1, kind: input, shape index: {}]
  %s2 = inlined_call_operand.vmem [shape: bf16[2,32,96], index: 2, kind: input, shape index: {}]
  %s3 = inlined_call_operand.vmem [shape: f32[2,1,96], index: 3, kind: input, shape index: {}]
  %s4 = inlined_call_operand.vmem [shape: bf16[2,32,32], index: 4, kind: input, shape index: {}]
  %s5 = inlined_call_operand.vmem [shape: f32[2,1,32], index: 5, kind: input, shape index: {}]
  %s6 = inlined_call_operand.vmem [shape: bf16[2,32,64], index: 6, kind: input, shape index: {}]
  %s7 = inlined_call_operand.vmem [shape: f32[2,1,64], index: 7, kind: input, shape index: {}]
  %s8 = inlined_call_operand.vmem [shape: bf16[2,64,32], index: 8, kind: input, shape index: {}]
  %s9 = inlined_call_operand.vmem [shape: f32[2,1,32], index: 9, kind: input, shape index: {}]
  %s10 = inlined_call_operand.vmem [shape: f32[2,1,32], index: 10, kind: input, shape index: {}]
  %s11 = inlined_call_operand.vmem [shape: f32[2,1,32], index: 11, kind: input, shape index: {}]
  %s12 = inlined_call_operand.vmem [shape: f32[2,1,32], index: 12, kind: input, shape index: {}]
  %s13 = inlined_call_operand.vmem [shape: f32[2,1,32], index: 13, kind: input, shape index: {}]
  %s14 = inlined_call_operand.vmem [shape: f32[1,32], index: 14, kind: input, shape index: {}]
  %s15 = inlined_call_operand.vmem [shape: f32[1,32], index: 15, kind: input, shape index: {}]
  %s16 = inlined_call_operand.vmem [shape: bf16[32,128], index: 16, kind: input, shape index: {}]
  %s17 = inlined_call_operand.hbm [shape: f32[2,128], index: 17, kind: output, shape index: {}]
  %s18 = sld [smem:[#allocation0]]
  $region78: #{sasrec_forward.1} parent=0
    _
  %s20 = ssub.s32 1, %s18
  %s21 = scalar_select 0, %s20, %s18
  $region1: #{sasrec_forward.1} parent=0
    #allocation2 [shape = 'u8[1024]{0}', space=vmem, size = 0x400, scoped, tag = 'output window, operand 0, single buffered']
    #allocation3 [shape = 's32[1]{0}', space=sflag, size = 0x4, scoped, tag = 'scoped memory for sasrec_forward.1']
    %22 = vsyncpa [#allocation3], 0
    // Predicated region
    $region2: #{sasrec_forward.1} parent=1 // pred_check
      _
    $region3: #{sasrec_forward.1} parent=1 // pred_check_branch
      %24 = sbr.rel (0) target = $region5
    $region4: #{sasrec_forward.1} parent=1 // pred_region
      _
    $region5: #{sasrec_forward.1} parent=1 // pred_fallthru
      _
    // Predicated region
    $region6: #{sasrec_forward.1} parent=1 // pred_check
      _
    $region7: #{sasrec_forward.1} parent=1 // pred_check_branch
      %26 = sbr.rel (0) target = $region9
    $region8: #{sasrec_forward.1} parent=1 // pred_region
      _
    $region9: #{sasrec_forward.1} parent=1 // pred_fallthru
      _
    // Predicated region
    $region10: #{sasrec_forward.1} parent=1 // pred_check
      _
    $region11: #{sasrec_forward.1} parent=1 // pred_check_branch
      %28 = sbr.rel (0) target = $region13
    $region12: #{sasrec_forward.1} parent=1 // pred_region
      _
    $region13: #{sasrec_forward.1} parent=1 // pred_fallthru
      _
    // Predicated region
    $region14: #{sasrec_forward.1} parent=1 // pred_check
      _
    $region15: #{sasrec_forward.1} parent=1 // pred_check_branch
      %30 = sbr.rel (0) target = $region17
    $region16: #{sasrec_forward.1} parent=1 // pred_region
      _
    $region17: #{sasrec_forward.1} parent=1 // pred_fallthru
      _
    // Predicated region
    $region18: #{sasrec_forward.1} parent=1 // pred_check
      _
    $region19: #{sasrec_forward.1} parent=1 // pred_check_branch
      %32 = sbr.rel (0) target = $region21
    $region20: #{sasrec_forward.1} parent=1 // pred_region
      _
    $region21: #{sasrec_forward.1} parent=1 // pred_fallthru
      _
    // Predicated region
    $region22: #{sasrec_forward.1} parent=1 // pred_check
      _
    $region23: #{sasrec_forward.1} parent=1 // pred_check_branch
      %34 = sbr.rel (0) target = $region25
    $region24: #{sasrec_forward.1} parent=1 // pred_region
      _
    $region25: #{sasrec_forward.1} parent=1 // pred_fallthru
      _
    // Predicated region
    $region26: #{sasrec_forward.1} parent=1 // pred_check
      _
    $region27: #{sasrec_forward.1} parent=1 // pred_check_branch
      %36 = sbr.rel (0) target = $region29
    $region28: #{sasrec_forward.1} parent=1 // pred_region
      _
    $region29: #{sasrec_forward.1} parent=1 // pred_fallthru
      _
    // Predicated region
    $region30: #{sasrec_forward.1} parent=1 // pred_check
      _
    $region31: #{sasrec_forward.1} parent=1 // pred_check_branch
      %38 = sbr.rel (0) target = $region33
    $region32: #{sasrec_forward.1} parent=1 // pred_region
      _
    $region33: #{sasrec_forward.1} parent=1 // pred_fallthru
      _
    // Predicated region
    $region34: #{sasrec_forward.1} parent=1 // pred_check
      _
    $region35: #{sasrec_forward.1} parent=1 // pred_check_branch
      %40 = sbr.rel (0) target = $region37
    $region36: #{sasrec_forward.1} parent=1 // pred_region
      _
    $region37: #{sasrec_forward.1} parent=1 // pred_fallthru
      _
    // Predicated region
    $region38: #{sasrec_forward.1} parent=1 // pred_check
      _
    $region39: #{sasrec_forward.1} parent=1 // pred_check_branch
      %42 = sbr.rel (0) target = $region41
    $region40: #{sasrec_forward.1} parent=1 // pred_region
      _
    $region41: #{sasrec_forward.1} parent=1 // pred_fallthru
      _
    // Predicated region
    $region42: #{sasrec_forward.1} parent=1 // pred_check
      _
    $region43: #{sasrec_forward.1} parent=1 // pred_check_branch
      %44 = sbr.rel (0) target = $region45
    $region44: #{sasrec_forward.1} parent=1 // pred_region
      _
    $region45: #{sasrec_forward.1} parent=1 // pred_fallthru
      _
    // Predicated region
    $region46: #{sasrec_forward.1} parent=1 // pred_check
      _
    $region47: #{sasrec_forward.1} parent=1 // pred_check_branch
      %46 = sbr.rel (0) target = $region49
    $region48: #{sasrec_forward.1} parent=1 // pred_region
      _
    $region49: #{sasrec_forward.1} parent=1 // pred_fallthru
      _
    // Predicated region
    $region50: #{sasrec_forward.1} parent=1 // pred_check
      _
    $region51: #{sasrec_forward.1} parent=1 // pred_check_branch
      %48 = sbr.rel (0) target = $region53
    $region52: #{sasrec_forward.1} parent=1 // pred_region
      _
    $region53: #{sasrec_forward.1} parent=1 // pred_fallthru
      _
    // Predicated region
    $region54: #{sasrec_forward.1} parent=1 // pred_check
      _
    $region55: #{sasrec_forward.1} parent=1 // pred_check_branch
      %50 = sbr.rel (0) target = $region57
    $region56: #{sasrec_forward.1} parent=1 // pred_region
      _
    $region57: #{sasrec_forward.1} parent=1 // pred_fallthru
      _
    // Predicated region
    $region58: #{sasrec_forward.1} parent=1 // pred_check
      _
    $region59: #{sasrec_forward.1} parent=1 // pred_check_branch
      %52 = sbr.rel (0) target = $region61
    $region60: #{sasrec_forward.1} parent=1 // pred_region
      _
    $region61: #{sasrec_forward.1} parent=1 // pred_fallthru
      _
    // Predicated region
    $region62: #{sasrec_forward.1} parent=1 // pred_check
      _
    $region63: #{sasrec_forward.1} parent=1 // pred_check_branch
      %54 = sbr.rel (0) target = $region65
    $region64: #{sasrec_forward.1} parent=1 // pred_region
      _
    $region65: #{sasrec_forward.1} parent=1 // pred_fallthru
      _
    // Predicated region
    $region66: #{sasrec_forward.1} parent=1 // pred_check
      _
    $region67: #{sasrec_forward.1} parent=1 // pred_check_branch
      %56 = sbr.rel (0) target = $region69
    $region68: #{sasrec_forward.1} parent=1 // pred_region
      _
    $region69: #{sasrec_forward.1} parent=1 // pred_fallthru
      _
    %v58 = vld [vmem:[%s0] sm:$0xff]
    %v59 = vld [vmem:[%s0 + $0x8] sm:$0xff]
    %v60 = vld [vmem:[%s1] sm:$0x3]
    %v62 = vrot.slane %v60, 6
    %v64 = vrot.slane %v60, 4
    %v66 = vrot.slane %v60, 2
    %vm68 = vcmask 1041408
    %v69 = vsel %vm68, %v60, %v62
    %vm70 = vcmask 1043456
    %v71 = vsel %vm70, %v69, %v64
    %vm72 = vcmask 1045504
    %v73 = vsel %vm72, %v71, %v66
    %v74 = vpack.c.bf16 %v58, %v58
    %v75 = vpack.c.bf16 %v59, %v59
    %v76 = vld [vmem:[%s2] sm:$0xf]
    %v77 = vld [vmem:[%s2 + $0x4] sm:$0xf]
    %v78 = vld [vmem:[%s2 + $0x8] sm:$0xf]
    %v79 = vld [vmem:[%s2 + $0xc] sm:$0xf]
    %v80 = vld [vmem:[%s3] sm:$0x1]
    %v82 = vlaneseq
    %v83 = vshrl.u32 %v82, 7
    %v84 = vsub.s32 0, %v83
    %v85 = vrot.slane %v80, %v84
    %v89 = vunpack.c.l.b16 %v74
    %v90 = vunpack.c.l.b16 %v75
    %v91 = vpack.c.b16 %v90, %v89
    %v96 = vunpack.c.l.b16 %v76
    %v97 = vunpack.c.l.b16 %v77
    %v98 = vunpack.c.l.b16 %v78
    %v99 = vunpack.c.l.b16 %v79
    %v100 = vpack.c.b16 %v97, %v96
    %v101 = vpack.c.b16 %v99, %v98
    %vm104 = vcmask 261120
    %v106 = vsel %vm104, %v91, 0
    %108 = vmatprep.subr.bf16.mxu0 0
    %109 = vmatpush1.bf16.msra.mxu0 %v100
    %110 = vmatprep.subr.bf16.mxu0 0
    %111 = vmatpush1.bf16.msra.mxu0 %v101
    %112 = vmatprep.subr.bf16.mxu0 0
    %113 = vmatpush1.bf16.msra.mxu0 0
    %114 = vmatprep.subr.bf16.mxu0 0
    %115 = vmatpush1.bf16.msra.mxu0 0
    %116 = vmatprep.subr.bf16.mxu0 0
    %117 = vmatpush1.bf16.msra.mxu0 0
    %118 = vmatprep.subr.bf16.mxu0 0
    %119 = vmatpush1.bf16.msra.mxu0 0
    %120 = vmatprep.subr.bf16.mxu0 0
    %121 = vmatpush1.bf16.msra.mxu0 0
    %122 = vmatprep.subr.bf16.mxu0 0
    %123 = vmatpush1.bf16.msra.mxu0 0
    %124 = vmatprep.subr.bf16.mxu0 0
    %125 = vmatpush1.bf16.msra.mxu0 0
    %126 = vmatprep.subr.bf16.mxu0 0
    %127 = vmatpush1.bf16.msra.mxu0 0
    %128 = vmatprep.subr.bf16.mxu0 0
    %129 = vmatpush1.bf16.msra.mxu0 0
    %130 = vmatprep.subr.bf16.mxu0 0
    %131 = vmatpush1.bf16.msra.mxu0 0
    %132 = vmatprep.subr.bf16.mxu0 0
    %133 = vmatpush1.bf16.msra.mxu0 0
    %134 = vmatprep.subr.bf16.mxu0 0
    %135 = vmatpush1.bf16.msra.mxu0 0
    %136 = vmatprep.subr.bf16.mxu0 0
    %137 = vmatpush1.bf16.msra.mxu0 0
    %138 = vmatprep.subr.bf16.mxu0 0
    %139 = vmatpush1.bf16.msra.mxu0 0
    %140 = vmatprep.mubr.bf16.mxu0 0
    %141 = vmatmul.mubr.bf16.gmra.mrb[0].mxu0 %v106
    %v142 = vpop.f32.mrb[0].mxu0
    %v143 = vadd.f32 %v85, %v142
    %v144 = vpop.f32.mrb[0].mxu0
    %v145 = vpop.f32.mrb[0].mxu0
    %v146 = vadd.f32 %v85, %v145
    %v147 = vpop.f32.mrb[0].mxu0
    %148 = vdwg.mxu0
    %151 = vrot.lane.b32.xlu0 %v143, 120
    %v152 = vpop.permute.xlu0 %151
    %153 = vrot.lane.b32.xlu0 %v146, 120
    %v154 = vpop.permute.xlu0 %153
    %157 = vrot.lane.b32.xlu0 %v143, 112
    %v158 = vpop.permute.xlu0 %157
    %159 = vrot.lane.b32.xlu0 %v146, 112
    %v160 = vpop.permute.xlu0 %159
    %163 = vrot.lane.b32.xlu0 %v143, 104
    %v164 = vpop.permute.xlu0 %163
    %165 = vrot.lane.b32.xlu0 %v146, 104
    %v166 = vpop.permute.xlu0 %165
    %v169 = vpack.c.bf16 %v143, %v143
    %v170 = vpack.c.bf16 %v146, %v146
    %v171 = vpack.c.bf16 %v152, %v152
    %v172 = vpack.c.bf16 %v154, %v154
    %v173 = vpack.c.bf16 %v158, %v158
    %v174 = vpack.c.bf16 %v160, %v160
    %v175 = vpack.c.bf16 %v164, %v164
    %v176 = vpack.c.bf16 %v166, %v166
    %178 = vrot.lane.b32.xlu0 %v169, 96
    %v179 = vpop.permute.xlu0 %178
    %vm180 = vcmask 64512
    %v182 = vsel %vm180, %v169, 0
    %v185 = vsel %vm180, %v179, 0
    %187 = vmatprep.subr.bf16.mxu0 0
    %188 = vmatpush1.bf16.xpose.msra.mxu0 %v185
    %189 = vmatprep.subr.bf16.mxu0 0
    %190 = vmatpush1.bf16.xpose.msra.mxu0 0
    %191 = vmatprep.subr.bf16.mxu0 0
    %192 = vmatpush1.bf16.xpose.msra.mxu0 0
    %193 = vmatprep.subr.bf16.mxu0 0
    %194 = vmatpush1.bf16.xpose.msra.mxu0 0
    %195 = vmatprep.subr.bf16.mxu0 0
    %196 = vmatpush1.bf16.xpose.msra.mxu0 0
    %197 = vmatprep.subr.bf16.mxu0 0
    %198 = vmatpush1.bf16.xpose.msra.mxu0 0
    %199 = vmatprep.subr.bf16.mxu0 0
    %200 = vmatpush1.bf16.xpose.msra.mxu0 0
    %201 = vmatprep.subr.bf16.mxu0 0
    %202 = vmatpush1.bf16.xpose.msra.mxu0 0
    %203 = vmatprep.subr.bf16.mxu0 0
    %204 = vmatpush1.bf16.xpose.msra.mxu0 0
    %205 = vmatprep.subr.bf16.mxu0 0
    %206 = vmatpush1.bf16.xpose.msra.mxu0 0
    %207 = vmatprep.subr.bf16.mxu0 0
    %208 = vmatpush1.bf16.xpose.msra.mxu0 0
    %209 = vmatprep.subr.bf16.mxu0 0
    %210 = vmatpush1.bf16.xpose.msra.mxu0 0
    %211 = vmatprep.subr.bf16.mxu0 0
    %212 = vmatpush1.bf16.xpose.msra.mxu0 0
    %213 = vmatprep.subr.bf16.mxu0 0
    %214 = vmatpush1.bf16.xpose.msra.mxu0 0
    %215 = vmatprep.subr.bf16.mxu0 0
    %216 = vmatpush1.bf16.xpose.msra.mxu0 0
    %217 = vmatprep.subr.bf16.mxu0 0
    %218 = vmatpush1.bf16.xpose.msra.mxu0 0
    %219 = vmatprep.mubr.bf16.mxu0 0
    %220 = vmatmul.mubr.bf16.gmra.mrb[0].mxu0 %v182
    %v221 = vpop.f32.mrb[0].mxu0
    %v222 = vadd.f32 0.0, %v221
    %v223 = vpop.f32.mrb[0].mxu0
    %v224 = vpop.f32.mrb[0].mxu0
    %v225 = vpop.f32.mrb[0].mxu0
    %226 = vdwg.mxu0
    %228 = vrot.lane.b32.xlu0 %v170, 96
    %v229 = vpop.permute.xlu0 %228
    %v231 = vsel %vm180, %v170, 0
    %v234 = vsel %vm180, %v229, 0
    %236 = vmatprep.subr.bf16.mxu0 0
    %237 = vmatpush1.bf16.xpose.msra.mxu0 %v234
    %238 = vmatprep.subr.bf16.mxu0 0
    %239 = vmatpush1.bf16.xpose.msra.mxu0 0
    %240 = vmatprep.subr.bf16.mxu0 0
    %241 = vmatpush1.bf16.xpose.msra.mxu0 0
    %242 = vmatprep.subr.bf16.mxu0 0
    %243 = vmatpush1.bf16.xpose.msra.mxu0 0
    %244 = vmatprep.subr.bf16.mxu0 0
    %245 = vmatpush1.bf16.xpose.msra.mxu0 0
    %246 = vmatprep.subr.bf16.mxu0 0
    %247 = vmatpush1.bf16.xpose.msra.mxu0 0
    %248 = vmatprep.subr.bf16.mxu0 0
    %249 = vmatpush1.bf16.xpose.msra.mxu0 0
    %250 = vmatprep.subr.bf16.mxu0 0
    %251 = vmatpush1.bf16.xpose.msra.mxu0 0
    %252 = vmatprep.subr.bf16.mxu0 0
    %253 = vmatpush1.bf16.xpose.msra.mxu0 0
    %254 = vmatprep.subr.bf16.mxu0 0
    %255 = vmatpush1.bf16.xpose.msra.mxu0 0
    %256 = vmatprep.subr.bf16.mxu0 0
    %257 = vmatpush1.bf16.xpose.msra.mxu0 0
    %258 = vmatprep.subr.bf16.mxu0 0
    %259 = vmatpush1.bf16.xpose.msra.mxu0 0
    %260 = vmatprep.subr.bf16.mxu0 0
    %261 = vmatpush1.bf16.xpose.msra.mxu0 0
    %262 = vmatprep.subr.bf16.mxu0 0
    %263 = vmatpush1.bf16.xpose.msra.mxu0 0
    %264 = vmatprep.subr.bf16.mxu0 0
    %265 = vmatpush1.bf16.xpose.msra.mxu0 0
    %266 = vmatprep.subr.bf16.mxu0 0
    %267 = vmatpush1.bf16.xpose.msra.mxu0 0
    %268 = vmatprep.mubr.bf16.mxu0 0
    %269 = vmatmul.mubr.bf16.gmra.mrb[0].mxu0 %v231
    %v270 = vpop.f32.mrb[0].mxu0
    %v271 = vadd.f32 0.0, %v270
    %v272 = vpop.f32.mrb[0].mxu0
    %v273 = vpop.f32.mrb[0].mxu0
    %v274 = vpop.f32.mrb[0].mxu0
    %275 = vdwg.mxu0
    %277 = vrot.lane.b32.xlu0 %v171, 96
    %v278 = vpop.permute.xlu0 %277
    %v280 = vsel %vm180, %v171, 0
    %v283 = vsel %vm180, %v278, 0
    %285 = vmatprep.subr.bf16.mxu0 0
    %286 = vmatpush1.bf16.xpose.msra.mxu0 %v283
    %287 = vmatprep.subr.bf16.mxu0 0
    %288 = vmatpush1.bf16.xpose.msra.mxu0 0
    %289 = vmatprep.subr.bf16.mxu0 0
    %290 = vmatpush1.bf16.xpose.msra.mxu0 0
    %291 = vmatprep.subr.bf16.mxu0 0
    %292 = vmatpush1.bf16.xpose.msra.mxu0 0
    %293 = vmatprep.subr.bf16.mxu0 0
    %294 = vmatpush1.bf16.xpose.msra.mxu0 0
    %295 = vmatprep.subr.bf16.mxu0 0
    %296 = vmatpush1.bf16.xpose.msra.mxu0 0
    %297 = vmatprep.subr.bf16.mxu0 0
    %298 = vmatpush1.bf16.xpose.msra.mxu0 0
    %299 = vmatprep.subr.bf16.mxu0 0
    %300 = vmatpush1.bf16.xpose.msra.mxu0 0
    %301 = vmatprep.subr.bf16.mxu0 0
    %302 = vmatpush1.bf16.xpose.msra.mxu0 0
    %303 = vmatprep.subr.bf16.mxu0 0
    %304 = vmatpush1.bf16.xpose.msra.mxu0 0
    %305 = vmatprep.subr.bf16.mxu0 0
    %306 = vmatpush1.bf16.xpose.msra.mxu0 0
    %307 = vmatprep.subr.bf16.mxu0 0
    %308 = vmatpush1.bf16.xpose.msra.mxu0 0
    %309 = vmatprep.subr.bf16.mxu0 0
    %310 = vmatpush1.bf16.xpose.msra.mxu0 0
    %311 = vmatprep.subr.bf16.mxu0 0
    %312 = vmatpush1.bf16.xpose.msra.mxu0 0
    %313 = vmatprep.subr.bf16.mxu0 0
    %314 = vmatpush1.bf16.xpose.msra.mxu0 0
    %315 = vmatprep.subr.bf16.mxu0 0
    %316 = vmatpush1.bf16.xpose.msra.mxu0 0
    %317 = vmatprep.mubr.bf16.mxu0 0
    %318 = vmatmul.mubr.bf16.gmra.mrb[0].mxu0 %v280
    %v319 = vpop.f32.mrb[0].mxu0
    %v320 = vadd.f32 0.0, %v319
    %v321 = vpop.f32.mrb[0].mxu0
    %v322 = vpop.f32.mrb[0].mxu0
    %v323 = vpop.f32.mrb[0].mxu0
    %324 = vdwg.mxu0
    %326 = vrot.lane.b32.xlu0 %v172, 96
    %v327 = vpop.permute.xlu0 %326
    %v329 = vsel %vm180, %v172, 0
    %v332 = vsel %vm180, %v327, 0
    %334 = vmatprep.subr.bf16.mxu0 0
    %335 = vmatpush1.bf16.xpose.msra.mxu0 %v332
    %336 = vmatprep.subr.bf16.mxu0 0
    %337 = vmatpush1.bf16.xpose.msra.mxu0 0
    %338 = vmatprep.subr.bf16.mxu0 0
    %339 = vmatpush1.bf16.xpose.msra.mxu0 0
    %340 = vmatprep.subr.bf16.mxu0 0
    %341 = vmatpush1.bf16.xpose.msra.mxu0 0
    %342 = vmatprep.subr.bf16.mxu0 0
    %343 = vmatpush1.bf16.xpose.msra.mxu0 0
    %344 = vmatprep.subr.bf16.mxu0 0
    %345 = vmatpush1.bf16.xpose.msra.mxu0 0
    %346 = vmatprep.subr.bf16.mxu0 0
    %347 = vmatpush1.bf16.xpose.msra.mxu0 0
    %348 = vmatprep.subr.bf16.mxu0 0
    %349 = vmatpush1.bf16.xpose.msra.mxu0 0
    %350 = vmatprep.subr.bf16.mxu0 0
    %351 = vmatpush1.bf16.xpose.msra.mxu0 0
    %352 = vmatprep.subr.bf16.mxu0 0
    %353 = vmatpush1.bf16.xpose.msra.mxu0 0
    %354 = vmatprep.subr.bf16.mxu0 0
    %355 = vmatpush1.bf16.xpose.msra.mxu0 0
    %356 = vmatprep.subr.bf16.mxu0 0
    %357 = vmatpush1.bf16.xpose.msra.mxu0 0
    %358 = vmatprep.subr.bf16.mxu0 0
    %359 = vmatpush1.bf16.xpose.msra.mxu0 0
    %360 = vmatprep.subr.bf16.mxu0 0
    %361 = vmatpush1.bf16.xpose.msra.mxu0 0
    %362 = vmatprep.subr.bf16.mxu0 0
    %363 = vmatpush1.bf16.xpose.msra.mxu0 0
    %364 = vmatprep.subr.bf16.mxu0 0
    %365 = vmatpush1.bf16.xpose.msra.mxu0 0
    %366 = vmatprep.mubr.bf16.mxu0 0
    %367 = vmatmul.mubr.bf16.gmra.mrb[0].mxu0 %v329
    %v368 = vpop.f32.mrb[0].mxu0
    %v369 = vadd.f32 0.0, %v368
    %v370 = vpop.f32.mrb[0].mxu0
    %v371 = vpop.f32.mrb[0].mxu0
    %v372 = vpop.f32.mrb[0].mxu0
    %373 = vdwg.mxu0
    %375 = vrot.lane.b32.xlu0 %v173, 96
    %v376 = vpop.permute.xlu0 %375
    %v378 = vsel %vm180, %v173, 0
    %v381 = vsel %vm180, %v376, 0
    %383 = vmatprep.subr.bf16.mxu0 0
    %384 = vmatpush1.bf16.xpose.msra.mxu0 %v381
    %385 = vmatprep.subr.bf16.mxu0 0
    %386 = vmatpush1.bf16.xpose.msra.mxu0 0
    %387 = vmatprep.subr.bf16.mxu0 0
    %388 = vmatpush1.bf16.xpose.msra.mxu0 0
    %389 = vmatprep.subr.bf16.mxu0 0
    %390 = vmatpush1.bf16.xpose.msra.mxu0 0
    %391 = vmatprep.subr.bf16.mxu0 0
    %392 = vmatpush1.bf16.xpose.msra.mxu0 0
    %393 = vmatprep.subr.bf16.mxu0 0
    %394 = vmatpush1.bf16.xpose.msra.mxu0 0
    %395 = vmatprep.subr.bf16.mxu0 0
    %396 = vmatpush1.bf16.xpose.msra.mxu0 0
    %397 = vmatprep.subr.bf16.mxu0 0
    %398 = vmatpush1.bf16.xpose.msra.mxu0 0
    %399 = vmatprep.subr.bf16.mxu0 0
    %400 = vmatpush1.bf16.xpose.msra.mxu0 0
    %401 = vmatprep.subr.bf16.mxu0 0
    %402 = vmatpush1.bf16.xpose.msra.mxu0 0
    %403 = vmatprep.subr.bf16.mxu0 0
    %404 = vmatpush1.bf16.xpose.msra.mxu0 0
    %405 = vmatprep.subr.bf16.mxu0 0
    %406 = vmatpush1.bf16.xpose.msra.mxu0 0
    %407 = vmatprep.subr.bf16.mxu0 0
    %408 = vmatpush1.bf16.xpose.msra.mxu0 0
    %409 = vmatprep.subr.bf16.mxu0 0
    %410 = vmatpush1.bf16.xpose.msra.mxu0 0
    %411 = vmatprep.subr.bf16.mxu0 0
    %412 = vmatpush1.bf16.xpose.msra.mxu0 0
    %413 = vmatprep.subr.bf16.mxu0 0
    %414 = vmatpush1.bf16.xpose.msra.mxu0 0
    %415 = vmatprep.mubr.bf16.mxu0 0
    %416 = vmatmul.mubr.bf16.gmra.mrb[0].mxu0 %v378
    %v417 = vpop.f32.mrb[0].mxu0
    %v418 = vadd.f32 0.0, %v417
    %v419 = vpop.f32.mrb[0].mxu0
    %v420 = vpop.f32.mrb[0].mxu0
    %v421 = vpop.f32.mrb[0].mxu0
    %422 = vdwg.mxu0
    %424 = vrot.lane.b32.xlu0 %v174, 96
    %v425 = vpop.permute.xlu0 %424
    %v427 = vsel %vm180, %v174, 0
    %v430 = vsel %vm180, %v425, 0
    %432 = vmatprep.subr.bf16.mxu0 0
    %433 = vmatpush1.bf16.xpose.msra.mxu0 %v430
    %434 = vmatprep.subr.bf16.mxu0 0
    %435 = vmatpush1.bf16.xpose.msra.mxu0 0
    %436 = vmatprep.subr.bf16.mxu0 0
    %437 = vmatpush1.bf16.xpose.msra.mxu0 0
    %438 = vmatprep.subr.bf16.mxu0 0
    %439 = vmatpush1.bf16.xpose.msra.mxu0 0
    %440 = vmatprep.subr.bf16.mxu0 0
    %441 = vmatpush1.bf16.xpose.msra.mxu0 0
    %442 = vmatprep.subr.bf16.mxu0 0
    %443 = vmatpush1.bf16.xpose.msra.mxu0 0
    %444 = vmatprep.subr.bf16.mxu0 0
    %445 = vmatpush1.bf16.xpose.msra.mxu0 0
    %446 = vmatprep.subr.bf16.mxu0 0
    %447 = vmatpush1.bf16.xpose.msra.mxu0 0
    %448 = vmatprep.subr.bf16.mxu0 0
    %449 = vmatpush1.bf16.xpose.msra.mxu0 0
    %450 = vmatprep.subr.bf16.mxu0 0
    %451 = vmatpush1.bf16.xpose.msra.mxu0 0
    %452 = vmatprep.subr.bf16.mxu0 0
    %453 = vmatpush1.bf16.xpose.msra.mxu0 0
    %454 = vmatprep.subr.bf16.mxu0 0
    %455 = vmatpush1.bf16.xpose.msra.mxu0 0
    %456 = vmatprep.subr.bf16.mxu0 0
    %457 = vmatpush1.bf16.xpose.msra.mxu0 0
    %458 = vmatprep.subr.bf16.mxu0 0
    %459 = vmatpush1.bf16.xpose.msra.mxu0 0
    %460 = vmatprep.subr.bf16.mxu0 0
    %461 = vmatpush1.bf16.xpose.msra.mxu0 0
    %462 = vmatprep.subr.bf16.mxu0 0
    %463 = vmatpush1.bf16.xpose.msra.mxu0 0
    %464 = vmatprep.mubr.bf16.mxu0 0
    %465 = vmatmul.mubr.bf16.gmra.mrb[0].mxu0 %v427
    %v466 = vpop.f32.mrb[0].mxu0
    %v467 = vadd.f32 0.0, %v466
    %v468 = vpop.f32.mrb[0].mxu0
    %v469 = vpop.f32.mrb[0].mxu0
    %v470 = vpop.f32.mrb[0].mxu0
    %471 = vdwg.mxu0
    %473 = vrot.lane.b32.xlu0 %v175, 96
    %v474 = vpop.permute.xlu0 %473
    %v476 = vsel %vm180, %v175, 0
    %v479 = vsel %vm180, %v474, 0
    %481 = vmatprep.subr.bf16.mxu0 0
    %482 = vmatpush1.bf16.xpose.msra.mxu0 %v479
    %483 = vmatprep.subr.bf16.mxu0 0
    %484 = vmatpush1.bf16.xpose.msra.mxu0 0
    %485 = vmatprep.subr.bf16.mxu0 0
    %486 = vmatpush1.bf16.xpose.msra.mxu0 0
    %487 = vmatprep.subr.bf16.mxu0 0
    %488 = vmatpush1.bf16.xpose.msra.mxu0 0
    %489 = vmatprep.subr.bf16.mxu0 0
    %490 = vmatpush1.bf16.xpose.msra.mxu0 0
    %491 = vmatprep.subr.bf16.mxu0 0
    %492 = vmatpush1.bf16.xpose.msra.mxu0 0
    %493 = vmatprep.subr.bf16.mxu0 0
    %494 = vmatpush1.bf16.xpose.msra.mxu0 0
    %495 = vmatprep.subr.bf16.mxu0 0
    %496 = vmatpush1.bf16.xpose.msra.mxu0 0
    %497 = vmatprep.subr.bf16.mxu0 0
    %498 = vmatpush1.bf16.xpose.msra.mxu0 0
    %499 = vmatprep.subr.bf16.mxu0 0
    %500 = vmatpush1.bf16.xpose.msra.mxu0 0
    %501 = vmatprep.subr.bf16.mxu0 0
    %502 = vmatpush1.bf16.xpose.msra.mxu0 0
    %503 = vmatprep.subr.bf16.mxu0 0
    %504 = vmatpush1.bf16.xpose.msra.mxu0 0
    %505 = vmatprep.subr.bf16.mxu0 0
    %506 = vmatpush1.bf16.xpose.msra.mxu0 0
    %507 = vmatprep.subr.bf16.mxu0 0
    %508 = vmatpush1.bf16.xpose.msra.mxu0 0
    %509 = vmatprep.subr.bf16.mxu0 0
    %510 = vmatpush1.bf16.xpose.msra.mxu0 0
    %511 = vmatprep.subr.bf16.mxu0 0
    %512 = vmatpush1.bf16.xpose.msra.mxu0 0
    %513 = vmatprep.mubr.bf16.mxu0 0
    %514 = vmatmul.mubr.bf16.gmra.mrb[0].mxu0 %v476
    %v515 = vpop.f32.mrb[0].mxu0
    %v516 = vadd.f32 0.0, %v515
    %v517 = vpop.f32.mrb[0].mxu0
    %v518 = vpop.f32.mrb[0].mxu0
    %v519 = vpop.f32.mrb[0].mxu0
    %520 = vdwg.mxu0
    %522 = vrot.lane.b32.xlu0 %v176, 96
    %v523 = vpop.permute.xlu0 %522
    %v525 = vsel %vm180, %v176, 0
    %v528 = vsel %vm180, %v523, 0
    %530 = vmatprep.subr.bf16.mxu0 0
    %531 = vmatpush1.bf16.xpose.msra.mxu0 %v528
    %532 = vmatprep.subr.bf16.mxu0 0
    %533 = vmatpush1.bf16.xpose.msra.mxu0 0
    %534 = vmatprep.subr.bf16.mxu0 0
    %535 = vmatpush1.bf16.xpose.msra.mxu0 0
    %536 = vmatprep.subr.bf16.mxu0 0
    %537 = vmatpush1.bf16.xpose.msra.mxu0 0
    %538 = vmatprep.subr.bf16.mxu0 0
    %539 = vmatpush1.bf16.xpose.msra.mxu0 0
    %540 = vmatprep.subr.bf16.mxu0 0
    %541 = vmatpush1.bf16.xpose.msra.mxu0 0
    %542 = vmatprep.subr.bf16.mxu0 0
    %543 = vmatpush1.bf16.xpose.msra.mxu0 0
    %544 = vmatprep.subr.bf16.mxu0 0
    %545 = vmatpush1.bf16.xpose.msra.mxu0 0
    %546 = vmatprep.subr.bf16.mxu0 0
    %547 = vmatpush1.bf16.xpose.msra.mxu0 0
    %548 = vmatprep.subr.bf16.mxu0 0
    %549 = vmatpush1.bf16.xpose.msra.mxu0 0
    %550 = vmatprep.subr.bf16.mxu0 0
    %551 = vmatpush1.bf16.xpose.msra.mxu0 0
    %552 = vmatprep.subr.bf16.mxu0 0
    %553 = vmatpush1.bf16.xpose.msra.mxu0 0
    %554 = vmatprep.subr.bf16.mxu0 0
    %555 = vmatpush1.bf16.xpose.msra.mxu0 0
    %556 = vmatprep.subr.bf16.mxu0 0
    %557 = vmatpush1.bf16.xpose.msra.mxu0 0
    %558 = vmatprep.subr.bf16.mxu0 0
    %559 = vmatpush1.bf16.xpose.msra.mxu0 0
    %560 = vmatprep.subr.bf16.mxu0 0
    %561 = vmatpush1.bf16.xpose.msra.mxu0 0
    %562 = vmatprep.mubr.bf16.mxu0 0
    %563 = vmatmul.mubr.bf16.gmra.mrb[0].mxu0 %v525
    %v564 = vpop.f32.mrb[0].mxu0
    %v565 = vadd.f32 0.0, %v564
    %v566 = vpop.f32.mrb[0].mxu0
    %v567 = vpop.f32.mrb[0].mxu0
    %v568 = vpop.f32.mrb[0].mxu0
    %569 = vdwg.mxu0
    %v570 = vmul.f32 %v222, 0.35355338
    %v571 = vmul.f32 %v271, 0.35355338
    %v572 = vmul.f32 %v320, 0.35355338
    %v573 = vmul.f32 %v369, 0.35355338
    %v574 = vmul.f32 %v418, 0.35355338
    %v575 = vmul.f32 %v467, 0.35355338
    %v576 = vmul.f32 %v516, 0.35355338
    %v577 = vmul.f32 %v565, 0.35355338
    %v579 = vcombine.high %v73, %v73
    %v581 = vunpack.c.l.s4 1966171168
    %v582 = vunpack.c.0.s8 %v581
    %v583 = vlaneseq
    %v584 = vshrl.u32 %v583, 7
    %v585 = vsub.s32 %v582, %v584
    %v586 = vrot.slane %v73, %v585
    %v588 = vunpack.c.l.s4 1966171168
    %v589 = vunpack.c.0.s8 %v588
    %v590 = vlaneseq
    %v591 = vshrl.u32 %v590, 7
    %v592 = vsub.s32 %v589, %v591
    %v593 = vrot.slane %v579, %v592
    %v594 = vcombine.high %v586, %v586
    %v595 = vcombine.high %v593, %v593
    %v597 = vunpack.c.l.s4 1966171168
    %v598 = vunpack.c.0.s8 %v597
    %v599 = vlaneseq
    %v600 = vshrl.u32 %v599, 7
    %v601 = vsub.s32 %v598, %v600
    %v602 = vrot.slane %v586, %v601
    %v604 = vunpack.c.l.s4 1966171168
    %v605 = vunpack.c.0.s8 %v604
    %v606 = vlaneseq
    %v607 = vshrl.u32 %v606, 7
    %v608 = vsub.s32 %v605, %v607
    %v609 = vrot.slane %v593, %v608
    %v611 = vunpack.c.l.s4 1966171168
    %v612 = vunpack.c.0.s8 %v611
    %v613 = vlaneseq
    %v614 = vshrl.u32 %v613, 7
    %v615 = vsub.s32 %v612, %v614
    %v616 = vrot.slane %v594, %v615
    %v618 = vunpack.c.l.s4 1966171168
    %v619 = vunpack.c.0.s8 %v618
    %v620 = vlaneseq
    %v621 = vshrl.u32 %v620, 7
    %v622 = vsub.s32 %v619, %v621
    %v623 = vrot.slane %v595, %v622
    %v624 = vcombine.high %v602, %v602
    %v625 = vcombine.high %v609, %v609
    %v626 = vcombine.high %v616, %v616
    %v627 = vcombine.high %v623, %v623
    %v628 = vlaneseq
    %v629 = vshrl.u32 %v628, 7
    %v630 = vsub.s32 0, %v629
    %v631 = vrot.slane %v602, %v630
    %v632 = vlaneseq
    %v633 = vshrl.u32 %v632, 7
    %v634 = vsub.s32 0, %v633
    %v635 = vrot.slane %v616, %v634
    %v636 = vlaneseq
    %v637 = vshrl.u32 %v636, 7
    %v638 = vsub.s32 0, %v637
    %v639 = vrot.slane %v624, %v638
    %v640 = vlaneseq
    %v641 = vshrl.u32 %v640, 7
    %v642 = vsub.s32 0, %v641
    %v643 = vrot.slane %v626, %v642
    %v644 = vlaneseq
    %v645 = vshrl.u32 %v644, 7
    %v646 = vsub.s32 0, %v645
    %v647 = vrot.slane %v609, %v646
    %v648 = vlaneseq
    %v649 = vshrl.u32 %v648, 7
    %v650 = vsub.s32 0, %v649
    %v651 = vrot.slane %v623, %v650
    %v652 = vlaneseq
    %v653 = vshrl.u32 %v652, 7
    %v654 = vsub.s32 0, %v653
    %v655 = vrot.slane %v625, %v654
    %v656 = vlaneseq
    %v657 = vshrl.u32 %v656, 7
    %v658 = vsub.s32 0, %v657
    %v659 = vrot.slane %v627, %v658
    %v668 = vadd.f32 %v570, %v631
    %v669 = vadd.f32 %v571, %v635
    %v670 = vadd.f32 %v572, %v639
    %v671 = vadd.f32 %v573, %v643
    %v672 = vadd.f32 %v574, %v647
    %v673 = vadd.f32 %v575, %v651
    %v674 = vadd.f32 %v576, %v655
    %v675 = vadd.f32 %v577, %v659
    %v676 = vsel %vm180, %v668, -inf
    %677 = vmax.xlane.f32.xlu0 %v676
    %v678 = vpop.xlane.xlu0 %677
    %v679 = vsel %vm180, %v669, -inf
    %680 = vmax.xlane.f32.xlu0 %v679
    %v681 = vpop.xlane.xlu0 %680
    %v682 = vsel %vm180, %v670, -inf
    %683 = vmax.xlane.f32.xlu0 %v682
    %v684 = vpop.xlane.xlu0 %683
    %v685 = vsel %vm180, %v671, -inf
    %686 = vmax.xlane.f32.xlu0 %v685
    %v687 = vpop.xlane.xlu0 %686
    %v688 = vsel %vm180, %v672, -inf
    %689 = vmax.xlane.f32.xlu0 %v688
    %v690 = vpop.xlane.xlu0 %689
    %v691 = vsel %vm180, %v673, -inf
    %692 = vmax.xlane.f32.xlu0 %v691
    %v693 = vpop.xlane.xlu0 %692
    %v694 = vsel %vm180, %v674, -inf
    %695 = vmax.xlane.f32.xlu0 %v694
    %v696 = vpop.xlane.xlu0 %695
    %v697 = vsel %vm180, %v675, -inf
    %698 = vmax.xlane.f32.xlu0 %v697
    %v699 = vpop.xlane.xlu0 %698
    %v700 = vsub.f32 %v668, %v678
    %v701 = vsub.f32 %v669, %v681
    %v702 = vsub.f32 %v670, %v684
    %v703 = vsub.f32 %v671, %v687
    %v704 = vsub.f32 %v672, %v690
    %v705 = vsub.f32 %v673, %v693
    %v706 = vsub.f32 %v674, %v696
    %v707 = vsub.f32 %v675, %v699
    %v708 = vmul.f32 %v700, 1.442695
    %v709 = vpow.pop %v708
    %v710 = vmul.f32 %v701, 1.442695
    %v711 = vpow.pop %v710
    %v712 = vmul.f32 %v702, 1.442695
    %v713 = vpow.pop %v712
    %v714 = vmul.f32 %v703, 1.442695
    %v715 = vpow.pop %v714
    %v716 = vmul.f32 %v704, 1.442695
    %v717 = vpow.pop %v716
    %v718 = vmul.f32 %v705, 1.442695
    %v719 = vpow.pop %v718
    %v720 = vmul.f32 %v706, 1.442695
    %v721 = vpow.pop %v720
    %v722 = vmul.f32 %v707, 1.442695
    %v723 = vpow.pop %v722
    %v724 = vsel %vm180, %v709, 0.0
    %725 = vadd.xlane.f32.xlu0 %v724
    %v726 = vpop.xlane.xlu0 %725
    %v727 = vsel %vm180, %v711, 0.0
    %728 = vadd.xlane.f32.xlu0 %v727
    %v729 = vpop.xlane.xlu0 %728
    %v730 = vsel %vm180, %v713, 0.0
    %731 = vadd.xlane.f32.xlu0 %v730
    %v732 = vpop.xlane.xlu0 %731
    %v733 = vsel %vm180, %v715, 0.0
    %734 = vadd.xlane.f32.xlu0 %v733
    %v735 = vpop.xlane.xlu0 %734
    %v736 = vsel %vm180, %v717, 0.0
    %737 = vadd.xlane.f32.xlu0 %v736
    %v738 = vpop.xlane.xlu0 %737
    %v739 = vsel %vm180, %v719, 0.0
    %740 = vadd.xlane.f32.xlu0 %v739
    %v741 = vpop.xlane.xlu0 %740
    %v742 = vsel %vm180, %v721, 0.0
    %743 = vadd.xlane.f32.xlu0 %v742
    %v744 = vpop.xlane.xlu0 %743
    %v745 = vsel %vm180, %v723, 0.0
    %746 = vadd.xlane.f32.xlu0 %v745
    %v747 = vpop.xlane.xlu0 %746
    %v748 = vrcp.pop %v726
    %v749 = vrcp.pop %v729
    %v750 = vrcp.pop %v732
    %v751 = vrcp.pop %v735
    %v752 = vrcp.pop %v738
    %v753 = vrcp.pop %v741
    %v754 = vrcp.pop %v744
    %v755 = vrcp.pop %v747
    %v756 = vmul.f32 %v709, %v748
    %v757 = vmul.f32 %v711, %v749
    %v758 = vmul.f32 %v713, %v750
    %v759 = vmul.f32 %v715, %v751
    %v760 = vmul.f32 %v717, %v752
    %v761 = vmul.f32 %v719, %v753
    %v762 = vmul.f32 %v721, %v754
    %v763 = vmul.f32 %v723, %v755
    %v764 = vpack.c.bf16 %v756, %v756
    %v765 = vpack.c.bf16 %v757, %v757
    %v766 = vpack.c.bf16 %v758, %v758
    %v767 = vpack.c.bf16 %v759, %v759
    %v768 = vpack.c.bf16 %v760, %v760
    %v769 = vpack.c.bf16 %v761, %v761
    %v770 = vpack.c.bf16 %v762, %v762
    %v771 = vpack.c.bf16 %v763, %v763
    %772 = vrot.lane.b32.xlu0 %v169, 64
    %v773 = vpop.permute.xlu0 %772
    %v775 = vsel %vm180, %v764, 0
    %v778 = vsel %vm70, %v773, 0
    %780 = vmatprep.subr.bf16.mxu0 0
    %781 = vmatpush1.bf16.msra.mxu0 %v778
    %782 = vmatprep.subr.bf16.mxu0 0
    %783 = vmatpush1.bf16.msra.mxu0 0
    %784 = vmatprep.subr.bf16.mxu0 0
    %785 = vmatpush1.bf16.msra.mxu0 0
    %786 = vmatprep.subr.bf16.mxu0 0
    %787 = vmatpush1.bf16.msra.mxu0 0
    %788 = vmatprep.subr.bf16.mxu0 0
    %789 = vmatpush1.bf16.msra.mxu0 0
    %790 = vmatprep.subr.bf16.mxu0 0
    %791 = vmatpush1.bf16.msra.mxu0 0
    %792 = vmatprep.subr.bf16.mxu0 0
    %793 = vmatpush1.bf16.msra.mxu0 0
    %794 = vmatprep.subr.bf16.mxu0 0
    %795 = vmatpush1.bf16.msra.mxu0 0
    %796 = vmatprep.subr.bf16.mxu0 0
    %797 = vmatpush1.bf16.msra.mxu0 0
    %798 = vmatprep.subr.bf16.mxu0 0
    %799 = vmatpush1.bf16.msra.mxu0 0
    %800 = vmatprep.subr.bf16.mxu0 0
    %801 = vmatpush1.bf16.msra.mxu0 0
    %802 = vmatprep.subr.bf16.mxu0 0
    %803 = vmatpush1.bf16.msra.mxu0 0
    %804 = vmatprep.subr.bf16.mxu0 0
    %805 = vmatpush1.bf16.msra.mxu0 0
    %806 = vmatprep.subr.bf16.mxu0 0
    %807 = vmatpush1.bf16.msra.mxu0 0
    %808 = vmatprep.subr.bf16.mxu0 0
    %809 = vmatpush1.bf16.msra.mxu0 0
    %810 = vmatprep.subr.bf16.mxu0 0
    %811 = vmatpush1.bf16.msra.mxu0 0
    %812 = vmatprep.mubr.bf16.mxu0 0
    %813 = vmatmul.mubr.bf16.gmra.mrb[0].mxu0 %v775
    %v814 = vpop.f32.mrb[0].mxu0
    %v815 = vadd.f32 0.0, %v814
    %v816 = vpop.f32.mrb[0].mxu0
    %v817 = vpop.f32.mrb[0].mxu0
    %v818 = vpop.f32.mrb[0].mxu0
    %819 = vdwg.mxu0
    %820 = vrot.lane.b32.xlu0 %v170, 64
    %v821 = vpop.permute.xlu0 %820
    %v823 = vsel %vm180, %v765, 0
    %v826 = vsel %vm70, %v821, 0
    %828 = vmatprep.subr.bf16.mxu0 0
    %829 = vmatpush1.bf16.msra.mxu0 %v826
    %830 = vmatprep.subr.bf16.mxu0 0
    %831 = vmatpush1.bf16.msra.mxu0 0
    %832 = vmatprep.subr.bf16.mxu0 0
    %833 = vmatpush1.bf16.msra.mxu0 0
    %834 = vmatprep.subr.bf16.mxu0 0
    %835 = vmatpush1.bf16.msra.mxu0 0
    %836 = vmatprep.subr.bf16.mxu0 0
    %837 = vmatpush1.bf16.msra.mxu0 0
    %838 = vmatprep.subr.bf16.mxu0 0
    %839 = vmatpush1.bf16.msra.mxu0 0
    %840 = vmatprep.subr.bf16.mxu0 0
    %841 = vmatpush1.bf16.msra.mxu0 0
    %842 = vmatprep.subr.bf16.mxu0 0
    %843 = vmatpush1.bf16.msra.mxu0 0
    %844 = vmatprep.subr.bf16.mxu0 0
    %845 = vmatpush1.bf16.msra.mxu0 0
    %846 = vmatprep.subr.bf16.mxu0 0
    %847 = vmatpush1.bf16.msra.mxu0 0
    %848 = vmatprep.subr.bf16.mxu0 0
    %849 = vmatpush1.bf16.msra.mxu0 0
    %850 = vmatprep.subr.bf16.mxu0 0
    %851 = vmatpush1.bf16.msra.mxu0 0
    %852 = vmatprep.subr.bf16.mxu0 0
    %853 = vmatpush1.bf16.msra.mxu0 0
    %854 = vmatprep.subr.bf16.mxu0 0
    %855 = vmatpush1.bf16.msra.mxu0 0
    %856 = vmatprep.subr.bf16.mxu0 0
    %857 = vmatpush1.bf16.msra.mxu0 0
    %858 = vmatprep.subr.bf16.mxu0 0
    %859 = vmatpush1.bf16.msra.mxu0 0
    %860 = vmatprep.mubr.bf16.mxu0 0
    %861 = vmatmul.mubr.bf16.gmra.mrb[0].mxu0 %v823
    %v862 = vpop.f32.mrb[0].mxu0
    %v863 = vadd.f32 0.0, %v862
    %v864 = vpop.f32.mrb[0].mxu0
    %v865 = vpop.f32.mrb[0].mxu0
    %v866 = vpop.f32.mrb[0].mxu0
    %867 = vdwg.mxu0
    %868 = vrot.lane.b32.xlu0 %v171, 64
    %v869 = vpop.permute.xlu0 %868
    %v871 = vsel %vm180, %v766, 0
    %v874 = vsel %vm70, %v869, 0
    %876 = vmatprep.subr.bf16.mxu0 0
    %877 = vmatpush1.bf16.msra.mxu0 %v874
    %878 = vmatprep.subr.bf16.mxu0 0
    %879 = vmatpush1.bf16.msra.mxu0 0
    %880 = vmatprep.subr.bf16.mxu0 0
    %881 = vmatpush1.bf16.msra.mxu0 0
    %882 = vmatprep.subr.bf16.mxu0 0
    %883 = vmatpush1.bf16.msra.mxu0 0
    %884 = vmatprep.subr.bf16.mxu0 0
    %885 = vmatpush1.bf16.msra.mxu0 0
    %886 = vmatprep.subr.bf16.mxu0 0
    %887 = vmatpush1.bf16.msra.mxu0 0
    %888 = vmatprep.subr.bf16.mxu0 0
    %889 = vmatpush1.bf16.msra.mxu0 0
    %890 = vmatprep.subr.bf16.mxu0 0
    %891 = vmatpush1.bf16.msra.mxu0 0
    %892 = vmatprep.subr.bf16.mxu0 0
    %893 = vmatpush1.bf16.msra.mxu0 0
    %894 = vmatprep.subr.bf16.mxu0 0
    %895 = vmatpush1.bf16.msra.mxu0 0
    %896 = vmatprep.subr.bf16.mxu0 0
    %897 = vmatpush1.bf16.msra.mxu0 0
    %898 = vmatprep.subr.bf16.mxu0 0
    %899 = vmatpush1.bf16.msra.mxu0 0
    %900 = vmatprep.subr.bf16.mxu0 0
    %901 = vmatpush1.bf16.msra.mxu0 0
    %902 = vmatprep.subr.bf16.mxu0 0
    %903 = vmatpush1.bf16.msra.mxu0 0
    %904 = vmatprep.subr.bf16.mxu0 0
    %905 = vmatpush1.bf16.msra.mxu0 0
    %906 = vmatprep.subr.bf16.mxu0 0
    %907 = vmatpush1.bf16.msra.mxu0 0
    %908 = vmatprep.mubr.bf16.mxu0 0
    %909 = vmatmul.mubr.bf16.gmra.mrb[0].mxu0 %v871
    %v910 = vpop.f32.mrb[0].mxu0
    %v911 = vadd.f32 0.0, %v910
    %v912 = vpop.f32.mrb[0].mxu0
    %v913 = vpop.f32.mrb[0].mxu0
    %v914 = vpop.f32.mrb[0].mxu0
    %915 = vdwg.mxu0
    %916 = vrot.lane.b32.xlu0 %v172, 64
    %v917 = vpop.permute.xlu0 %916
    %v919 = vsel %vm180, %v767, 0
    %v922 = vsel %vm70, %v917, 0
    %924 = vmatprep.subr.bf16.mxu0 0
    %925 = vmatpush1.bf16.msra.mxu0 %v922
    %926 = vmatprep.subr.bf16.mxu0 0
    %927 = vmatpush1.bf16.msra.mxu0 0
    %928 = vmatprep.subr.bf16.mxu0 0
    %929 = vmatpush1.bf16.msra.mxu0 0
    %930 = vmatprep.subr.bf16.mxu0 0
    %931 = vmatpush1.bf16.msra.mxu0 0
    %932 = vmatprep.subr.bf16.mxu0 0
    %933 = vmatpush1.bf16.msra.mxu0 0
    %934 = vmatprep.subr.bf16.mxu0 0
    %935 = vmatpush1.bf16.msra.mxu0 0
    %936 = vmatprep.subr.bf16.mxu0 0
    %937 = vmatpush1.bf16.msra.mxu0 0
    %938 = vmatprep.subr.bf16.mxu0 0
    %939 = vmatpush1.bf16.msra.mxu0 0
    %940 = vmatprep.subr.bf16.mxu0 0
    %941 = vmatpush1.bf16.msra.mxu0 0
    %942 = vmatprep.subr.bf16.mxu0 0
    %943 = vmatpush1.bf16.msra.mxu0 0
    %944 = vmatprep.subr.bf16.mxu0 0
    %945 = vmatpush1.bf16.msra.mxu0 0
    %946 = vmatprep.subr.bf16.mxu0 0
    %947 = vmatpush1.bf16.msra.mxu0 0
    %948 = vmatprep.subr.bf16.mxu0 0
    %949 = vmatpush1.bf16.msra.mxu0 0
    %950 = vmatprep.subr.bf16.mxu0 0
    %951 = vmatpush1.bf16.msra.mxu0 0
    %952 = vmatprep.subr.bf16.mxu0 0
    %953 = vmatpush1.bf16.msra.mxu0 0
    %954 = vmatprep.subr.bf16.mxu0 0
    %955 = vmatpush1.bf16.msra.mxu0 0
    %956 = vmatprep.mubr.bf16.mxu0 0
    %957 = vmatmul.mubr.bf16.gmra.mrb[0].mxu0 %v919
    %v958 = vpop.f32.mrb[0].mxu0
    %v959 = vadd.f32 0.0, %v958
    %v960 = vpop.f32.mrb[0].mxu0
    %v961 = vpop.f32.mrb[0].mxu0
    %v962 = vpop.f32.mrb[0].mxu0
    %963 = vdwg.mxu0
    %964 = vrot.lane.b32.xlu0 %v173, 64
    %v965 = vpop.permute.xlu0 %964
    %v967 = vsel %vm180, %v768, 0
    %v970 = vsel %vm70, %v965, 0
    %972 = vmatprep.subr.bf16.mxu0 0
    %973 = vmatpush1.bf16.msra.mxu0 %v970
    %974 = vmatprep.subr.bf16.mxu0 0
    %975 = vmatpush1.bf16.msra.mxu0 0
    %976 = vmatprep.subr.bf16.mxu0 0
    %977 = vmatpush1.bf16.msra.mxu0 0
    %978 = vmatprep.subr.bf16.mxu0 0
    %979 = vmatpush1.bf16.msra.mxu0 0
    %980 = vmatprep.subr.bf16.mxu0 0
    %981 = vmatpush1.bf16.msra.mxu0 0
    %982 = vmatprep.subr.bf16.mxu0 0
    %983 = vmatpush1.bf16.msra.mxu0 0
    %984 = vmatprep.subr.bf16.mxu0 0
    %985 = vmatpush1.bf16.msra.mxu0 0
    %986 = vmatprep.subr.bf16.mxu0 0
    %987 = vmatpush1.bf16.msra.mxu0 0
    %988 = vmatprep.subr.bf16.mxu0 0
    %989 = vmatpush1.bf16.msra.mxu0 0
    %990 = vmatprep.subr.bf16.mxu0 0
    %991 = vmatpush1.bf16.msra.mxu0 0
    %992 = vmatprep.subr.bf16.mxu0 0
    %993 = vmatpush1.bf16.msra.mxu0 0
    %994 = vmatprep.subr.bf16.mxu0 0
    %995 = vmatpush1.bf16.msra.mxu0 0
    %996 = vmatprep.subr.bf16.mxu0 0
    %997 = vmatpush1.bf16.msra.mxu0 0
    %998 = vmatprep.subr.bf16.mxu0 0
    %999 = vmatpush1.bf16.msra.mxu0 0
    %1000 = vmatprep.subr.bf16.mxu0 0
    %1001 = vmatpush1.bf16.msra.mxu0 0
    %1002 = vmatprep.subr.bf16.mxu0 0
    %1003 = vmatpush1.bf16.msra.mxu0 0
    %1004 = vmatprep.mubr.bf16.mxu0 0
    %1005 = vmatmul.mubr.bf16.gmra.mrb[0].mxu0 %v967
    %v1006 = vpop.f32.mrb[0].mxu0
    %v1007 = vadd.f32 0.0, %v1006
    %v1008 = vpop.f32.mrb[0].mxu0
    %v1009 = vpop.f32.mrb[0].mxu0
    %v1010 = vpop.f32.mrb[0].mxu0
    %1011 = vdwg.mxu0
    %1012 = vrot.lane.b32.xlu0 %v174, 64
    %v1013 = vpop.permute.xlu0 %1012
    %v1015 = vsel %vm180, %v769, 0
    %v1018 = vsel %vm70, %v1013, 0
    %1020 = vmatprep.subr.bf16.mxu0 0
    %1021 = vmatpush1.bf16.msra.mxu0 %v1018
    %1022 = vmatprep.subr.bf16.mxu0 0
    %1023 = vmatpush1.bf16.msra.mxu0 0
    %1024 = vmatprep.subr.bf16.mxu0 0
    %1025 = vmatpush1.bf16.msra.mxu0 0
    %1026 = vmatprep.subr.bf16.mxu0 0
    %1027 = vmatpush1.bf16.msra.mxu0 0
    %1028 = vmatprep.subr.bf16.mxu0 0
    %1029 = vmatpush1.bf16.msra.mxu0 0
    %1030 = vmatprep.subr.bf16.mxu0 0
    %1031 = vmatpush1.bf16.msra.mxu0 0
    %1032 = vmatprep.subr.bf16.mxu0 0
    %1033 = vmatpush1.bf16.msra.mxu0 0
    %1034 = vmatprep.subr.bf16.mxu0 0
    %1035 = vmatpush1.bf16.msra.mxu0 0
    %1036 = vmatprep.subr.bf16.mxu0 0
    %1037 = vmatpush1.bf16.msra.mxu0 0
    %1038 = vmatprep.subr.bf16.mxu0 0
    %1039 = vmatpush1.bf16.msra.mxu0 0
    %1040 = vmatprep.subr.bf16.mxu0 0
    %1041 = vmatpush1.bf16.msra.mxu0 0
    %1042 = vmatprep.subr.bf16.mxu0 0
    %1043 = vmatpush1.bf16.msra.mxu0 0
    %1044 = vmatprep.subr.bf16.mxu0 0
    %1045 = vmatpush1.bf16.msra.mxu0 0
    %1046 = vmatprep.subr.bf16.mxu0 0
    %1047 = vmatpush1.bf16.msra.mxu0 0
    %1048 = vmatprep.subr.bf16.mxu0 0
    %1049 = vmatpush1.bf16.msra.mxu0 0
    %1050 = vmatprep.subr.bf16.mxu0 0
    %1051 = vmatpush1.bf16.msra.mxu0 0
    %1052 = vmatprep.mubr.bf16.mxu0 0
    %1053 = vmatmul.mubr.bf16.gmra.mrb[0].mxu0 %v1015
    %v1054 = vpop.f32.mrb[0].mxu0
    %v1055 = vadd.f32 0.0, %v1054
    %v1056 = vpop.f32.mrb[0].mxu0
    %v1057 = vpop.f32.mrb[0].mxu0
    %v1058 = vpop.f32.mrb[0].mxu0
    %1059 = vdwg.mxu0
    %1060 = vrot.lane.b32.xlu0 %v175, 64
    %v1061 = vpop.permute.xlu0 %1060
    %v1063 = vsel %vm180, %v770, 0
    %v1066 = vsel %vm70, %v1061, 0
    %1068 = vmatprep.subr.bf16.mxu0 0
    %1069 = vmatpush1.bf16.msra.mxu0 %v1066
    %1070 = vmatprep.subr.bf16.mxu0 0
    %1071 = vmatpush1.bf16.msra.mxu0 0
    %1072 = vmatprep.subr.bf16.mxu0 0
    %1073 = vmatpush1.bf16.msra.mxu0 0
    %1074 = vmatprep.subr.bf16.mxu0 0
    %1075 = vmatpush1.bf16.msra.mxu0 0
    %1076 = vmatprep.subr.bf16.mxu0 0
    %1077 = vmatpush1.bf16.msra.mxu0 0
    %1078 = vmatprep.subr.bf16.mxu0 0
    %1079 = vmatpush1.bf16.msra.mxu0 0
    %1080 = vmatprep.subr.bf16.mxu0 0
    %1081 = vmatpush1.bf16.msra.mxu0 0
    %1082 = vmatprep.subr.bf16.mxu0 0
    %1083 = vmatpush1.bf16.msra.mxu0 0
    %1084 = vmatprep.subr.bf16.mxu0 0
    %1085 = vmatpush1.bf16.msra.mxu0 0
    %1086 = vmatprep.subr.bf16.mxu0 0
    %1087 = vmatpush1.bf16.msra.mxu0 0
    %1088 = vmatprep.subr.bf16.mxu0 0
    %1089 = vmatpush1.bf16.msra.mxu0 0
    %1090 = vmatprep.subr.bf16.mxu0 0
    %1091 = vmatpush1.bf16.msra.mxu0 0
    %1092 = vmatprep.subr.bf16.mxu0 0
    %1093 = vmatpush1.bf16.msra.mxu0 0
    %1094 = vmatprep.subr.bf16.mxu0 0
    %1095 = vmatpush1.bf16.msra.mxu0 0
    %1096 = vmatprep.subr.bf16.mxu0 0
    %1097 = vmatpush1.bf16.msra.mxu0 0
    %1098 = vmatprep.subr.bf16.mxu0 0
    %1099 = vmatpush1.bf16.msra.mxu0 0
    %1100 = vmatprep.mubr.bf16.mxu0 0
    %1101 = vmatmul.mubr.bf16.gmra.mrb[0].mxu0 %v1063
    %v1102 = vpop.f32.mrb[0].mxu0
    %v1103 = vadd.f32 0.0, %v1102
    %v1104 = vpop.f32.mrb[0].mxu0
    %v1105 = vpop.f32.mrb[0].mxu0
    %v1106 = vpop.f32.mrb[0].mxu0
    %1107 = vdwg.mxu0
    %1108 = vrot.lane.b32.xlu0 %v176, 64
    %v1109 = vpop.permute.xlu0 %1108
    %v1111 = vsel %vm180, %v771, 0
    %v1114 = vsel %vm70, %v1109, 0
    %1116 = vmatprep.subr.bf16.mxu0 0
    %1117 = vmatpush1.bf16.msra.mxu0 %v1114
    %1118 = vmatprep.subr.bf16.mxu0 0
    %1119 = vmatpush1.bf16.msra.mxu0 0
    %1120 = vmatprep.subr.bf16.mxu0 0
    %1121 = vmatpush1.bf16.msra.mxu0 0
    %1122 = vmatprep.subr.bf16.mxu0 0
    %1123 = vmatpush1.bf16.msra.mxu0 0
    %1124 = vmatprep.subr.bf16.mxu0 0
    %1125 = vmatpush1.bf16.msra.mxu0 0
    %1126 = vmatprep.subr.bf16.mxu0 0
    %1127 = vmatpush1.bf16.msra.mxu0 0
    %1128 = vmatprep.subr.bf16.mxu0 0
    %1129 = vmatpush1.bf16.msra.mxu0 0
    %1130 = vmatprep.subr.bf16.mxu0 0
    %1131 = vmatpush1.bf16.msra.mxu0 0
    %1132 = vmatprep.subr.bf16.mxu0 0
    %1133 = vmatpush1.bf16.msra.mxu0 0
    %1134 = vmatprep.subr.bf16.mxu0 0
    %1135 = vmatpush1.bf16.msra.mxu0 0
    %1136 = vmatprep.subr.bf16.mxu0 0
    %1137 = vmatpush1.bf16.msra.mxu0 0
    %1138 = vmatprep.subr.bf16.mxu0 0
    %1139 = vmatpush1.bf16.msra.mxu0 0
    %1140 = vmatprep.subr.bf16.mxu0 0
    %1141 = vmatpush1.bf16.msra.mxu0 0
    %1142 = vmatprep.subr.bf16.mxu0 0
    %1143 = vmatpush1.bf16.msra.mxu0 0
    %1144 = vmatprep.subr.bf16.mxu0 0
    %1145 = vmatpush1.bf16.msra.mxu0 0
    %1146 = vmatprep.subr.bf16.mxu0 0
    %1147 = vmatpush1.bf16.msra.mxu0 0
    %1148 = vmatprep.mubr.bf16.mxu0 0
    %1149 = vmatmul.mubr.bf16.gmra.mrb[0].mxu0 %v1111
    %v1150 = vpop.f32.mrb[0].mxu0
    %v1151 = vadd.f32 0.0, %v1150
    %v1152 = vpop.f32.mrb[0].mxu0
    %v1153 = vpop.f32.mrb[0].mxu0
    %v1154 = vpop.f32.mrb[0].mxu0
    %1155 = vdwg.mxu0
    %1158 = vrot.lane.b32.xlu0 %v911, 8
    %v1159 = vpop.permute.xlu0 %1158
    %1160 = vrot.lane.b32.xlu0 %v959, 8
    %v1161 = vpop.permute.xlu0 %1160
    %1166 = vrot.lane.b32.xlu0 %v1007, 16
    %v1167 = vpop.permute.xlu0 %1166
    %1168 = vrot.lane.b32.xlu0 %v1055, 16
    %v1169 = vpop.permute.xlu0 %1168
    %1174 = vrot.lane.b32.xlu0 %v1103, 24
    %v1175 = vpop.permute.xlu0 %1174
    %1176 = vrot.lane.b32.xlu0 %v1151, 24
    %v1177 = vpop.permute.xlu0 %1176
    %v1180 = vsel %vm180, %v815, %v1159
    %v1181 = vsel %vm180, %v863, %v1161
    %vm1182 = vcmask 130048
    %v1183 = vsel %vm1182, %v1180, %v1167
    %v1184 = vsel %vm1182, %v1181, %v1169
    %vm1185 = vcmask 195584
    %v1186 = vsel %vm1185, %v1183, %v1175
    %v1187 = vsel %vm1185, %v1184, %v1177
    %v1188 = vpack.c.bf16 %v1186, %v1186
    %v1189 = vpack.c.bf16 %v1187, %v1187
    %v1190 = vld [vmem:[%s4] sm:$0xf]
    %v1191 = vld [vmem:[%s4 + $0x4] sm:$0xf]
    %v1192 = vld [vmem:[%s4 + $0x8] sm:$0xf]
    %v1193 = vld [vmem:[%s4 + $0xc] sm:$0xf]
    %v1194 = vld [vmem:[%s5] sm:$0x1]
    %v1196 = vlaneseq
    %v1197 = vshrl.u32 %v1196, 7
    %v1198 = vsub.s32 0, %v1197
    %v1199 = vrot.slane %v1194, %v1198
    %v1203 = vunpack.c.l.b16 %v1188
    %v1204 = vunpack.c.l.b16 %v1189
    %v1205 = vpack.c.b16 %v1204, %v1203
    %v1210 = vunpack.c.l.b16 %v1190
    %v1211 = vunpack.c.l.b16 %v1191
    %v1212 = vunpack.c.l.b16 %v1192
    %v1213 = vunpack.c.l.b16 %v1193
    %v1214 = vpack.c.b16 %v1211, %v1210
    %v1215 = vpack.c.b16 %v1213, %v1212
    %v1219 = vsel %vm104, %v1205, 0
    %1221 = vmatprep.subr.bf16.mxu0 0
    %1222 = vmatpush1.bf16.msra.mxu0 %v1214
    %1223 = vmatprep.subr.bf16.mxu0 0
    %1224 = vmatpush1.bf16.msra.mxu0 %v1215
    %1225 = vmatprep.subr.bf16.mxu0 0
    %1226 = vmatpush1.bf16.msra.mxu0 0
    %1227 = vmatprep.subr.bf16.mxu0 0
    %1228 = vmatpush1.bf16.msra.mxu0 0
    %1229 = vmatprep.subr.bf16.mxu0 0
    %1230 = vmatpush1.bf16.msra.mxu0 0
    %1231 = vmatprep.subr.bf16.mxu0 0
    %1232 = vmatpush1.bf16.msra.mxu0 0
    %1233 = vmatprep.subr.bf16.mxu0 0
    %1234 = vmatpush1.bf16.msra.mxu0 0
    %1235 = vmatprep.subr.bf16.mxu0 0
    %1236 = vmatpush1.bf16.msra.mxu0 0
    %1237 = vmatprep.subr.bf16.mxu0 0
    %1238 = vmatpush1.bf16.msra.mxu0 0
    %1239 = vmatprep.subr.bf16.mxu0 0
    %1240 = vmatpush1.bf16.msra.mxu0 0
    %1241 = vmatprep.subr.bf16.mxu0 0
    %1242 = vmatpush1.bf16.msra.mxu0 0
    %1243 = vmatprep.subr.bf16.mxu0 0
    %1244 = vmatpush1.bf16.msra.mxu0 0
    %1245 = vmatprep.subr.bf16.mxu0 0
    %1246 = vmatpush1.bf16.msra.mxu0 0
    %1247 = vmatprep.subr.bf16.mxu0 0
    %1248 = vmatpush1.bf16.msra.mxu0 0
    %1249 = vmatprep.subr.bf16.mxu0 0
    %1250 = vmatpush1.bf16.msra.mxu0 0
    %1251 = vmatprep.subr.bf16.mxu0 0
    %1252 = vmatpush1.bf16.msra.mxu0 0
    %1253 = vmatprep.mubr.bf16.mxu0 0
    %1254 = vmatmul.mubr.bf16.gmra.mrb[0].mxu0 %v1219
    %v1255 = vpop.f32.mrb[0].mxu0
    %v1256 = vadd.f32 %v1199, %v1255
    %v1257 = vpop.f32.mrb[0].mxu0
    %v1258 = vpop.f32.mrb[0].mxu0
    %v1259 = vadd.f32 %v1199, %v1258
    %v1260 = vpop.f32.mrb[0].mxu0
    %1261 = vdwg.mxu0
    %v1262 = vadd.f32 %v58, %v1256
    %v1263 = vadd.f32 %v59, %v1259
    %v1264 = vld [vmem:[%s10] sm:$0x1]
    %v1265 = vld [vmem:[%s11] sm:$0x1]
    %v1266 = vsel %vm104, %v1262, 0.0
    %1267 = vadd.xlane.f32.xlu0 %v1266
    %v1268 = vpop.xlane.xlu0 %1267
    %v1269 = vsel %vm104, %v1263, 0.0
    %1270 = vadd.xlane.f32.xlu0 %v1269
    %v1271 = vpop.xlane.xlu0 %1270
    %v1272 = vrcp.pop 32.0
    %v1273 = vmul.f32 %v1268, %v1272
    %v1274 = vmul.f32 %v1271, %v1272
    %v1275 = vsub.f32 %v1262, %v1273
    %v1276 = vsub.f32 %v1263, %v1274
    %v1277 = vmul.f32 %v1275, %v1275
    %v1278 = vmul.f32 %v1276, %v1276
    %v1279 = vsel %vm104, %v1277, 0.0
    %1280 = vadd.xlane.f32.xlu0 %v1279
    %v1281 = vpop.xlane.xlu0 %1280
    %v1282 = vsel %vm104, %v1278, 0.0
    %1283 = vadd.xlane.f32.xlu0 %v1282
    %v1284 = vpop.xlane.xlu0 %1283
    %v1285 = vmul.f32 %v1281, %v1272
    %v1286 = vmul.f32 %v1284, %v1272
    %v1287 = vadd.f32 %v1285, 1e-05
    %v1288 = vadd.f32 %v1286, 1e-05
    %v1289 = vrsqrt.pop %v1287
    %v1290 = vrsqrt.pop %v1288
    %v1291 = vmul.f32 %v1275, %v1289
    %v1292 = vmul.f32 %v1276, %v1290
    %v1294 = vlaneseq
    %v1295 = vshrl.u32 %v1294, 7
    %v1296 = vsub.s32 0, %v1295
    %v1297 = vrot.slane %v1264, %v1296
    %v1299 = vmul.f32 %v1291, %v1297
    %v1300 = vmul.f32 %v1292, %v1297
    %v1302 = vlaneseq
    %v1303 = vshrl.u32 %v1302, 7
    %v1304 = vsub.s32 0, %v1303
    %v1305 = vrot.slane %v1265, %v1304
    %v1307 = vadd.f32 %v1299, %v1305
    %v1308 = vadd.f32 %v1300, %v1305
    %v1309 = vpack.c.bf16 %v1307, %v1307
    %v1310 = vpack.c.bf16 %v1308, %v1308
    %v1311 = vld [vmem:[%s6] sm:$0xf]
    %v1312 = vld [vmem:[%s6 + $0x4] sm:$0xf]
    %v1313 = vld [vmem:[%s6 + $0x8] sm:$0xf]
    %v1314 = vld [vmem:[%s6 + $0xc] sm:$0xf]
    %v1315 = vld [vmem:[%s7] sm:$0x1]
    %v1317 = vlaneseq
    %v1318 = vshrl.u32 %v1317, 7
    %v1319 = vsub.s32 0, %v1318
    %v1320 = vrot.slane %v1315, %v1319
    %v1324 = vunpack.c.l.b16 %v1309
    %v1325 = vunpack.c.l.b16 %v1310
    %v1326 = vpack.c.b16 %v1325, %v1324
    %v1331 = vunpack.c.l.b16 %v1311
    %v1332 = vunpack.c.l.b16 %v1312
    %v1333 = vunpack.c.l.b16 %v1313
    %v1334 = vunpack.c.l.b16 %v1314
    %v1335 = vpack.c.b16 %v1332, %v1331
    %v1336 = vpack.c.b16 %v1334, %v1333
    %v1340 = vsel %vm104, %v1326, 0
    %1342 = vmatprep.subr.bf16.mxu0 0
    %1343 = vmatpush1.bf16.msra.mxu0 %v1335
    %1344 = vmatprep.subr.bf16.mxu0 0
    %1345 = vmatpush1.bf16.msra.mxu0 %v1336
    %1346 = vmatprep.subr.bf16.mxu0 0
    %1347 = vmatpush1.bf16.msra.mxu0 0
    %1348 = vmatprep.subr.bf16.mxu0 0
    %1349 = vmatpush1.bf16.msra.mxu0 0
    %1350 = vmatprep.subr.bf16.mxu0 0
    %1351 = vmatpush1.bf16.msra.mxu0 0
    %1352 = vmatprep.subr.bf16.mxu0 0
    %1353 = vmatpush1.bf16.msra.mxu0 0
    %1354 = vmatprep.subr.bf16.mxu0 0
    %1355 = vmatpush1.bf16.msra.mxu0 0
    %1356 = vmatprep.subr.bf16.mxu0 0
    %1357 = vmatpush1.bf16.msra.mxu0 0
    %1358 = vmatprep.subr.bf16.mxu0 0
    %1359 = vmatpush1.bf16.msra.mxu0 0
    %1360 = vmatprep.subr.bf16.mxu0 0
    %1361 = vmatpush1.bf16.msra.mxu0 0
    %1362 = vmatprep.subr.bf16.mxu0 0
    %1363 = vmatpush1.bf16.msra.mxu0 0
    %1364 = vmatprep.subr.bf16.mxu0 0
    %1365 = vmatpush1.bf16.msra.mxu0 0
    %1366 = vmatprep.subr.bf16.mxu0 0
    %1367 = vmatpush1.bf16.msra.mxu0 0
    %1368 = vmatprep.subr.bf16.mxu0 0
    %1369 = vmatpush1.bf16.msra.mxu0 0
    %1370 = vmatprep.subr.bf16.mxu0 0
    %1371 = vmatpush1.bf16.msra.mxu0 0
    %1372 = vmatprep.subr.bf16.mxu0 0
    %1373 = vmatpush1.bf16.msra.mxu0 0
    %1374 = vmatprep.mubr.bf16.mxu0 0
    %1375 = vmatmul.mubr.bf16.gmra.mrb[0].mxu0 %v1340
    %v1376 = vpop.f32.mrb[0].mxu0
    %v1377 = vadd.f32 %v1320, %v1376
    %v1378 = vpop.f32.mrb[0].mxu0
    %v1379 = vpop.f32.mrb[0].mxu0
    %v1380 = vadd.f32 %v1320, %v1379
    %v1381 = vpop.f32.mrb[0].mxu0
    %1382 = vdwg.mxu0
    %v1383 = vmax.f32 %v1377, 0.0
    %v1384 = vmax.f32 %v1380, 0.0
    %v1385 = vpack.c.bf16 %v1383, %v1383
    %v1386 = vpack.c.bf16 %v1384, %v1384
    %v1387 = vld [vmem:[%s8] sm:$0xf]
    %v1388 = vld [vmem:[%s8 + $0x4] sm:$0xf]
    %v1389 = vld [vmem:[%s8 + $0x8] sm:$0xf]
    %v1390 = vld [vmem:[%s8 + $0xc] sm:$0xf]
    %v1391 = vld [vmem:[%s8 + $0x10] sm:$0xf]
    %v1392 = vld [vmem:[%s8 + $0x14] sm:$0xf]
    %v1393 = vld [vmem:[%s8 + $0x18] sm:$0xf]
    %v1394 = vld [vmem:[%s8 + $0x1c] sm:$0xf]
    %v1395 = vld [vmem:[%s9] sm:$0x1]
    %v1397 = vlaneseq
    %v1398 = vshrl.u32 %v1397, 7
    %v1399 = vsub.s32 0, %v1398
    %v1400 = vrot.slane %v1395, %v1399
    %v1404 = vunpack.c.l.b16 %v1385
    %v1405 = vunpack.c.l.b16 %v1386
    %v1406 = vpack.c.b16 %v1405, %v1404
    %v1415 = vunpack.c.l.b16 %v1387
    %v1416 = vunpack.c.l.b16 %v1388
    %v1417 = vunpack.c.l.b16 %v1389
    %v1418 = vunpack.c.l.b16 %v1390
    %v1419 = vunpack.c.l.b16 %v1391
    %v1420 = vunpack.c.l.b16 %v1392
    %v1421 = vunpack.c.l.b16 %v1393
    %v1422 = vunpack.c.l.b16 %v1394
    %v1423 = vpack.c.b16 %v1416, %v1415
    %v1424 = vpack.c.b16 %v1418, %v1417
    %v1425 = vpack.c.b16 %v1420, %v1419
    %v1426 = vpack.c.b16 %v1422, %v1421
    %vm1431 = vcmask 523264
    %v1433 = vsel %vm1431, %v1406, 0
    %1435 = vmatprep.subr.bf16.mxu0 0
    %1436 = vmatpush1.bf16.msra.mxu0 %v1423
    %1437 = vmatprep.subr.bf16.mxu0 0
    %1438 = vmatpush1.bf16.msra.mxu0 %v1424
    %1439 = vmatprep.subr.bf16.mxu0 0
    %1440 = vmatpush1.bf16.msra.mxu0 %v1425
    %1441 = vmatprep.subr.bf16.mxu0 0
    %1442 = vmatpush1.bf16.msra.mxu0 %v1426
    %1443 = vmatprep.subr.bf16.mxu0 0
    %1444 = vmatpush1.bf16.msra.mxu0 0
    %1445 = vmatprep.subr.bf16.mxu0 0
    %1446 = vmatpush1.bf16.msra.mxu0 0
    %1447 = vmatprep.subr.bf16.mxu0 0
    %1448 = vmatpush1.bf16.msra.mxu0 0
    %1449 = vmatprep.subr.bf16.mxu0 0
    %1450 = vmatpush1.bf16.msra.mxu0 0
    %1451 = vmatprep.subr.bf16.mxu0 0
    %1452 = vmatpush1.bf16.msra.mxu0 0
    %1453 = vmatprep.subr.bf16.mxu0 0
    %1454 = vmatpush1.bf16.msra.mxu0 0
    %1455 = vmatprep.subr.bf16.mxu0 0
    %1456 = vmatpush1.bf16.msra.mxu0 0
    %1457 = vmatprep.subr.bf16.mxu0 0
    %1458 = vmatpush1.bf16.msra.mxu0 0
    %1459 = vmatprep.subr.bf16.mxu0 0
    %1460 = vmatpush1.bf16.msra.mxu0 0
    %1461 = vmatprep.subr.bf16.mxu0 0
    %1462 = vmatpush1.bf16.msra.mxu0 0
    %1463 = vmatprep.subr.bf16.mxu0 0
    %1464 = vmatpush1.bf16.msra.mxu0 0
    %1465 = vmatprep.subr.bf16.mxu0 0
    %1466 = vmatpush1.bf16.msra.mxu0 0
    %1467 = vmatprep.mubr.bf16.mxu0 0
    %1468 = vmatmul.mubr.bf16.gmra.mrb[0].mxu0 %v1433
    %v1469 = vpop.f32.mrb[0].mxu0
    %v1470 = vadd.f32 %v1400, %v1469
    %v1471 = vpop.f32.mrb[0].mxu0
    %v1472 = vpop.f32.mrb[0].mxu0
    %v1473 = vadd.f32 %v1400, %v1472
    %v1474 = vpop.f32.mrb[0].mxu0
    %1475 = vdwg.mxu0
    %v1476 = vadd.f32 %v1307, %v1470
    %v1477 = vadd.f32 %v1308, %v1473
    %v1478 = vld [vmem:[%s12] sm:$0x1]
    %v1479 = vld [vmem:[%s13] sm:$0x1]
    %v1480 = vsel %vm104, %v1476, 0.0
    %1481 = vadd.xlane.f32.xlu0 %v1480
    %v1482 = vpop.xlane.xlu0 %1481
    %v1483 = vsel %vm104, %v1477, 0.0
    %1484 = vadd.xlane.f32.xlu0 %v1483
    %v1485 = vpop.xlane.xlu0 %1484
    %v1486 = vmul.f32 %v1482, %v1272
    %v1487 = vmul.f32 %v1485, %v1272
    %v1488 = vsub.f32 %v1476, %v1486
    %v1489 = vsub.f32 %v1477, %v1487
    %v1490 = vmul.f32 %v1488, %v1488
    %v1491 = vmul.f32 %v1489, %v1489
    %v1492 = vsel %vm104, %v1490, 0.0
    %1493 = vadd.xlane.f32.xlu0 %v1492
    %v1494 = vpop.xlane.xlu0 %1493
    %v1495 = vsel %vm104, %v1491, 0.0
    %1496 = vadd.xlane.f32.xlu0 %v1495
    %v1497 = vpop.xlane.xlu0 %1496
    %v1498 = vmul.f32 %v1494, %v1272
    %v1499 = vmul.f32 %v1497, %v1272
    %v1500 = vadd.f32 %v1498, 1e-05
    %v1501 = vadd.f32 %v1499, 1e-05
    %v1502 = vrsqrt.pop %v1500
    %v1503 = vrsqrt.pop %v1501
    %v1504 = vmul.f32 %v1488, %v1502
    %v1505 = vmul.f32 %v1489, %v1503
    %v1507 = vlaneseq
    %v1508 = vshrl.u32 %v1507, 7
    %v1509 = vsub.s32 0, %v1508
    %v1510 = vrot.slane %v1478, %v1509
    %v1512 = vmul.f32 %v1504, %v1510
    %v1513 = vmul.f32 %v1505, %v1510
    %v1515 = vlaneseq
    %v1516 = vshrl.u32 %v1515, 7
    %v1517 = vsub.s32 0, %v1516
    %v1518 = vrot.slane %v1479, %v1517
    %v1520 = vadd.f32 %v1512, %v1518
    %v1521 = vadd.f32 %v1513, %v1518
    %v1522 = vpack.c.bf16 %v1520, %v1520
    %v1523 = vpack.c.bf16 %v1521, %v1521
    %s1524 = scalar_lea.vmem %s2, 16
    %v1525 = vld [vmem:[%s1524] sm:$0xf]
    %v1526 = vld [vmem:[%s1524 + $0x4] sm:$0xf]
    %v1527 = vld [vmem:[%s1524 + $0x8] sm:$0xf]
    %v1528 = vld [vmem:[%s1524 + $0xc] sm:$0xf]
    %s1529 = scalar_lea.vmem %s3, 1
    %v1530 = vld [vmem:[%s1529] sm:$0x1]
    %v1532 = vlaneseq
    %v1533 = vshrl.u32 %v1532, 7
    %v1534 = vsub.s32 0, %v1533
    %v1535 = vrot.slane %v1530, %v1534
    %v1539 = vunpack.c.l.b16 %v1522
    %v1540 = vunpack.c.l.b16 %v1523
    %v1541 = vpack.c.b16 %v1540, %v1539
    %v1546 = vunpack.c.l.b16 %v1525
    %v1547 = vunpack.c.l.b16 %v1526
    %v1548 = vunpack.c.l.b16 %v1527
    %v1549 = vunpack.c.l.b16 %v1528
    %v1550 = vpack.c.b16 %v1547, %v1546
    %v1551 = vpack.c.b16 %v1549, %v1548
    %v1555 = vsel %vm104, %v1541, 0
    %1557 = vmatprep.subr.bf16.mxu0 0
    %1558 = vmatpush1.bf16.msra.mxu0 %v1550
    %1559 = vmatprep.subr.bf16.mxu0 0
    %1560 = vmatpush1.bf16.msra.mxu0 %v1551
    %1561 = vmatprep.subr.bf16.mxu0 0
    %1562 = vmatpush1.bf16.msra.mxu0 0
    %1563 = vmatprep.subr.bf16.mxu0 0
    %1564 = vmatpush1.bf16.msra.mxu0 0
    %1565 = vmatprep.subr.bf16.mxu0 0
    %1566 = vmatpush1.bf16.msra.mxu0 0
    %1567 = vmatprep.subr.bf16.mxu0 0
    %1568 = vmatpush1.bf16.msra.mxu0 0
    %1569 = vmatprep.subr.bf16.mxu0 0
    %1570 = vmatpush1.bf16.msra.mxu0 0
    %1571 = vmatprep.subr.bf16.mxu0 0
    %1572 = vmatpush1.bf16.msra.mxu0 0
    %1573 = vmatprep.subr.bf16.mxu0 0
    %1574 = vmatpush1.bf16.msra.mxu0 0
    %1575 = vmatprep.subr.bf16.mxu0 0
    %1576 = vmatpush1.bf16.msra.mxu0 0
    %1577 = vmatprep.subr.bf16.mxu0 0
    %1578 = vmatpush1.bf16.msra.mxu0 0
    %1579 = vmatprep.subr.bf16.mxu0 0
    %1580 = vmatpush1.bf16.msra.mxu0 0
    %1581 = vmatprep.subr.bf16.mxu0 0
    %1582 = vmatpush1.bf16.msra.mxu0 0
    %1583 = vmatprep.subr.bf16.mxu0 0
    %1584 = vmatpush1.bf16.msra.mxu0 0
    %1585 = vmatprep.subr.bf16.mxu0 0
    %1586 = vmatpush1.bf16.msra.mxu0 0
    %1587 = vmatprep.subr.bf16.mxu0 0
    %1588 = vmatpush1.bf16.msra.mxu0 0
    %1589 = vmatprep.mubr.bf16.mxu0 0
    %1590 = vmatmul.mubr.bf16.gmra.mrb[0].mxu0 %v1555
    %v1591 = vpop.f32.mrb[0].mxu0
    %v1592 = vadd.f32 %v1535, %v1591
    %v1593 = vpop.f32.mrb[0].mxu0
    %v1594 = vpop.f32.mrb[0].mxu0
    %v1595 = vadd.f32 %v1535, %v1594
    %v1596 = vpop.f32.mrb[0].mxu0
    %1597 = vdwg.mxu0
    %1600 = vrot.lane.b32.xlu0 %v1592, 120
    %v1601 = vpop.permute.xlu0 %1600
    %1602 = vrot.lane.b32.xlu0 %v1595, 120
    %v1603 = vpop.permute.xlu0 %1602
    %1606 = vrot.lane.b32.xlu0 %v1592, 112
    %v1607 = vpop.permute.xlu0 %1606
    %1608 = vrot.lane.b32.xlu0 %v1595, 112
    %v1609 = vpop.permute.xlu0 %1608
    %1612 = vrot.lane.b32.xlu0 %v1592, 104
    %v1613 = vpop.permute.xlu0 %1612
    %1614 = vrot.lane.b32.xlu0 %v1595, 104
    %v1615 = vpop.permute.xlu0 %1614
    %v1618 = vpack.c.bf16 %v1592, %v1592
    %v1619 = vpack.c.bf16 %v1595, %v1595
    %v1620 = vpack.c.bf16 %v1601, %v1601
    %v1621 = vpack.c.bf16 %v1603, %v1603
    %v1622 = vpack.c.bf16 %v1607, %v1607
    %v1623 = vpack.c.bf16 %v1609, %v1609
    %v1624 = vpack.c.bf16 %v1613, %v1613
    %v1625 = vpack.c.bf16 %v1615, %v1615
    %1627 = vrot.lane.b32.xlu0 %v1618, 96
    %v1628 = vpop.permute.xlu0 %1627
    %v1630 = vsel %vm180, %v1618, 0
    %v1633 = vsel %vm180, %v1628, 0
    %1635 = vmatprep.subr.bf16.mxu0 0
    %1636 = vmatpush1.bf16.xpose.msra.mxu0 %v1633
    %1637 = vmatprep.subr.bf16.mxu0 0
    %1638 = vmatpush1.bf16.xpose.msra.mxu0 0
    %1639 = vmatprep.subr.bf16.mxu0 0
    %1640 = vmatpush1.bf16.xpose.msra.mxu0 0
    %1641 = vmatprep.subr.bf16.mxu0 0
    %1642 = vmatpush1.bf16.xpose.msra.mxu0 0
    %1643 = vmatprep.subr.bf16.mxu0 0
    %1644 = vmatpush1.bf16.xpose.msra.mxu0 0
    %1645 = vmatprep.subr.bf16.mxu0 0
    %1646 = vmatpush1.bf16.xpose.msra.mxu0 0
    %1647 = vmatprep.subr.bf16.mxu0 0
    %1648 = vmatpush1.bf16.xpose.msra.mxu0 0
    %1649 = vmatprep.subr.bf16.mxu0 0
    %1650 = vmatpush1.bf16.xpose.msra.mxu0 0
    %1651 = vmatprep.subr.bf16.mxu0 0
    %1652 = vmatpush1.bf16.xpose.msra.mxu0 0
    %1653 = vmatprep.subr.bf16.mxu0 0
    %1654 = vmatpush1.bf16.xpose.msra.mxu0 0
    %1655 = vmatprep.subr.bf16.mxu0 0
    %1656 = vmatpush1.bf16.xpose.msra.mxu0 0
    %1657 = vmatprep.subr.bf16.mxu0 0
    %1658 = vmatpush1.bf16.xpose.msra.mxu0 0
    %1659 = vmatprep.subr.bf16.mxu0 0
    %1660 = vmatpush1.bf16.xpose.msra.mxu0 0
    %1661 = vmatprep.subr.bf16.mxu0 0
    %1662 = vmatpush1.bf16.xpose.msra.mxu0 0
    %1663 = vmatprep.subr.bf16.mxu0 0
    %1664 = vmatpush1.bf16.xpose.msra.mxu0 0
    %1665 = vmatprep.subr.bf16.mxu0 0
    %1666 = vmatpush1.bf16.xpose.msra.mxu0 0
    %1667 = vmatprep.mubr.bf16.mxu0 0
    %1668 = vmatmul.mubr.bf16.gmra.mrb[0].mxu0 %v1630
    %v1669 = vpop.f32.mrb[0].mxu0
    %v1670 = vadd.f32 0.0, %v1669
    %v1671 = vpop.f32.mrb[0].mxu0
    %v1672 = vpop.f32.mrb[0].mxu0
    %v1673 = vpop.f32.mrb[0].mxu0
    %1674 = vdwg.mxu0
    %1676 = vrot.lane.b32.xlu0 %v1619, 96
    %v1677 = vpop.permute.xlu0 %1676
    %v1679 = vsel %vm180, %v1619, 0
    %v1682 = vsel %vm180, %v1677, 0
    %1684 = vmatprep.subr.bf16.mxu0 0
    %1685 = vmatpush1.bf16.xpose.msra.mxu0 %v1682
    %1686 = vmatprep.subr.bf16.mxu0 0
    %1687 = vmatpush1.bf16.xpose.msra.mxu0 0
    %1688 = vmatprep.subr.bf16.mxu0 0
    %1689 = vmatpush1.bf16.xpose.msra.mxu0 0
    %1690 = vmatprep.subr.bf16.mxu0 0
    %1691 = vmatpush1.bf16.xpose.msra.mxu0 0
    %1692 = vmatprep.subr.bf16.mxu0 0
    %1693 = vmatpush1.bf16.xpose.msra.mxu0 0
    %1694 = vmatprep.subr.bf16.mxu0 0
    %1695 = vmatpush1.bf16.xpose.msra.mxu0 0
    %1696 = vmatprep.subr.bf16.mxu0 0
    %1697 = vmatpush1.bf16.xpose.msra.mxu0 0
    %1698 = vmatprep.subr.bf16.mxu0 0
    %1699 = vmatpush1.bf16.xpose.msra.mxu0 0
    %1700 = vmatprep.subr.bf16.mxu0 0
    %1701 = vmatpush1.bf16.xpose.msra.mxu0 0
    %1702 = vmatprep.subr.bf16.mxu0 0
    %1703 = vmatpush1.bf16.xpose.msra.mxu0 0
    %1704 = vmatprep.subr.bf16.mxu0 0
    %1705 = vmatpush1.bf16.xpose.msra.mxu0 0
    %1706 = vmatprep.subr.bf16.mxu0 0
    %1707 = vmatpush1.bf16.xpose.msra.mxu0 0
    %1708 = vmatprep.subr.bf16.mxu0 0
    %1709 = vmatpush1.bf16.xpose.msra.mxu0 0
    %1710 = vmatprep.subr.bf16.mxu0 0
    %1711 = vmatpush1.bf16.xpose.msra.mxu0 0
    %1712 = vmatprep.subr.bf16.mxu0 0
    %1713 = vmatpush1.bf16.xpose.msra.mxu0 0
    %1714 = vmatprep.subr.bf16.mxu0 0
    %1715 = vmatpush1.bf16.xpose.msra.mxu0 0
    %1716 = vmatprep.mubr.bf16.mxu0 0
    %1717 = vmatmul.mubr.bf16.gmra.mrb[0].mxu0 %v1679
    %v1718 = vpop.f32.mrb[0].mxu0
    %v1719 = vadd.f32 0.0, %v1718
    %v1720 = vpop.f32.mrb[0].mxu0
    %v1721 = vpop.f32.mrb[0].mxu0
    %v1722 = vpop.f32.mrb[0].mxu0
    %1723 = vdwg.mxu0
    %1725 = vrot.lane.b32.xlu0 %v1620, 96
    %v1726 = vpop.permute.xlu0 %1725
    %v1728 = vsel %vm180, %v1620, 0
    %v1731 = vsel %vm180, %v1726, 0
    %1733 = vmatprep.subr.bf16.mxu0 0
    %1734 = vmatpush1.bf16.xpose.msra.mxu0 %v1731
    %1735 = vmatprep.subr.bf16.mxu0 0
    %1736 = vmatpush1.bf16.xpose.msra.mxu0 0
    %1737 = vmatprep.subr.bf16.mxu0 0
    %1738 = vmatpush1.bf16.xpose.msra.mxu0 0
    %1739 = vmatprep.subr.bf16.mxu0 0
    %1740 = vmatpush1.bf16.xpose.msra.mxu0 0
    %1741 = vmatprep.subr.bf16.mxu0 0
    %1742 = vmatpush1.bf16.xpose.msra.mxu0 0
    %1743 = vmatprep.subr.bf16.mxu0 0
    %1744 = vmatpush1.bf16.xpose.msra.mxu0 0
    %1745 = vmatprep.subr.bf16.mxu0 0
    %1746 = vmatpush1.bf16.xpose.msra.mxu0 0
    %1747 = vmatprep.subr.bf16.mxu0 0
    %1748 = vmatpush1.bf16.xpose.msra.mxu0 0
    %1749 = vmatprep.subr.bf16.mxu0 0
    %1750 = vmatpush1.bf16.xpose.msra.mxu0 0
    %1751 = vmatprep.subr.bf16.mxu0 0
    %1752 = vmatpush1.bf16.xpose.msra.mxu0 0
    %1753 = vmatprep.subr.bf16.mxu0 0
    %1754 = vmatpush1.bf16.xpose.msra.mxu0 0
    %1755 = vmatprep.subr.bf16.mxu0 0
    %1756 = vmatpush1.bf16.xpose.msra.mxu0 0
    %1757 = vmatprep.subr.bf16.mxu0 0
    %1758 = vmatpush1.bf16.xpose.msra.mxu0 0
    %1759 = vmatprep.subr.bf16.mxu0 0
    %1760 = vmatpush1.bf16.xpose.msra.mxu0 0
    %1761 = vmatprep.subr.bf16.mxu0 0
    %1762 = vmatpush1.bf16.xpose.msra.mxu0 0
    %1763 = vmatprep.subr.bf16.mxu0 0
    %1764 = vmatpush1.bf16.xpose.msra.mxu0 0
    %1765 = vmatprep.mubr.bf16.mxu0 0
    %1766 = vmatmul.mubr.bf16.gmra.mrb[0].mxu0 %v1728
    %v1767 = vpop.f32.mrb[0].mxu0
    %v1768 = vadd.f32 0.0, %v1767
    %v1769 = vpop.f32.mrb[0].mxu0
    %v1770 = vpop.f32.mrb[0].mxu0
    %v1771 = vpop.f32.mrb[0].mxu0
    %1772 = vdwg.mxu0
    %1774 = vrot.lane.b32.xlu0 %v1621, 96
    %v1775 = vpop.permute.xlu0 %1774
    %v1777 = vsel %vm180, %v1621, 0
    %v1780 = vsel %vm180, %v1775, 0
    %1782 = vmatprep.subr.bf16.mxu0 0
    %1783 = vmatpush1.bf16.xpose.msra.mxu0 %v1780
    %1784 = vmatprep.subr.bf16.mxu0 0
    %1785 = vmatpush1.bf16.xpose.msra.mxu0 0
    %1786 = vmatprep.subr.bf16.mxu0 0
    %1787 = vmatpush1.bf16.xpose.msra.mxu0 0
    %1788 = vmatprep.subr.bf16.mxu0 0
    %1789 = vmatpush1.bf16.xpose.msra.mxu0 0
    %1790 = vmatprep.subr.bf16.mxu0 0
    %1791 = vmatpush1.bf16.xpose.msra.mxu0 0
    %1792 = vmatprep.subr.bf16.mxu0 0
    %1793 = vmatpush1.bf16.xpose.msra.mxu0 0
    %1794 = vmatprep.subr.bf16.mxu0 0
    %1795 = vmatpush1.bf16.xpose.msra.mxu0 0
    %1796 = vmatprep.subr.bf16.mxu0 0
    %1797 = vmatpush1.bf16.xpose.msra.mxu0 0
    %1798 = vmatprep.subr.bf16.mxu0 0
    %1799 = vmatpush1.bf16.xpose.msra.mxu0 0
    %1800 = vmatprep.subr.bf16.mxu0 0
    %1801 = vmatpush1.bf16.xpose.msra.mxu0 0
    %1802 = vmatprep.subr.bf16.mxu0 0
    %1803 = vmatpush1.bf16.xpose.msra.mxu0 0
    %1804 = vmatprep.subr.bf16.mxu0 0
    %1805 = vmatpush1.bf16.xpose.msra.mxu0 0
    %1806 = vmatprep.subr.bf16.mxu0 0
    %1807 = vmatpush1.bf16.xpose.msra.mxu0 0
    %1808 = vmatprep.subr.bf16.mxu0 0
    %1809 = vmatpush1.bf16.xpose.msra.mxu0 0
    %1810 = vmatprep.subr.bf16.mxu0 0
    %1811 = vmatpush1.bf16.xpose.msra.mxu0 0
    %1812 = vmatprep.subr.bf16.mxu0 0
    %1813 = vmatpush1.bf16.xpose.msra.mxu0 0
    %1814 = vmatprep.mubr.bf16.mxu0 0
    %1815 = vmatmul.mubr.bf16.gmra.mrb[0].mxu0 %v1777
    %v1816 = vpop.f32.mrb[0].mxu0
    %v1817 = vadd.f32 0.0, %v1816
    %v1818 = vpop.f32.mrb[0].mxu0
    %v1819 = vpop.f32.mrb[0].mxu0
    %v1820 = vpop.f32.mrb[0].mxu0
    %1821 = vdwg.mxu0
    %1823 = vrot.lane.b32.xlu0 %v1622, 96
    %v1824 = vpop.permute.xlu0 %1823
    %v1826 = vsel %vm180, %v1622, 0
    %v1829 = vsel %vm180, %v1824, 0
    %1831 = vmatprep.subr.bf16.mxu0 0
    %1832 = vmatpush1.bf16.xpose.msra.mxu0 %v1829
    %1833 = vmatprep.subr.bf16.mxu0 0
    %1834 = vmatpush1.bf16.xpose.msra.mxu0 0
    %1835 = vmatprep.subr.bf16.mxu0 0
    %1836 = vmatpush1.bf16.xpose.msra.mxu0 0
    %1837 = vmatprep.subr.bf16.mxu0 0
    %1838 = vmatpush1.bf16.xpose.msra.mxu0 0
    %1839 = vmatprep.subr.bf16.mxu0 0
    %1840 = vmatpush1.bf16.xpose.msra.mxu0 0
    %1841 = vmatprep.subr.bf16.mxu0 0
    %1842 = vmatpush1.bf16.xpose.msra.mxu0 0
    %1843 = vmatprep.subr.bf16.mxu0 0
    %1844 = vmatpush1.bf16.xpose.msra.mxu0 0
    %1845 = vmatprep.subr.bf16.mxu0 0
    %1846 = vmatpush1.bf16.xpose.msra.mxu0 0
    %1847 = vmatprep.subr.bf16.mxu0 0
    %1848 = vmatpush1.bf16.xpose.msra.mxu0 0
    %1849 = vmatprep.subr.bf16.mxu0 0
    %1850 = vmatpush1.bf16.xpose.msra.mxu0 0
    %1851 = vmatprep.subr.bf16.mxu0 0
    %1852 = vmatpush1.bf16.xpose.msra.mxu0 0
    %1853 = vmatprep.subr.bf16.mxu0 0
    %1854 = vmatpush1.bf16.xpose.msra.mxu0 0
    %1855 = vmatprep.subr.bf16.mxu0 0
    %1856 = vmatpush1.bf16.xpose.msra.mxu0 0
    %1857 = vmatprep.subr.bf16.mxu0 0
    %1858 = vmatpush1.bf16.xpose.msra.mxu0 0
    %1859 = vmatprep.subr.bf16.mxu0 0
    %1860 = vmatpush1.bf16.xpose.msra.mxu0 0
    %1861 = vmatprep.subr.bf16.mxu0 0
    %1862 = vmatpush1.bf16.xpose.msra.mxu0 0
    %1863 = vmatprep.mubr.bf16.mxu0 0
    %1864 = vmatmul.mubr.bf16.gmra.mrb[0].mxu0 %v1826
    %v1865 = vpop.f32.mrb[0].mxu0
    %v1866 = vadd.f32 0.0, %v1865
    %v1867 = vpop.f32.mrb[0].mxu0
    %v1868 = vpop.f32.mrb[0].mxu0
    %v1869 = vpop.f32.mrb[0].mxu0
    %1870 = vdwg.mxu0
    %1872 = vrot.lane.b32.xlu0 %v1623, 96
    %v1873 = vpop.permute.xlu0 %1872
    %v1875 = vsel %vm180, %v1623, 0
    %v1878 = vsel %vm180, %v1873, 0
    %1880 = vmatprep.subr.bf16.mxu0 0
    %1881 = vmatpush1.bf16.xpose.msra.mxu0 %v1878
    %1882 = vmatprep.subr.bf16.mxu0 0
    %1883 = vmatpush1.bf16.xpose.msra.mxu0 0
    %1884 = vmatprep.subr.bf16.mxu0 0
    %1885 = vmatpush1.bf16.xpose.msra.mxu0 0
    %1886 = vmatprep.subr.bf16.mxu0 0
    %1887 = vmatpush1.bf16.xpose.msra.mxu0 0
    %1888 = vmatprep.subr.bf16.mxu0 0
    %1889 = vmatpush1.bf16.xpose.msra.mxu0 0
    %1890 = vmatprep.subr.bf16.mxu0 0
    %1891 = vmatpush1.bf16.xpose.msra.mxu0 0
    %1892 = vmatprep.subr.bf16.mxu0 0
    %1893 = vmatpush1.bf16.xpose.msra.mxu0 0
    %1894 = vmatprep.subr.bf16.mxu0 0
    %1895 = vmatpush1.bf16.xpose.msra.mxu0 0
    %1896 = vmatprep.subr.bf16.mxu0 0
    %1897 = vmatpush1.bf16.xpose.msra.mxu0 0
    %1898 = vmatprep.subr.bf16.mxu0 0
    %1899 = vmatpush1.bf16.xpose.msra.mxu0 0
    %1900 = vmatprep.subr.bf16.mxu0 0
    %1901 = vmatpush1.bf16.xpose.msra.mxu0 0
    %1902 = vmatprep.subr.bf16.mxu0 0
    %1903 = vmatpush1.bf16.xpose.msra.mxu0 0
    %1904 = vmatprep.subr.bf16.mxu0 0
    %1905 = vmatpush1.bf16.xpose.msra.mxu0 0
    %1906 = vmatprep.subr.bf16.mxu0 0
    %1907 = vmatpush1.bf16.xpose.msra.mxu0 0
    %1908 = vmatprep.subr.bf16.mxu0 0
    %1909 = vmatpush1.bf16.xpose.msra.mxu0 0
    %1910 = vmatprep.subr.bf16.mxu0 0
    %1911 = vmatpush1.bf16.xpose.msra.mxu0 0
    %1912 = vmatprep.mubr.bf16.mxu0 0
    %1913 = vmatmul.mubr.bf16.gmra.mrb[0].mxu0 %v1875
    %v1914 = vpop.f32.mrb[0].mxu0
    %v1915 = vadd.f32 0.0, %v1914
    %v1916 = vpop.f32.mrb[0].mxu0
    %v1917 = vpop.f32.mrb[0].mxu0
    %v1918 = vpop.f32.mrb[0].mxu0
    %1919 = vdwg.mxu0
    %1921 = vrot.lane.b32.xlu0 %v1624, 96
    %v1922 = vpop.permute.xlu0 %1921
    %v1924 = vsel %vm180, %v1624, 0
    %v1927 = vsel %vm180, %v1922, 0
    %1929 = vmatprep.subr.bf16.mxu0 0
    %1930 = vmatpush1.bf16.xpose.msra.mxu0 %v1927
    %1931 = vmatprep.subr.bf16.mxu0 0
    %1932 = vmatpush1.bf16.xpose.msra.mxu0 0
    %1933 = vmatprep.subr.bf16.mxu0 0
    %1934 = vmatpush1.bf16.xpose.msra.mxu0 0
    %1935 = vmatprep.subr.bf16.mxu0 0
    %1936 = vmatpush1.bf16.xpose.msra.mxu0 0
    %1937 = vmatprep.subr.bf16.mxu0 0
    %1938 = vmatpush1.bf16.xpose.msra.mxu0 0
    %1939 = vmatprep.subr.bf16.mxu0 0
    %1940 = vmatpush1.bf16.xpose.msra.mxu0 0
    %1941 = vmatprep.subr.bf16.mxu0 0
    %1942 = vmatpush1.bf16.xpose.msra.mxu0 0
    %1943 = vmatprep.subr.bf16.mxu0 0
    %1944 = vmatpush1.bf16.xpose.msra.mxu0 0
    %1945 = vmatprep.subr.bf16.mxu0 0
    %1946 = vmatpush1.bf16.xpose.msra.mxu0 0
    %1947 = vmatprep.subr.bf16.mxu0 0
    %1948 = vmatpush1.bf16.xpose.msra.mxu0 0
    %1949 = vmatprep.subr.bf16.mxu0 0
    %1950 = vmatpush1.bf16.xpose.msra.mxu0 0
    %1951 = vmatprep.subr.bf16.mxu0 0
    %1952 = vmatpush1.bf16.xpose.msra.mxu0 0
    %1953 = vmatprep.subr.bf16.mxu0 0
    %1954 = vmatpush1.bf16.xpose.msra.mxu0 0
    %1955 = vmatprep.subr.bf16.mxu0 0
    %1956 = vmatpush1.bf16.xpose.msra.mxu0 0
    %1957 = vmatprep.subr.bf16.mxu0 0
    %1958 = vmatpush1.bf16.xpose.msra.mxu0 0
    %1959 = vmatprep.subr.bf16.mxu0 0
    %1960 = vmatpush1.bf16.xpose.msra.mxu0 0
    %1961 = vmatprep.mubr.bf16.mxu0 0
    %1962 = vmatmul.mubr.bf16.gmra.mrb[0].mxu0 %v1924
    %v1963 = vpop.f32.mrb[0].mxu0
    %v1964 = vadd.f32 0.0, %v1963
    %v1965 = vpop.f32.mrb[0].mxu0
    %v1966 = vpop.f32.mrb[0].mxu0
    %v1967 = vpop.f32.mrb[0].mxu0
    %1968 = vdwg.mxu0
    %1970 = vrot.lane.b32.xlu0 %v1625, 96
    %v1971 = vpop.permute.xlu0 %1970
    %v1973 = vsel %vm180, %v1625, 0
    %v1976 = vsel %vm180, %v1971, 0
    %1978 = vmatprep.subr.bf16.mxu0 0
    %1979 = vmatpush1.bf16.xpose.msra.mxu0 %v1976
    %1980 = vmatprep.subr.bf16.mxu0 0
    %1981 = vmatpush1.bf16.xpose.msra.mxu0 0
    %1982 = vmatprep.subr.bf16.mxu0 0
    %1983 = vmatpush1.bf16.xpose.msra.mxu0 0
    %1984 = vmatprep.subr.bf16.mxu0 0
    %1985 = vmatpush1.bf16.xpose.msra.mxu0 0
    %1986 = vmatprep.subr.bf16.mxu0 0
    %1987 = vmatpush1.bf16.xpose.msra.mxu0 0
    %1988 = vmatprep.subr.bf16.mxu0 0
    %1989 = vmatpush1.bf16.xpose.msra.mxu0 0
    %1990 = vmatprep.subr.bf16.mxu0 0
    %1991 = vmatpush1.bf16.xpose.msra.mxu0 0
    %1992 = vmatprep.subr.bf16.mxu0 0
    %1993 = vmatpush1.bf16.xpose.msra.mxu0 0
    %1994 = vmatprep.subr.bf16.mxu0 0
    %1995 = vmatpush1.bf16.xpose.msra.mxu0 0
    %1996 = vmatprep.subr.bf16.mxu0 0
    %1997 = vmatpush1.bf16.xpose.msra.mxu0 0
    %1998 = vmatprep.subr.bf16.mxu0 0
    %1999 = vmatpush1.bf16.xpose.msra.mxu0 0
    %2000 = vmatprep.subr.bf16.mxu0 0
    %2001 = vmatpush1.bf16.xpose.msra.mxu0 0
    %2002 = vmatprep.subr.bf16.mxu0 0
    %2003 = vmatpush1.bf16.xpose.msra.mxu0 0
    %2004 = vmatprep.subr.bf16.mxu0 0
    %2005 = vmatpush1.bf16.xpose.msra.mxu0 0
    %2006 = vmatprep.subr.bf16.mxu0 0
    %2007 = vmatpush1.bf16.xpose.msra.mxu0 0
    %2008 = vmatprep.subr.bf16.mxu0 0
    %2009 = vmatpush1.bf16.xpose.msra.mxu0 0
    %2010 = vmatprep.mubr.bf16.mxu0 0
    %2011 = vmatmul.mubr.bf16.gmra.mrb[0].mxu0 %v1973
    %v2012 = vpop.f32.mrb[0].mxu0
    %v2013 = vadd.f32 0.0, %v2012
    %v2014 = vpop.f32.mrb[0].mxu0
    %v2015 = vpop.f32.mrb[0].mxu0
    %v2016 = vpop.f32.mrb[0].mxu0
    %2017 = vdwg.mxu0
    %v2018 = vmul.f32 %v1670, 0.35355338
    %v2019 = vmul.f32 %v1719, 0.35355338
    %v2020 = vmul.f32 %v1768, 0.35355338
    %v2021 = vmul.f32 %v1817, 0.35355338
    %v2022 = vmul.f32 %v1866, 0.35355338
    %v2023 = vmul.f32 %v1915, 0.35355338
    %v2024 = vmul.f32 %v1964, 0.35355338
    %v2025 = vmul.f32 %v2013, 0.35355338
    %v2026 = vadd.f32 %v2018, %v631
    %v2027 = vadd.f32 %v2019, %v635
    %v2028 = vadd.f32 %v2020, %v639
    %v2029 = vadd.f32 %v2021, %v643
    %v2030 = vadd.f32 %v2022, %v647
    %v2031 = vadd.f32 %v2023, %v651
    %v2032 = vadd.f32 %v2024, %v655
    %v2033 = vadd.f32 %v2025, %v659
    %v2034 = vsel %vm180, %v2026, -inf
    %2035 = vmax.xlane.f32.xlu0 %v2034
    %v2036 = vpop.xlane.xlu0 %2035
    %v2037 = vsel %vm180, %v2027, -inf
    %2038 = vmax.xlane.f32.xlu0 %v2037
    %v2039 = vpop.xlane.xlu0 %2038
    %v2040 = vsel %vm180, %v2028, -inf
    %2041 = vmax.xlane.f32.xlu0 %v2040
    %v2042 = vpop.xlane.xlu0 %2041
    %v2043 = vsel %vm180, %v2029, -inf
    %2044 = vmax.xlane.f32.xlu0 %v2043
    %v2045 = vpop.xlane.xlu0 %2044
    %v2046 = vsel %vm180, %v2030, -inf
    %2047 = vmax.xlane.f32.xlu0 %v2046
    %v2048 = vpop.xlane.xlu0 %2047
    %v2049 = vsel %vm180, %v2031, -inf
    %2050 = vmax.xlane.f32.xlu0 %v2049
    %v2051 = vpop.xlane.xlu0 %2050
    %v2052 = vsel %vm180, %v2032, -inf
    %2053 = vmax.xlane.f32.xlu0 %v2052
    %v2054 = vpop.xlane.xlu0 %2053
    %v2055 = vsel %vm180, %v2033, -inf
    %2056 = vmax.xlane.f32.xlu0 %v2055
    %v2057 = vpop.xlane.xlu0 %2056
    %v2058 = vsub.f32 %v2026, %v2036
    %v2059 = vsub.f32 %v2027, %v2039
    %v2060 = vsub.f32 %v2028, %v2042
    %v2061 = vsub.f32 %v2029, %v2045
    %v2062 = vsub.f32 %v2030, %v2048
    %v2063 = vsub.f32 %v2031, %v2051
    %v2064 = vsub.f32 %v2032, %v2054
    %v2065 = vsub.f32 %v2033, %v2057
    %v2066 = vmul.f32 %v2058, 1.442695
    %v2067 = vpow.pop %v2066
    %v2068 = vmul.f32 %v2059, 1.442695
    %v2069 = vpow.pop %v2068
    %v2070 = vmul.f32 %v2060, 1.442695
    %v2071 = vpow.pop %v2070
    %v2072 = vmul.f32 %v2061, 1.442695
    %v2073 = vpow.pop %v2072
    %v2074 = vmul.f32 %v2062, 1.442695
    %v2075 = vpow.pop %v2074
    %v2076 = vmul.f32 %v2063, 1.442695
    %v2077 = vpow.pop %v2076
    %v2078 = vmul.f32 %v2064, 1.442695
    %v2079 = vpow.pop %v2078
    %v2080 = vmul.f32 %v2065, 1.442695
    %v2081 = vpow.pop %v2080
    %v2082 = vsel %vm180, %v2067, 0.0
    %2083 = vadd.xlane.f32.xlu0 %v2082
    %v2084 = vpop.xlane.xlu0 %2083
    %v2085 = vsel %vm180, %v2069, 0.0
    %2086 = vadd.xlane.f32.xlu0 %v2085
    %v2087 = vpop.xlane.xlu0 %2086
    %v2088 = vsel %vm180, %v2071, 0.0
    %2089 = vadd.xlane.f32.xlu0 %v2088
    %v2090 = vpop.xlane.xlu0 %2089
    %v2091 = vsel %vm180, %v2073, 0.0
    %2092 = vadd.xlane.f32.xlu0 %v2091
    %v2093 = vpop.xlane.xlu0 %2092
    %v2094 = vsel %vm180, %v2075, 0.0
    %2095 = vadd.xlane.f32.xlu0 %v2094
    %v2096 = vpop.xlane.xlu0 %2095
    %v2097 = vsel %vm180, %v2077, 0.0
    %2098 = vadd.xlane.f32.xlu0 %v2097
    %v2099 = vpop.xlane.xlu0 %2098
    %v2100 = vsel %vm180, %v2079, 0.0
    %2101 = vadd.xlane.f32.xlu0 %v2100
    %v2102 = vpop.xlane.xlu0 %2101
    %v2103 = vsel %vm180, %v2081, 0.0
    %2104 = vadd.xlane.f32.xlu0 %v2103
    %v2105 = vpop.xlane.xlu0 %2104
    %v2106 = vrcp.pop %v2084
    %v2107 = vrcp.pop %v2087
    %v2108 = vrcp.pop %v2090
    %v2109 = vrcp.pop %v2093
    %v2110 = vrcp.pop %v2096
    %v2111 = vrcp.pop %v2099
    %v2112 = vrcp.pop %v2102
    %v2113 = vrcp.pop %v2105
    %v2114 = vmul.f32 %v2067, %v2106
    %v2115 = vmul.f32 %v2069, %v2107
    %v2116 = vmul.f32 %v2071, %v2108
    %v2117 = vmul.f32 %v2073, %v2109
    %v2118 = vmul.f32 %v2075, %v2110
    %v2119 = vmul.f32 %v2077, %v2111
    %v2120 = vmul.f32 %v2079, %v2112
    %v2121 = vmul.f32 %v2081, %v2113
    %v2122 = vpack.c.bf16 %v2114, %v2114
    %v2123 = vpack.c.bf16 %v2115, %v2115
    %v2124 = vpack.c.bf16 %v2116, %v2116
    %v2125 = vpack.c.bf16 %v2117, %v2117
    %v2126 = vpack.c.bf16 %v2118, %v2118
    %v2127 = vpack.c.bf16 %v2119, %v2119
    %v2128 = vpack.c.bf16 %v2120, %v2120
    %v2129 = vpack.c.bf16 %v2121, %v2121
    %2130 = vrot.lane.b32.xlu0 %v1618, 64
    %v2131 = vpop.permute.xlu0 %2130
    %v2133 = vsel %vm180, %v2122, 0
    %v2136 = vsel %vm70, %v2131, 0
    %2138 = vmatprep.subr.bf16.mxu0 0
    %2139 = vmatpush1.bf16.msra.mxu0 %v2136
    %2140 = vmatprep.subr.bf16.mxu0 0
    %2141 = vmatpush1.bf16.msra.mxu0 0
    %2142 = vmatprep.subr.bf16.mxu0 0
    %2143 = vmatpush1.bf16.msra.mxu0 0
    %2144 = vmatprep.subr.bf16.mxu0 0
    %2145 = vmatpush1.bf16.msra.mxu0 0
    %2146 = vmatprep.subr.bf16.mxu0 0
    %2147 = vmatpush1.bf16.msra.mxu0 0
    %2148 = vmatprep.subr.bf16.mxu0 0
    %2149 = vmatpush1.bf16.msra.mxu0 0
    %2150 = vmatprep.subr.bf16.mxu0 0
    %2151 = vmatpush1.bf16.msra.mxu0 0
    %2152 = vmatprep.subr.bf16.mxu0 0
    %2153 = vmatpush1.bf16.msra.mxu0 0
    %2154 = vmatprep.subr.bf16.mxu0 0
    %2155 = vmatpush1.bf16.msra.mxu0 0
    %2156 = vmatprep.subr.bf16.mxu0 0
    %2157 = vmatpush1.bf16.msra.mxu0 0
    %2158 = vmatprep.subr.bf16.mxu0 0
    %2159 = vmatpush1.bf16.msra.mxu0 0
    %2160 = vmatprep.subr.bf16.mxu0 0
    %2161 = vmatpush1.bf16.msra.mxu0 0
    %2162 = vmatprep.subr.bf16.mxu0 0
    %2163 = vmatpush1.bf16.msra.mxu0 0
    %2164 = vmatprep.subr.bf16.mxu0 0
    %2165 = vmatpush1.bf16.msra.mxu0 0
    %2166 = vmatprep.subr.bf16.mxu0 0
    %2167 = vmatpush1.bf16.msra.mxu0 0
    %2168 = vmatprep.subr.bf16.mxu0 0
    %2169 = vmatpush1.bf16.msra.mxu0 0
    %2170 = vmatprep.mubr.bf16.mxu0 0
    %2171 = vmatmul.mubr.bf16.gmra.mrb[0].mxu0 %v2133
    %v2172 = vpop.f32.mrb[0].mxu0
    %v2173 = vadd.f32 0.0, %v2172
    %v2174 = vpop.f32.mrb[0].mxu0
    %v2175 = vpop.f32.mrb[0].mxu0
    %v2176 = vpop.f32.mrb[0].mxu0
    %2177 = vdwg.mxu0
    %2178 = vrot.lane.b32.xlu0 %v1619, 64
    %v2179 = vpop.permute.xlu0 %2178
    %v2181 = vsel %vm180, %v2123, 0
    %v2184 = vsel %vm70, %v2179, 0
    %2186 = vmatprep.subr.bf16.mxu0 0
    %2187 = vmatpush1.bf16.msra.mxu0 %v2184
    %2188 = vmatprep.subr.bf16.mxu0 0
    %2189 = vmatpush1.bf16.msra.mxu0 0
    %2190 = vmatprep.subr.bf16.mxu0 0
    %2191 = vmatpush1.bf16.msra.mxu0 0
    %2192 = vmatprep.subr.bf16.mxu0 0
    %2193 = vmatpush1.bf16.msra.mxu0 0
    %2194 = vmatprep.subr.bf16.mxu0 0
    %2195 = vmatpush1.bf16.msra.mxu0 0
    %2196 = vmatprep.subr.bf16.mxu0 0
    %2197 = vmatpush1.bf16.msra.mxu0 0
    %2198 = vmatprep.subr.bf16.mxu0 0
    %2199 = vmatpush1.bf16.msra.mxu0 0
    %2200 = vmatprep.subr.bf16.mxu0 0
    %2201 = vmatpush1.bf16.msra.mxu0 0
    %2202 = vmatprep.subr.bf16.mxu0 0
    %2203 = vmatpush1.bf16.msra.mxu0 0
    %2204 = vmatprep.subr.bf16.mxu0 0
    %2205 = vmatpush1.bf16.msra.mxu0 0
    %2206 = vmatprep.subr.bf16.mxu0 0
    %2207 = vmatpush1.bf16.msra.mxu0 0
    %2208 = vmatprep.subr.bf16.mxu0 0
    %2209 = vmatpush1.bf16.msra.mxu0 0
    %2210 = vmatprep.subr.bf16.mxu0 0
    %2211 = vmatpush1.bf16.msra.mxu0 0
    %2212 = vmatprep.subr.bf16.mxu0 0
    %2213 = vmatpush1.bf16.msra.mxu0 0
    %2214 = vmatprep.subr.bf16.mxu0 0
    %2215 = vmatpush1.bf16.msra.mxu0 0
    %2216 = vmatprep.subr.bf16.mxu0 0
    %2217 = vmatpush1.bf16.msra.mxu0 0
    %2218 = vmatprep.mubr.bf16.mxu0 0
    %2219 = vmatmul.mubr.bf16.gmra.mrb[0].mxu0 %v2181
    %v2220 = vpop.f32.mrb[0].mxu0
    %v2221 = vadd.f32 0.0, %v2220
    %v2222 = vpop.f32.mrb[0].mxu0
    %v2223 = vpop.f32.mrb[0].mxu0
    %v2224 = vpop.f32.mrb[0].mxu0
    %2225 = vdwg.mxu0
    %2226 = vrot.lane.b32.xlu0 %v1620, 64
    %v2227 = vpop.permute.xlu0 %2226
    %v2229 = vsel %vm180, %v2124, 0
    %v2232 = vsel %vm70, %v2227, 0
    %2234 = vmatprep.subr.bf16.mxu0 0
    %2235 = vmatpush1.bf16.msra.mxu0 %v2232
    %2236 = vmatprep.subr.bf16.mxu0 0
    %2237 = vmatpush1.bf16.msra.mxu0 0
    %2238 = vmatprep.subr.bf16.mxu0 0
    %2239 = vmatpush1.bf16.msra.mxu0 0
    %2240 = vmatprep.subr.bf16.mxu0 0
    %2241 = vmatpush1.bf16.msra.mxu0 0
    %2242 = vmatprep.subr.bf16.mxu0 0
    %2243 = vmatpush1.bf16.msra.mxu0 0
    %2244 = vmatprep.subr.bf16.mxu0 0
    %2245 = vmatpush1.bf16.msra.mxu0 0
    %2246 = vmatprep.subr.bf16.mxu0 0
    %2247 = vmatpush1.bf16.msra.mxu0 0
    %2248 = vmatprep.subr.bf16.mxu0 0
    %2249 = vmatpush1.bf16.msra.mxu0 0
    %2250 = vmatprep.subr.bf16.mxu0 0
    %2251 = vmatpush1.bf16.msra.mxu0 0
    %2252 = vmatprep.subr.bf16.mxu0 0
    %2253 = vmatpush1.bf16.msra.mxu0 0
    %2254 = vmatprep.subr.bf16.mxu0 0
    %2255 = vmatpush1.bf16.msra.mxu0 0
    %2256 = vmatprep.subr.bf16.mxu0 0
    %2257 = vmatpush1.bf16.msra.mxu0 0
    %2258 = vmatprep.subr.bf16.mxu0 0
    %2259 = vmatpush1.bf16.msra.mxu0 0
    %2260 = vmatprep.subr.bf16.mxu0 0
    %2261 = vmatpush1.bf16.msra.mxu0 0
    %2262 = vmatprep.subr.bf16.mxu0 0
    %2263 = vmatpush1.bf16.msra.mxu0 0
    %2264 = vmatprep.subr.bf16.mxu0 0
    %2265 = vmatpush1.bf16.msra.mxu0 0
    %2266 = vmatprep.mubr.bf16.mxu0 0
    %2267 = vmatmul.mubr.bf16.gmra.mrb[0].mxu0 %v2229
    %v2268 = vpop.f32.mrb[0].mxu0
    %v2269 = vadd.f32 0.0, %v2268
    %v2270 = vpop.f32.mrb[0].mxu0
    %v2271 = vpop.f32.mrb[0].mxu0
    %v2272 = vpop.f32.mrb[0].mxu0
    %2273 = vdwg.mxu0
    %2274 = vrot.lane.b32.xlu0 %v1621, 64
    %v2275 = vpop.permute.xlu0 %2274
    %v2277 = vsel %vm180, %v2125, 0
    %v2280 = vsel %vm70, %v2275, 0
    %2282 = vmatprep.subr.bf16.mxu0 0
    %2283 = vmatpush1.bf16.msra.mxu0 %v2280
    %2284 = vmatprep.subr.bf16.mxu0 0
    %2285 = vmatpush1.bf16.msra.mxu0 0
    %2286 = vmatprep.subr.bf16.mxu0 0
    %2287 = vmatpush1.bf16.msra.mxu0 0
    %2288 = vmatprep.subr.bf16.mxu0 0
    %2289 = vmatpush1.bf16.msra.mxu0 0
    %2290 = vmatprep.subr.bf16.mxu0 0
    %2291 = vmatpush1.bf16.msra.mxu0 0
    %2292 = vmatprep.subr.bf16.mxu0 0
    %2293 = vmatpush1.bf16.msra.mxu0 0
    %2294 = vmatprep.subr.bf16.mxu0 0
    %2295 = vmatpush1.bf16.msra.mxu0 0
    %2296 = vmatprep.subr.bf16.mxu0 0
    %2297 = vmatpush1.bf16.msra.mxu0 0
    %2298 = vmatprep.subr.bf16.mxu0 0
    %2299 = vmatpush1.bf16.msra.mxu0 0
    %2300 = vmatprep.subr.bf16.mxu0 0
    %2301 = vmatpush1.bf16.msra.mxu0 0
    %2302 = vmatprep.subr.bf16.mxu0 0
    %2303 = vmatpush1.bf16.msra.mxu0 0
    %2304 = vmatprep.subr.bf16.mxu0 0
    %2305 = vmatpush1.bf16.msra.mxu0 0
    %2306 = vmatprep.subr.bf16.mxu0 0
    %2307 = vmatpush1.bf16.msra.mxu0 0
    %2308 = vmatprep.subr.bf16.mxu0 0
    %2309 = vmatpush1.bf16.msra.mxu0 0
    %2310 = vmatprep.subr.bf16.mxu0 0
    %2311 = vmatpush1.bf16.msra.mxu0 0
    %2312 = vmatprep.subr.bf16.mxu0 0
    %2313 = vmatpush1.bf16.msra.mxu0 0
    %2314 = vmatprep.mubr.bf16.mxu0 0
    %2315 = vmatmul.mubr.bf16.gmra.mrb[0].mxu0 %v2277
    %v2316 = vpop.f32.mrb[0].mxu0
    %v2317 = vadd.f32 0.0, %v2316
    %v2318 = vpop.f32.mrb[0].mxu0
    %v2319 = vpop.f32.mrb[0].mxu0
    %v2320 = vpop.f32.mrb[0].mxu0
    %2321 = vdwg.mxu0
    %2322 = vrot.lane.b32.xlu0 %v1622, 64
    %v2323 = vpop.permute.xlu0 %2322
    %v2325 = vsel %vm180, %v2126, 0
    %v2328 = vsel %vm70, %v2323, 0
    %2330 = vmatprep.subr.bf16.mxu0 0
    %2331 = vmatpush1.bf16.msra.mxu0 %v2328
    %2332 = vmatprep.subr.bf16.mxu0 0
    %2333 = vmatpush1.bf16.msra.mxu0 0
    %2334 = vmatprep.subr.bf16.mxu0 0
    %2335 = vmatpush1.bf16.msra.mxu0 0
    %2336 = vmatprep.subr.bf16.mxu0 0
    %2337 = vmatpush1.bf16.msra.mxu0 0
    %2338 = vmatprep.subr.bf16.mxu0 0
    %2339 = vmatpush1.bf16.msra.mxu0 0
    %2340 = vmatprep.subr.bf16.mxu0 0
    %2341 = vmatpush1.bf16.msra.mxu0 0
    %2342 = vmatprep.subr.bf16.mxu0 0
    %2343 = vmatpush1.bf16.msra.mxu0 0
    %2344 = vmatprep.subr.bf16.mxu0 0
    %2345 = vmatpush1.bf16.msra.mxu0 0
    %2346 = vmatprep.subr.bf16.mxu0 0
    %2347 = vmatpush1.bf16.msra.mxu0 0
    %2348 = vmatprep.subr.bf16.mxu0 0
    %2349 = vmatpush1.bf16.msra.mxu0 0
    %2350 = vmatprep.subr.bf16.mxu0 0
    %2351 = vmatpush1.bf16.msra.mxu0 0
    %2352 = vmatprep.subr.bf16.mxu0 0
    %2353 = vmatpush1.bf16.msra.mxu0 0
    %2354 = vmatprep.subr.bf16.mxu0 0
    %2355 = vmatpush1.bf16.msra.mxu0 0
    %2356 = vmatprep.subr.bf16.mxu0 0
    %2357 = vmatpush1.bf16.msra.mxu0 0
    %2358 = vmatprep.subr.bf16.mxu0 0
    %2359 = vmatpush1.bf16.msra.mxu0 0
    %2360 = vmatprep.subr.bf16.mxu0 0
    %2361 = vmatpush1.bf16.msra.mxu0 0
    %2362 = vmatprep.mubr.bf16.mxu0 0
    %2363 = vmatmul.mubr.bf16.gmra.mrb[0].mxu0 %v2325
    %v2364 = vpop.f32.mrb[0].mxu0
    %v2365 = vadd.f32 0.0, %v2364
    %v2366 = vpop.f32.mrb[0].mxu0
    %v2367 = vpop.f32.mrb[0].mxu0
    %v2368 = vpop.f32.mrb[0].mxu0
    %2369 = vdwg.mxu0
    %2370 = vrot.lane.b32.xlu0 %v1623, 64
    %v2371 = vpop.permute.xlu0 %2370
    %v2373 = vsel %vm180, %v2127, 0
    %v2376 = vsel %vm70, %v2371, 0
    %2378 = vmatprep.subr.bf16.mxu0 0
    %2379 = vmatpush1.bf16.msra.mxu0 %v2376
    %2380 = vmatprep.subr.bf16.mxu0 0
    %2381 = vmatpush1.bf16.msra.mxu0 0
    %2382 = vmatprep.subr.bf16.mxu0 0
    %2383 = vmatpush1.bf16.msra.mxu0 0
    %2384 = vmatprep.subr.bf16.mxu0 0
    %2385 = vmatpush1.bf16.msra.mxu0 0
    %2386 = vmatprep.subr.bf16.mxu0 0
    %2387 = vmatpush1.bf16.msra.mxu0 0
    %2388 = vmatprep.subr.bf16.mxu0 0
    %2389 = vmatpush1.bf16.msra.mxu0 0
    %2390 = vmatprep.subr.bf16.mxu0 0
    %2391 = vmatpush1.bf16.msra.mxu0 0
    %2392 = vmatprep.subr.bf16.mxu0 0
    %2393 = vmatpush1.bf16.msra.mxu0 0
    %2394 = vmatprep.subr.bf16.mxu0 0
    %2395 = vmatpush1.bf16.msra.mxu0 0
    %2396 = vmatprep.subr.bf16.mxu0 0
    %2397 = vmatpush1.bf16.msra.mxu0 0
    %2398 = vmatprep.subr.bf16.mxu0 0
    %2399 = vmatpush1.bf16.msra.mxu0 0
    %2400 = vmatprep.subr.bf16.mxu0 0
    %2401 = vmatpush1.bf16.msra.mxu0 0
    %2402 = vmatprep.subr.bf16.mxu0 0
    %2403 = vmatpush1.bf16.msra.mxu0 0
    %2404 = vmatprep.subr.bf16.mxu0 0
    %2405 = vmatpush1.bf16.msra.mxu0 0
    %2406 = vmatprep.subr.bf16.mxu0 0
    %2407 = vmatpush1.bf16.msra.mxu0 0
    %2408 = vmatprep.subr.bf16.mxu0 0
    %2409 = vmatpush1.bf16.msra.mxu0 0
    %2410 = vmatprep.mubr.bf16.mxu0 0
    %2411 = vmatmul.mubr.bf16.gmra.mrb[0].mxu0 %v2373
    %v2412 = vpop.f32.mrb[0].mxu0
    %v2413 = vadd.f32 0.0, %v2412
    %v2414 = vpop.f32.mrb[0].mxu0
    %v2415 = vpop.f32.mrb[0].mxu0
    %v2416 = vpop.f32.mrb[0].mxu0
    %2417 = vdwg.mxu0
    %2418 = vrot.lane.b32.xlu0 %v1624, 64
    %v2419 = vpop.permute.xlu0 %2418
    %v2421 = vsel %vm180, %v2128, 0
    %v2424 = vsel %vm70, %v2419, 0
    %2426 = vmatprep.subr.bf16.mxu0 0
    %2427 = vmatpush1.bf16.msra.mxu0 %v2424
    %2428 = vmatprep.subr.bf16.mxu0 0
    %2429 = vmatpush1.bf16.msra.mxu0 0
    %2430 = vmatprep.subr.bf16.mxu0 0
    %2431 = vmatpush1.bf16.msra.mxu0 0
    %2432 = vmatprep.subr.bf16.mxu0 0
    %2433 = vmatpush1.bf16.msra.mxu0 0
    %2434 = vmatprep.subr.bf16.mxu0 0
    %2435 = vmatpush1.bf16.msra.mxu0 0
    %2436 = vmatprep.subr.bf16.mxu0 0
    %2437 = vmatpush1.bf16.msra.mxu0 0
    %2438 = vmatprep.subr.bf16.mxu0 0
    %2439 = vmatpush1.bf16.msra.mxu0 0
    %2440 = vmatprep.subr.bf16.mxu0 0
    %2441 = vmatpush1.bf16.msra.mxu0 0
    %2442 = vmatprep.subr.bf16.mxu0 0
    %2443 = vmatpush1.bf16.msra.mxu0 0
    %2444 = vmatprep.subr.bf16.mxu0 0
    %2445 = vmatpush1.bf16.msra.mxu0 0
    %2446 = vmatprep.subr.bf16.mxu0 0
    %2447 = vmatpush1.bf16.msra.mxu0 0
    %2448 = vmatprep.subr.bf16.mxu0 0
    %2449 = vmatpush1.bf16.msra.mxu0 0
    %2450 = vmatprep.subr.bf16.mxu0 0
    %2451 = vmatpush1.bf16.msra.mxu0 0
    %2452 = vmatprep.subr.bf16.mxu0 0
    %2453 = vmatpush1.bf16.msra.mxu0 0
    %2454 = vmatprep.subr.bf16.mxu0 0
    %2455 = vmatpush1.bf16.msra.mxu0 0
    %2456 = vmatprep.subr.bf16.mxu0 0
    %2457 = vmatpush1.bf16.msra.mxu0 0
    %2458 = vmatprep.mubr.bf16.mxu0 0
    %2459 = vmatmul.mubr.bf16.gmra.mrb[0].mxu0 %v2421
    %v2460 = vpop.f32.mrb[0].mxu0
    %v2461 = vadd.f32 0.0, %v2460
    %v2462 = vpop.f32.mrb[0].mxu0
    %v2463 = vpop.f32.mrb[0].mxu0
    %v2464 = vpop.f32.mrb[0].mxu0
    %2465 = vdwg.mxu0
    %2466 = vrot.lane.b32.xlu0 %v1625, 64
    %v2467 = vpop.permute.xlu0 %2466
    %v2469 = vsel %vm180, %v2129, 0
    %v2472 = vsel %vm70, %v2467, 0
    %2474 = vmatprep.subr.bf16.mxu0 0
    %2475 = vmatpush1.bf16.msra.mxu0 %v2472
    %2476 = vmatprep.subr.bf16.mxu0 0
    %2477 = vmatpush1.bf16.msra.mxu0 0
    %2478 = vmatprep.subr.bf16.mxu0 0
    %2479 = vmatpush1.bf16.msra.mxu0 0
    %2480 = vmatprep.subr.bf16.mxu0 0
    %2481 = vmatpush1.bf16.msra.mxu0 0
    %2482 = vmatprep.subr.bf16.mxu0 0
    %2483 = vmatpush1.bf16.msra.mxu0 0
    %2484 = vmatprep.subr.bf16.mxu0 0
    %2485 = vmatpush1.bf16.msra.mxu0 0
    %2486 = vmatprep.subr.bf16.mxu0 0
    %2487 = vmatpush1.bf16.msra.mxu0 0
    %2488 = vmatprep.subr.bf16.mxu0 0
    %2489 = vmatpush1.bf16.msra.mxu0 0
    %2490 = vmatprep.subr.bf16.mxu0 0
    %2491 = vmatpush1.bf16.msra.mxu0 0
    %2492 = vmatprep.subr.bf16.mxu0 0
    %2493 = vmatpush1.bf16.msra.mxu0 0
    %2494 = vmatprep.subr.bf16.mxu0 0
    %2495 = vmatpush1.bf16.msra.mxu0 0
    %2496 = vmatprep.subr.bf16.mxu0 0
    %2497 = vmatpush1.bf16.msra.mxu0 0
    %2498 = vmatprep.subr.bf16.mxu0 0
    %2499 = vmatpush1.bf16.msra.mxu0 0
    %2500 = vmatprep.subr.bf16.mxu0 0
    %2501 = vmatpush1.bf16.msra.mxu0 0
    %2502 = vmatprep.subr.bf16.mxu0 0
    %2503 = vmatpush1.bf16.msra.mxu0 0
    %2504 = vmatprep.subr.bf16.mxu0 0
    %2505 = vmatpush1.bf16.msra.mxu0 0
    %2506 = vmatprep.mubr.bf16.mxu0 0
    %2507 = vmatmul.mubr.bf16.gmra.mrb[0].mxu0 %v2469
    %v2508 = vpop.f32.mrb[0].mxu0
    %v2509 = vadd.f32 0.0, %v2508
    %v2510 = vpop.f32.mrb[0].mxu0
    %v2511 = vpop.f32.mrb[0].mxu0
    %v2512 = vpop.f32.mrb[0].mxu0
    %2513 = vdwg.mxu0
    %2516 = vrot.lane.b32.xlu0 %v2269, 8
    %v2517 = vpop.permute.xlu0 %2516
    %2518 = vrot.lane.b32.xlu0 %v2317, 8
    %v2519 = vpop.permute.xlu0 %2518
    %2524 = vrot.lane.b32.xlu0 %v2365, 16
    %v2525 = vpop.permute.xlu0 %2524
    %2526 = vrot.lane.b32.xlu0 %v2413, 16
    %v2527 = vpop.permute.xlu0 %2526
    %2532 = vrot.lane.b32.xlu0 %v2461, 24
    %v2533 = vpop.permute.xlu0 %2532
    %2534 = vrot.lane.b32.xlu0 %v2509, 24
    %v2535 = vpop.permute.xlu0 %2534
    %v2538 = vsel %vm180, %v2173, %v2517
    %v2539 = vsel %vm180, %v2221, %v2519
    %v2540 = vsel %vm1182, %v2538, %v2525
    %v2541 = vsel %vm1182, %v2539, %v2527
    %v2542 = vsel %vm1185, %v2540, %v2533
    %v2543 = vsel %vm1185, %v2541, %v2535
    %v2544 = vpack.c.bf16 %v2542, %v2542
    %v2545 = vpack.c.bf16 %v2543, %v2543
    %s2546 = scalar_lea.vmem %s4, 16
    %v2547 = vld [vmem:[%s2546] sm:$0xf]
    %v2548 = vld [vmem:[%s2546 + $0x4] sm:$0xf]
    %v2549 = vld [vmem:[%s2546 + $0x8] sm:$0xf]
    %v2550 = vld [vmem:[%s2546 + $0xc] sm:$0xf]
    %s2551 = scalar_lea.vmem %s5, 1
    %v2552 = vld [vmem:[%s2551] sm:$0x1]
    %v2554 = vlaneseq
    %v2555 = vshrl.u32 %v2554, 7
    %v2556 = vsub.s32 0, %v2555
    %v2557 = vrot.slane %v2552, %v2556
    %v2561 = vunpack.c.l.b16 %v2544
    %v2562 = vunpack.c.l.b16 %v2545
    %v2563 = vpack.c.b16 %v2562, %v2561
    %v2568 = vunpack.c.l.b16 %v2547
    %v2569 = vunpack.c.l.b16 %v2548
    %v2570 = vunpack.c.l.b16 %v2549
    %v2571 = vunpack.c.l.b16 %v2550
    %v2572 = vpack.c.b16 %v2569, %v2568
    %v2573 = vpack.c.b16 %v2571, %v2570
    %v2577 = vsel %vm104, %v2563, 0
    %2579 = vmatprep.subr.bf16.mxu0 0
    %2580 = vmatpush1.bf16.msra.mxu0 %v2572
    %2581 = vmatprep.subr.bf16.mxu0 0
    %2582 = vmatpush1.bf16.msra.mxu0 %v2573
    %2583 = vmatprep.subr.bf16.mxu0 0
    %2584 = vmatpush1.bf16.msra.mxu0 0
    %2585 = vmatprep.subr.bf16.mxu0 0
    %2586 = vmatpush1.bf16.msra.mxu0 0
    %2587 = vmatprep.subr.bf16.mxu0 0
    %2588 = vmatpush1.bf16.msra.mxu0 0
    %2589 = vmatprep.subr.bf16.mxu0 0
    %2590 = vmatpush1.bf16.msra.mxu0 0
    %2591 = vmatprep.subr.bf16.mxu0 0
    %2592 = vmatpush1.bf16.msra.mxu0 0
    %2593 = vmatprep.subr.bf16.mxu0 0
    %2594 = vmatpush1.bf16.msra.mxu0 0
    %2595 = vmatprep.subr.bf16.mxu0 0
    %2596 = vmatpush1.bf16.msra.mxu0 0
    %2597 = vmatprep.subr.bf16.mxu0 0
    %2598 = vmatpush1.bf16.msra.mxu0 0
    %2599 = vmatprep.subr.bf16.mxu0 0
    %2600 = vmatpush1.bf16.msra.mxu0 0
    %2601 = vmatprep.subr.bf16.mxu0 0
    %2602 = vmatpush1.bf16.msra.mxu0 0
    %2603 = vmatprep.subr.bf16.mxu0 0
    %2604 = vmatpush1.bf16.msra.mxu0 0
    %2605 = vmatprep.subr.bf16.mxu0 0
    %2606 = vmatpush1.bf16.msra.mxu0 0
    %2607 = vmatprep.subr.bf16.mxu0 0
    %2608 = vmatpush1.bf16.msra.mxu0 0
    %2609 = vmatprep.subr.bf16.mxu0 0
    %2610 = vmatpush1.bf16.msra.mxu0 0
    %2611 = vmatprep.mubr.bf16.mxu0 0
    %2612 = vmatmul.mubr.bf16.gmra.mrb[0].mxu0 %v2577
    %v2613 = vpop.f32.mrb[0].mxu0
    %v2614 = vadd.f32 %v2557, %v2613
    %v2615 = vpop.f32.mrb[0].mxu0
    %v2616 = vpop.f32.mrb[0].mxu0
    %v2617 = vadd.f32 %v2557, %v2616
    %v2618 = vpop.f32.mrb[0].mxu0
    %2619 = vdwg.mxu0
    %v2620 = vadd.f32 %v1520, %v2614
    %v2621 = vadd.f32 %v1521, %v2617
    %s2622 = scalar_lea.vmem %s10, 1
    %v2623 = vld [vmem:[%s2622] sm:$0x1]
    %s2624 = scalar_lea.vmem %s11, 1
    %v2625 = vld [vmem:[%s2624] sm:$0x1]
    %v2626 = vsel %vm104, %v2620, 0.0
    %2627 = vadd.xlane.f32.xlu0 %v2626
    %v2628 = vpop.xlane.xlu0 %2627
    %v2629 = vsel %vm104, %v2621, 0.0
    %2630 = vadd.xlane.f32.xlu0 %v2629
    %v2631 = vpop.xlane.xlu0 %2630
    %v2632 = vmul.f32 %v2628, %v1272
    %v2633 = vmul.f32 %v2631, %v1272
    %v2634 = vsub.f32 %v2620, %v2632
    %v2635 = vsub.f32 %v2621, %v2633
    %v2636 = vmul.f32 %v2634, %v2634
    %v2637 = vmul.f32 %v2635, %v2635
    %v2638 = vsel %vm104, %v2636, 0.0
    %2639 = vadd.xlane.f32.xlu0 %v2638
    %v2640 = vpop.xlane.xlu0 %2639
    %v2641 = vsel %vm104, %v2637, 0.0
    %2642 = vadd.xlane.f32.xlu0 %v2641
    %v2643 = vpop.xlane.xlu0 %2642
    %v2644 = vmul.f32 %v2640, %v1272
    %v2645 = vmul.f32 %v2643, %v1272
    %v2646 = vadd.f32 %v2644, 1e-05
    %v2647 = vadd.f32 %v2645, 1e-05
    %v2648 = vrsqrt.pop %v2646
    %v2649 = vrsqrt.pop %v2647
    %v2650 = vmul.f32 %v2634, %v2648
    %v2651 = vmul.f32 %v2635, %v2649
    %v2653 = vlaneseq
    %v2654 = vshrl.u32 %v2653, 7
    %v2655 = vsub.s32 0, %v2654
    %v2656 = vrot.slane %v2623, %v2655
    %v2658 = vmul.f32 %v2650, %v2656
    %v2659 = vmul.f32 %v2651, %v2656
    %v2661 = vlaneseq
    %v2662 = vshrl.u32 %v2661, 7
    %v2663 = vsub.s32 0, %v2662
    %v2664 = vrot.slane %v2625, %v2663
    %v2666 = vadd.f32 %v2658, %v2664
    %v2667 = vadd.f32 %v2659, %v2664
    %v2668 = vpack.c.bf16 %v2666, %v2666
    %v2669 = vpack.c.bf16 %v2667, %v2667
    %s2670 = scalar_lea.vmem %s6, 16
    %v2671 = vld [vmem:[%s2670] sm:$0xf]
    %v2672 = vld [vmem:[%s2670 + $0x4] sm:$0xf]
    %v2673 = vld [vmem:[%s2670 + $0x8] sm:$0xf]
    %v2674 = vld [vmem:[%s2670 + $0xc] sm:$0xf]
    %s2675 = scalar_lea.vmem %s7, 1
    %v2676 = vld [vmem:[%s2675] sm:$0x1]
    %v2678 = vlaneseq
    %v2679 = vshrl.u32 %v2678, 7
    %v2680 = vsub.s32 0, %v2679
    %v2681 = vrot.slane %v2676, %v2680
    %v2685 = vunpack.c.l.b16 %v2668
    %v2686 = vunpack.c.l.b16 %v2669
    %v2687 = vpack.c.b16 %v2686, %v2685
    %v2692 = vunpack.c.l.b16 %v2671
    %v2693 = vunpack.c.l.b16 %v2672
    %v2694 = vunpack.c.l.b16 %v2673
    %v2695 = vunpack.c.l.b16 %v2674
    %v2696 = vpack.c.b16 %v2693, %v2692
    %v2697 = vpack.c.b16 %v2695, %v2694
    %v2701 = vsel %vm104, %v2687, 0
    %2703 = vmatprep.subr.bf16.mxu0 0
    %2704 = vmatpush1.bf16.msra.mxu0 %v2696
    %2705 = vmatprep.subr.bf16.mxu0 0
    %2706 = vmatpush1.bf16.msra.mxu0 %v2697
    %2707 = vmatprep.subr.bf16.mxu0 0
    %2708 = vmatpush1.bf16.msra.mxu0 0
    %2709 = vmatprep.subr.bf16.mxu0 0
    %2710 = vmatpush1.bf16.msra.mxu0 0
    %2711 = vmatprep.subr.bf16.mxu0 0
    %2712 = vmatpush1.bf16.msra.mxu0 0
    %2713 = vmatprep.subr.bf16.mxu0 0
    %2714 = vmatpush1.bf16.msra.mxu0 0
    %2715 = vmatprep.subr.bf16.mxu0 0
    %2716 = vmatpush1.bf16.msra.mxu0 0
    %2717 = vmatprep.subr.bf16.mxu0 0
    %2718 = vmatpush1.bf16.msra.mxu0 0
    %2719 = vmatprep.subr.bf16.mxu0 0
    %2720 = vmatpush1.bf16.msra.mxu0 0
    %2721 = vmatprep.subr.bf16.mxu0 0
    %2722 = vmatpush1.bf16.msra.mxu0 0
    %2723 = vmatprep.subr.bf16.mxu0 0
    %2724 = vmatpush1.bf16.msra.mxu0 0
    %2725 = vmatprep.subr.bf16.mxu0 0
    %2726 = vmatpush1.bf16.msra.mxu0 0
    %2727 = vmatprep.subr.bf16.mxu0 0
    %2728 = vmatpush1.bf16.msra.mxu0 0
    %2729 = vmatprep.subr.bf16.mxu0 0
    %2730 = vmatpush1.bf16.msra.mxu0 0
    %2731 = vmatprep.subr.bf16.mxu0 0
    %2732 = vmatpush1.bf16.msra.mxu0 0
    %2733 = vmatprep.subr.bf16.mxu0 0
    %2734 = vmatpush1.bf16.msra.mxu0 0
    %2735 = vmatprep.mubr.bf16.mxu0 0
    %2736 = vmatmul.mubr.bf16.gmra.mrb[0].mxu0 %v2701
    %v2737 = vpop.f32.mrb[0].mxu0
    %v2738 = vadd.f32 %v2681, %v2737
    %v2739 = vpop.f32.mrb[0].mxu0
    %v2740 = vpop.f32.mrb[0].mxu0
    %v2741 = vadd.f32 %v2681, %v2740
    %v2742 = vpop.f32.mrb[0].mxu0
    %2743 = vdwg.mxu0
    %v2744 = vmax.f32 %v2738, 0.0
    %v2745 = vmax.f32 %v2741, 0.0
    %v2746 = vpack.c.bf16 %v2744, %v2744
    %v2747 = vpack.c.bf16 %v2745, %v2745
    %s2748 = scalar_lea.vmem %s8, 32
    %v2749 = vld [vmem:[%s2748] sm:$0xf]
    %v2750 = vld [vmem:[%s2748 + $0x4] sm:$0xf]
    %v2751 = vld [vmem:[%s2748 + $0x8] sm:$0xf]
    %v2752 = vld [vmem:[%s2748 + $0xc] sm:$0xf]
    %v2753 = vld [vmem:[%s2748 + $0x10] sm:$0xf]
    %v2754 = vld [vmem:[%s2748 + $0x14] sm:$0xf]
    %v2755 = vld [vmem:[%s2748 + $0x18] sm:$0xf]
    %v2756 = vld [vmem:[%s2748 + $0x1c] sm:$0xf]
    %s2757 = scalar_lea.vmem %s9, 1
    %v2758 = vld [vmem:[%s2757] sm:$0x1]
    %v2760 = vlaneseq
    %v2761 = vshrl.u32 %v2760, 7
    %v2762 = vsub.s32 0, %v2761
    %v2763 = vrot.slane %v2758, %v2762
    %v2767 = vunpack.c.l.b16 %v2746
    %v2768 = vunpack.c.l.b16 %v2747
    %v2769 = vpack.c.b16 %v2768, %v2767
    %v2778 = vunpack.c.l.b16 %v2749
    %v2779 = vunpack.c.l.b16 %v2750
    %v2780 = vunpack.c.l.b16 %v2751
    %v2781 = vunpack.c.l.b16 %v2752
    %v2782 = vunpack.c.l.b16 %v2753
    %v2783 = vunpack.c.l.b16 %v2754
    %v2784 = vunpack.c.l.b16 %v2755
    %v2785 = vunpack.c.l.b16 %v2756
    %v2786 = vpack.c.b16 %v2779, %v2778
    %v2787 = vpack.c.b16 %v2781, %v2780
    %v2788 = vpack.c.b16 %v2783, %v2782
    %v2789 = vpack.c.b16 %v2785, %v2784
    %v2795 = vsel %vm1431, %v2769, 0
    %2797 = vmatprep.subr.bf16.mxu0 0
    %2798 = vmatpush1.bf16.msra.mxu0 %v2786
    %2799 = vmatprep.subr.bf16.mxu0 0
    %2800 = vmatpush1.bf16.msra.mxu0 %v2787
    %2801 = vmatprep.subr.bf16.mxu0 0
    %2802 = vmatpush1.bf16.msra.mxu0 %v2788
    %2803 = vmatprep.subr.bf16.mxu0 0
    %2804 = vmatpush1.bf16.msra.mxu0 %v2789
    %2805 = vmatprep.subr.bf16.mxu0 0
    %2806 = vmatpush1.bf16.msra.mxu0 0
    %2807 = vmatprep.subr.bf16.mxu0 0
    %2808 = vmatpush1.bf16.msra.mxu0 0
    %2809 = vmatprep.subr.bf16.mxu0 0
    %2810 = vmatpush1.bf16.msra.mxu0 0
    %2811 = vmatprep.subr.bf16.mxu0 0
    %2812 = vmatpush1.bf16.msra.mxu0 0
    %2813 = vmatprep.subr.bf16.mxu0 0
    %2814 = vmatpush1.bf16.msra.mxu0 0
    %2815 = vmatprep.subr.bf16.mxu0 0
    %2816 = vmatpush1.bf16.msra.mxu0 0
    %2817 = vmatprep.subr.bf16.mxu0 0
    %2818 = vmatpush1.bf16.msra.mxu0 0
    %2819 = vmatprep.subr.bf16.mxu0 0
    %2820 = vmatpush1.bf16.msra.mxu0 0
    %2821 = vmatprep.subr.bf16.mxu0 0
    %2822 = vmatpush1.bf16.msra.mxu0 0
    %2823 = vmatprep.subr.bf16.mxu0 0
    %2824 = vmatpush1.bf16.msra.mxu0 0
    %2825 = vmatprep.subr.bf16.mxu0 0
    %2826 = vmatpush1.bf16.msra.mxu0 0
    %2827 = vmatprep.subr.bf16.mxu0 0
    %2828 = vmatpush1.bf16.msra.mxu0 0
    %2829 = vmatprep.mubr.bf16.mxu0 0
    %2830 = vmatmul.mubr.bf16.gmra.mrb[0].mxu0 %v2795
    %v2831 = vpop.f32.mrb[0].mxu0
    %v2832 = vadd.f32 %v2763, %v2831
    %v2833 = vpop.f32.mrb[0].mxu0
    %v2834 = vpop.f32.mrb[0].mxu0
    %v2835 = vadd.f32 %v2763, %v2834
    %v2836 = vpop.f32.mrb[0].mxu0
    %2837 = vdwg.mxu0
    %v2838 = vadd.f32 %v2666, %v2832
    %v2839 = vadd.f32 %v2667, %v2835
    %s2840 = scalar_lea.vmem %s12, 1
    %v2841 = vld [vmem:[%s2840] sm:$0x1]
    %s2842 = scalar_lea.vmem %s13, 1
    %v2843 = vld [vmem:[%s2842] sm:$0x1]
    %v2844 = vsel %vm104, %v2838, 0.0
    %2845 = vadd.xlane.f32.xlu0 %v2844
    %v2846 = vpop.xlane.xlu0 %2845
    %v2847 = vsel %vm104, %v2839, 0.0
    %2848 = vadd.xlane.f32.xlu0 %v2847
    %v2849 = vpop.xlane.xlu0 %2848
    %v2850 = vmul.f32 %v2846, %v1272
    %v2851 = vmul.f32 %v2849, %v1272
    %v2852 = vsub.f32 %v2838, %v2850
    %v2853 = vsub.f32 %v2839, %v2851
    %v2854 = vmul.f32 %v2852, %v2852
    %v2855 = vmul.f32 %v2853, %v2853
    %v2856 = vsel %vm104, %v2854, 0.0
    %2857 = vadd.xlane.f32.xlu0 %v2856
    %v2858 = vpop.xlane.xlu0 %2857
    %v2859 = vsel %vm104, %v2855, 0.0
    %2860 = vadd.xlane.f32.xlu0 %v2859
    %v2861 = vpop.xlane.xlu0 %2860
    %v2862 = vmul.f32 %v2858, %v1272
    %v2863 = vmul.f32 %v2861, %v1272
    %v2864 = vadd.f32 %v2862, 1e-05
    %v2865 = vadd.f32 %v2863, 1e-05
    %v2866 = vrsqrt.pop %v2864
    %v2867 = vrsqrt.pop %v2865
    %v2868 = vmul.f32 %v2852, %v2866
    %v2869 = vmul.f32 %v2853, %v2867
    %v2871 = vlaneseq
    %v2872 = vshrl.u32 %v2871, 7
    %v2873 = vsub.s32 0, %v2872
    %v2874 = vrot.slane %v2841, %v2873
    %v2876 = vmul.f32 %v2868, %v2874
    %v2877 = vmul.f32 %v2869, %v2874
    %v2879 = vlaneseq
    %v2880 = vshrl.u32 %v2879, 7
    %v2881 = vsub.s32 0, %v2880
    %v2882 = vrot.slane %v2843, %v2881
    %v2884 = vadd.f32 %v2876, %v2882
    %v2885 = vadd.f32 %v2877, %v2882
    %v2886 = vld [vmem:[%s14] sm:$0x1]
    %v2887 = vld [vmem:[%s15] sm:$0x1]
    %v2888 = vsel %vm104, %v2884, 0.0
    %2889 = vadd.xlane.f32.xlu0 %v2888
    %v2890 = vpop.xlane.xlu0 %2889
    %v2891 = vsel %vm104, %v2885, 0.0
    %2892 = vadd.xlane.f32.xlu0 %v2891
    %v2893 = vpop.xlane.xlu0 %2892
    %v2894 = vmul.f32 %v2890, %v1272
    %v2895 = vmul.f32 %v2893, %v1272
    %v2896 = vsub.f32 %v2884, %v2894
    %v2897 = vsub.f32 %v2885, %v2895
    %v2898 = vmul.f32 %v2896, %v2896
    %v2899 = vmul.f32 %v2897, %v2897
    %v2900 = vsel %vm104, %v2898, 0.0
    %2901 = vadd.xlane.f32.xlu0 %v2900
    %v2902 = vpop.xlane.xlu0 %2901
    %v2903 = vsel %vm104, %v2899, 0.0
    %2904 = vadd.xlane.f32.xlu0 %v2903
    %v2905 = vpop.xlane.xlu0 %2904
    %v2906 = vmul.f32 %v2902, %v1272
    %v2907 = vmul.f32 %v2905, %v1272
    %v2908 = vadd.f32 %v2906, 1e-05
    %v2909 = vadd.f32 %v2907, 1e-05
    %v2910 = vrsqrt.pop %v2908
    %v2911 = vrsqrt.pop %v2909
    %v2912 = vmul.f32 %v2896, %v2910
    %v2913 = vmul.f32 %v2897, %v2911
    %v2915 = vlaneseq
    %v2916 = vshrl.u32 %v2915, 7
    %v2917 = vsub.s32 0, %v2916
    %v2918 = vrot.slane %v2886, %v2917
    %v2920 = vmul.f32 %v2912, %v2918
    %v2921 = vmul.f32 %v2913, %v2918
    %v2923 = vlaneseq
    %v2924 = vshrl.u32 %v2923, 7
    %v2925 = vsub.s32 0, %v2924
    %v2926 = vrot.slane %v2887, %v2925
    %v2928 = vadd.f32 %v2920, %v2926
    %v2929 = vadd.f32 %v2921, %v2926
    %v2930 = vpack.c.bf16 %v2928, %v2928
    %v2931 = vpack.c.bf16 %v2929, %v2929
    %v2932 = vld [vmem:[%s16] sm:$0xf]
    %v2933 = vld [vmem:[%s16 + $0x4] sm:$0xf]
    %v2934 = vld [vmem:[%s16 + $0x8] sm:$0xf]
    %v2935 = vld [vmem:[%s16 + $0xc] sm:$0xf]
    %v2938 = vunpack.c.l.b16 %v2930
    %v2939 = vunpack.c.l.b16 %v2931
    %v2940 = vrot.slane %v2938, 7
    %v2941 = vrot.slane %v2939, 6
    %vm2942 = vcmask 1041409
    %v2943 = vsel %vm2942, %v2941, %v2940
    %v2944 = vpack.c.b16 %v2943, %v2943
    %v2949 = vunpack.c.l.b16 %v2932
    %v2950 = vunpack.c.l.b16 %v2933
    %v2951 = vunpack.c.l.b16 %v2934
    %v2952 = vunpack.c.l.b16 %v2935
    %v2953 = vpack.c.b16 %v2950, %v2949
    %v2954 = vpack.c.b16 %v2952, %v2951
    %v2958 = vsel %vm104, %v2944, 0
    %2960 = vmatprep.subr.bf16.mxu0 0
    %2961 = vmatpush1.bf16.msra.mxu0 %v2953
    %2962 = vmatprep.subr.bf16.mxu0 0
    %2963 = vmatpush1.bf16.msra.mxu0 %v2954
    %2964 = vmatprep.subr.bf16.mxu0 0
    %2965 = vmatpush1.bf16.msra.mxu0 0
    %2966 = vmatprep.subr.bf16.mxu0 0
    %2967 = vmatpush1.bf16.msra.mxu0 0
    %2968 = vmatprep.subr.bf16.mxu0 0
    %2969 = vmatpush1.bf16.msra.mxu0 0
    %2970 = vmatprep.subr.bf16.mxu0 0
    %2971 = vmatpush1.bf16.msra.mxu0 0
    %2972 = vmatprep.subr.bf16.mxu0 0
    %2973 = vmatpush1.bf16.msra.mxu0 0
    %2974 = vmatprep.subr.bf16.mxu0 0
    %2975 = vmatpush1.bf16.msra.mxu0 0
    %2976 = vmatprep.subr.bf16.mxu0 0
    %2977 = vmatpush1.bf16.msra.mxu0 0
    %2978 = vmatprep.subr.bf16.mxu0 0
    %2979 = vmatpush1.bf16.msra.mxu0 0
    %2980 = vmatprep.subr.bf16.mxu0 0
    %2981 = vmatpush1.bf16.msra.mxu0 0
    %2982 = vmatprep.subr.bf16.mxu0 0
    %2983 = vmatpush1.bf16.msra.mxu0 0
    %2984 = vmatprep.subr.bf16.mxu0 0
    %2985 = vmatpush1.bf16.msra.mxu0 0
    %2986 = vmatprep.subr.bf16.mxu0 0
    %2987 = vmatpush1.bf16.msra.mxu0 0
    %2988 = vmatprep.subr.bf16.mxu0 0
    %2989 = vmatpush1.bf16.msra.mxu0 0
    %2990 = vmatprep.subr.bf16.mxu0 0
    %2991 = vmatpush1.bf16.msra.mxu0 0
    %2992 = vmatprep.mubr.bf16.mxu0 0
    %2993 = vmatmul.mubr.bf16.gmra.mrb[0].mxu0 %v2958
    %v2994 = vpop.f32.mrb[0].mxu0
    %v2995 = vadd.f32 0.0, %v2994
    %v2996 = vpop.f32.mrb[0].mxu0
    %v2997 = vpop.f32.mrb[0].mxu0
    %v2998 = vpop.f32.mrb[0].mxu0
    %2999 = vdwg.mxu0
    %3000 = vst [vmem:[#allocation2] sm:$0x3] %v2995
    // Predicated region
    $region70: #{sasrec_forward.1} parent=1 // pred_check
      _
    $region71: #{sasrec_forward.1} parent=1 // pred_check_branch
      %3002 = sbr.rel (0) target = $region73
    $region72: #{sasrec_forward.1} parent=1 // pred_region
      %s3004 = ssub.s32 32, 32
      %3005 = vsyncadd [#allocation3], %s3004
      %s3007 = sshll.u32 [#allocation2], 4
      %s3008 = int_to_ptr.vmem [resolvable:$true] %s3007
      %3010 = dma.vmem_to_hbm [thread:$0]  %s3008, 32, %s17, [#allocation3]
    $region73: #{sasrec_forward.1} parent=1 // pred_fallthru
      _
    // Predicated region
    $region74: #{sasrec_forward.1} parent=1 // pred_check
      _
    $region75: #{sasrec_forward.1} parent=1 // pred_check_branch
      %3012 = sbr.rel (0) target = $region77
    $region76: #{sasrec_forward.1} parent=1 // pred_region
      %3013 = dma.done [#allocation3], 32
    $region77: #{sasrec_forward.1} parent=1 // pred_fallthru
      _
    %3014 = vsyncpa [#allocation3], 1

</llo_original>
